<compile_context>
chip_gen: v7x
topology: tpu7x:2x2x1
jax: 0.10.0
libtpu: 0.0.40
codegen_flags: <defaults>
</compile_context>

<pallas_src>
import math

import jax
import jax.numpy as jnp
from jax.experimental import pallas as pl
from jax.experimental.pallas import tpu as pltpu

LEAKY_ALPHA = 0.2   # TODO(synk): config.leakRl_Alpha not given in the snippet; standard GAT slope assumed.
NEG_INF = -9.0e15   # matches the -9e15 masking constant in the PyTorch module

# A @ B.T contraction (both operands contract over their minor dim) -- the "NT" form used by
# production attention kernels, guaranteed to lower on Mosaic.
NT_DIM_NUMBERS = (((1,), (1,)), ((), ()))


def _leaky_relu(x):
    return jnp.where(x > 0, x, LEAKY_ALPHA * x)


def _elu(x):
    return jnp.where(x > 0, x, jnp.exp(x) - 1.0)


# ---------------------------------------------------------------------------
# Fused kernel: GAT (H packed heads + out_att) + GraphConvolution + cat_lin + residual
# ---------------------------------------------------------------------------
def gcn_gat_kernel(scal_ref, adj_ref, x_ref, h0_ref, w_all_ref, a1blk_ref, a2blkT_ref,
                   w_out_ref, a1o_ref, a2oT_ref, wg_ref, wc1_ref, wc2_ref, b_ref, out_ref):
    theta = scal_ref[0]          # SMEM scalars: no recompile when (l, lamda, alpha) change
    alpha = scal_ref[1]

    adj = adj_ref[...]
    x = x_ref[...]
    N = adj.shape[0]
    H = a1blk_ref.shape[1]
    HFo = w_all_ref.shape[1]
    Fo = HFo // H

    # ---- hoisted, reused by all 5 softmaxes / all H head selections ----
    mask = adj > 0
    neg = jnp.full((N, N), NEG_INF, jnp.float32)
    lane = jax.lax.broadcasted_iota(jnp.int32, (N, HFo), 1)

    def masked_softmax(e):
        att = jnp.where(mask, e, neg)
        att = jnp.exp(att - jnp.max(att, axis=1, keepdims=True))
        # exact division (review: approx reciprocal saving is unmeasurable here)
        return att / jnp.sum(att, axis=1, keepdims=True)

    # ---------------- GAT: H packed heads ----------------
    # One lane-dense (F, H*Fo) matmul for all head weights ...
    wh_all = jnp.dot(x, w_all_ref[...], preferred_element_type=jnp.float32)          # (N, H*Fo)
    # ... one matmul for all a1 projections (columns) ...
    wh1_all = jnp.dot(wh_all, a1blk_ref[...], preferred_element_type=jnp.float32)    # (N, H)
    # ... and one NT matmul producing all a2 projections directly in ROW form.
    wh2_rows = jax.lax.dot_general(a2blkT_ref[...], wh_all, NT_DIM_NUMBERS,
                                   preferred_element_type=jnp.float32)               # (H, N)

    # hp_all accumulates the per-head outputs into their 32-lane blocks: this IS the concat.
    hp_all = jnp.zeros((N, HFo), jnp.float32)
    for h in range(H):                                     # H static -> unrolled
        e = _leaky_relu(wh1_all[:, h:h + 1] + wh2_rows[h:h + 1, :])                  # (N, N)
        att = masked_softmax(e)
        # TODO(synk): F.dropout on the attention matrix is identity here (eval mode).
        # Lane-dense matmul against the FULL packed Wh; lanes outside head h are discarded
        # by the mask below (elu(0) = 0, so masked lanes contribute exactly 0).
        hp_full = _elu(jnp.dot(att, wh_all, preferred_element_type=jnp.float32))     # (N, H*Fo)
        in_head = (lane >= h * Fo) & (lane < (h + 1) * Fo)
        hp_all = hp_all + jnp.where(in_head, hp_full, 0.0)

    # ---------------- out_att head (concat=False) + outer F.elu ----------------
    # single K = H*Fo = 128 matmul for the out_att input projection (was 4 K=32 pushes)
    wh_o = jnp.dot(hp_all, w_out_ref[...], preferred_element_type=jnp.float32)       # (N, Fo)
    wh1_o = jnp.dot(wh_o, a1o_ref[...], preferred_element_type=jnp.float32)          # (N, 1)
    wh2_o = jax.lax.dot_general(a2oT_ref[...], wh_o, NT_DIM_NUMBERS,
                                preferred_element_type=jnp.float32)                  # (1, N)
    att_o = masked_softmax(_leaky_relu(wh1_o + wh2_o))
    x1 = _elu(jnp.dot(att_o, wh_o, preferred_element_type=jnp.float32))              # (N, Fo)

    # ---------------- GraphConvolution (variant=False, residual=False) ----------------
    hi = jnp.dot(adj, x, preferred_element_type=jnp.float32)
    support = (1.0 - alpha) * hi + alpha * h0_ref[...]
    x2 = theta * jnp.dot(support, wg_ref[...], preferred_element_type=jnp.float32) \
        + (1.0 - theta) * support

    # ---------------- concat([x1,x2],1) @ W_lin.T + b + residual ----------------
    y = jnp.dot(x1, wc1_ref[...], preferred_element_type=jnp.float32)
    y = y + jnp.dot(x2, wc2_ref[...], preferred_element_type=jnp.float32)
    y = y + b_ref[...] + x
    out_ref[...] = y.astype(out_ref.dtype)


# ---------------------------------------------------------------------------
# Host-side one-time weight packing
# ---------------------------------------------------------------------------
def pack_params(params):
    H = len(params["gat_heads"])
    F = params["gat_heads"][0][0].shape[0]
    Fo = params["gat_heads"][0][0].shape[1]

    w_all = jnp.concatenate([W for (W, _) in params["gat_heads"]], axis=1)        # (F, H*Fo)

    # block-diagonal packing: a1 vectors as columns (for Wh_all @ A1 -> (N,H)),
    # a2 vectors as ROWS (for A2^T @ Wh_all^T via one NT matmul -> (H,N)).
    a1_blk = jnp.zeros((H * Fo, H), jnp.float32)
    a2_blk_t = jnp.zeros((H, H * Fo), jnp.float32)
    for h, (_, a) in enumerate(params["gat_heads"]):
        a1_blk = a1_blk.at[h * Fo:(h + 1) * Fo, h:h + 1].set(a[:Fo, :])
        a2_blk_t = a2_blk_t.at[h:h + 1, h * Fo:(h + 1) * Fo].set(a[Fo:, :].T)

    a1_o = params["out_att_a"][:Fo, :]                                            # (Fo, 1)
    a2_o_t = params["out_att_a"][Fo:, :].T                                        # (1, Fo)

    wct = params["cat_lin_W"].T                                                   # (2F, F)
    return dict(w_all=w_all, a1_blk=a1_blk, a2_blk_t=a2_blk_t,
                w_out=params["out_att_W"], a1_o=a1_o, a2_o_t=a2_o_t,
                wg=params["gcn_W"], wc1=wct[:F, :], wc2=wct[F:, :],
                b=params["cat_lin_b"].reshape(1, F))


@jax.jit
def gcn_gat_forward(packed, x, adj, h0, scalars):
    """scalars = [theta, alpha] (f32, SMEM)."""
    N, F = x.shape
    H = packed["a1_blk"].shape[1]
    HFo = packed["w_all"].shape[1]
    Fo = HFo // H

    # advisory cost estimate so XLA can schedule around the custom call
    flops = 2 * (N * F * HFo            # x @ W_all
                 + N * HFo * H          # Wh_all @ A1_blk
                 + H * HFo * N          # A2_blk^T NT matmul
                 + H * N * N * HFo      # per-head att @ Wh_all
                 + N * HFo * Fo         # hp_all @ W_out  (single K=128 push)
                 + 2 * N * Fo           # out_att a1 / a2 projections
                 + N * N * Fo           # att_o @ wh_o
                 + N * N * F            # adj @ x
                 + N * F * F            # support @ Wg
                 + 2 * N * F * F)       # cat_lin (split into two matmuls)
    transcendentals = (H + 1) * N * N + H * N * HFo + N * Fo
    bytes_accessed = 4 * (int(x.size) + int(adj.size) + int(h0.size) + N * F
                          + sum(int(v.size) for v in jax.tree_util.tree_leaves(packed))
                          + int(scalars.size))

    vmem = pl.BlockSpec(memory_space=pltpu.MemorySpace.VMEM)
    smem = pl.BlockSpec(memory_space=pltpu.MemorySpace.SMEM)
    return pl.pallas_call(
        gcn_gat_kernel,
        out_shape=jax.ShapeDtypeStruct((N, F), jnp.float32),
        in_specs=[smem] + [vmem] * 13,
        out_specs=vmem,
        cost_estimate=pl.CostEstimate(flops=int(flops),
                                      transcendentals=int(transcendentals),
                                      bytes_accessed=int(bytes_accessed)),
        # NOTE: at N=64 the whole working set is tens of KiB, so a single gridless
        # invocation (one launch, zero intermediate HBM traffic) is optimal on all
        # generations.
        # TODO(synk): for large N, tile the (N,N) attention flash-style with a
        # ("parallel","arbitrary") grid (parallel axis over query-row blocks so v7x's
        # second TensorCore is used), budget tiles against v7x's 64 MiB physical /
        # 32 MiB scoped-default VMEM (set vmem_limit_bytes explicitly), and pass
        # adj / scores as bf16 (or an int8 mask) to relieve the HBM roofline on v5e/v6e.
        # TODO(synk): if GCN_GAT is applied L times, fold the layer loop into an
        # "arbitrary" grid axis (per-layer weights via index_map, theta via scalar
        # prefetch, carry via input_output_aliases) to amortize launch overhead.
    )(scalars, adj, x, h0, packed["w_all"], packed["a1_blk"], packed["a2_blk_t"],
      packed["w_out"], packed["a1_o"], packed["a2_o_t"], packed["wg"],
      packed["wc1"], packed["wc2"], packed["b"])


# ---------------------------------------------------------------------------
# Parameter init (deterministic, mirrors the shapes in __init__)
# ---------------------------------------------------------------------------
def xavier_uniform(key, shape, gain):
    fan_in, fan_out = shape[0], shape[1]
    bound = gain * math.sqrt(6.0 / (fan_in + fan_out))
    return jax.random.uniform(key, shape, jnp.float32, -bound, bound)


def init_params(key, infeature, outfeature, heads):
    assert infeature == outfeature, "GCN_GAT forward only type-checks when infeature == outfeature"
    keys = jax.random.split(key, 4 * heads + 8)
    ki = iter(range(len(keys)))

    gat_heads = []
    for _ in range(heads):
        W = xavier_uniform(keys[next(ki)], (infeature, outfeature), 1.414)
        a = xavier_uniform(keys[next(ki)], (2 * outfeature, 1), 1.414)
        gat_heads.append((W, a))

    out_att_W = xavier_uniform(keys[next(ki)], (outfeature * heads, outfeature), 1.414)
    out_att_a = xavier_uniform(keys[next(ki)], (2 * outfeature, 1), 1.414)

    stdv = 1.0 / math.sqrt(outfeature)
    gcn_W = jax.random.uniform(keys[next(ki)], (infeature, outfeature), jnp.float32, -stdv, stdv)

    lin_fan_in = infeature * 2
    lin_bound = 1.0 / math.sqrt(lin_fan_in)
    cat_lin_W = jax.random.uniform(keys[next(ki)], (outfeature, lin_fan_in), jnp.float32,
                                   -lin_bound, lin_bound)   # PyTorch Linear weight (out, in)
    cat_lin_b = jax.random.uniform(keys[next(ki)], (outfeature,), jnp.float32,
                                   -lin_bound, lin_bound)

    return dict(gat_heads=gat_heads, out_att_W=out_att_W, out_att_a=out_att_a,
                gcn_W=gcn_W, cat_lin_W=cat_lin_W, cat_lin_b=cat_lin_b)


# ---------------------------------------------------------------------------
# Pure-JAX reference (faithful to the PyTorch forward) for a numerical check
# ---------------------------------------------------------------------------
def _ref_gat_head(h, W, a, adj):
    Fo = W.shape[1]
    Wh = h @ W
    e = _leaky_relu(Wh @ a[:Fo, :] + (Wh @ a[Fo:, :]).T)
    att = jnp.where(adj > 0, e, NEG_INF)
    att = jax.nn.softmax(att, axis=1)
    return _elu(att @ Wh)


def _ref_forward(params, x, adj, h0, l, lamda, alpha):
    head_outs = [_ref_gat_head(x, W, a, adj) for (W, a) in params["gat_heads"]]
    x_cat = jnp.concatenate(head_outs, axis=1)
    x1 = _ref_gat_head(x_cat, params["out_att_W"], params["out_att_a"], adj)
    theta = math.log(lamda / l + 1.0)
    hi = adj @ x
    support = (1.0 - alpha) * hi + alpha * h0
    x2 = theta * (support @ params["gcn_W"]) + (1.0 - theta) * support
    y = jnp.concatenate([x1, x2], axis=1) @ params["cat_lin_W"].T + params["cat_lin_b"]
    return y + x


if __name__ == "__main__":
    N = 64            # number of graph nodes
    FEAT = 32         # infeature == outfeature (required by the module's own shapes)
    HEADS = 4
    LAMDA = 0.5
    ALPHA = 0.1
    L = 1

    key = jax.random.PRNGKey(0)
    k_p, k_x, k_h0, k_adj = jax.random.split(key, 4)

    params = init_params(k_p, FEAT, FEAT, HEADS)
    packed = pack_params(params)

    x = jax.random.normal(k_x, (N, FEAT), jnp.float32)
    h0 = jax.random.normal(k_h0, (N, FEAT), jnp.float32)
    # random symmetric binary adjacency with self loops
    a_rand = jax.random.uniform(k_adj, (N, N))
    adj = (a_rand + a_rand.T > 1.4).astype(jnp.float32)
    adj = jnp.maximum(adj, jnp.eye(N, dtype=jnp.float32))

    theta = math.log(LAMDA / L + 1.0)
    scalars = jnp.array([theta, ALPHA], dtype=jnp.float32)   # SMEM scalars

    out = gcn_gat_forward(packed, x, adj, h0, scalars)
    out = jax.block_until_ready(out)

    ref = _ref_forward(params, x, adj, h0, L, LAMDA, ALPHA)
    assert out.shape == (N, FEAT)
    # The kernel-side approx reciprocal was removed (exact softmax division); the remaining
    # tolerance budget covers only the XLA default f32 matmul precision (bf16 passes) used by
    # the pure-JAX reference on TPU vs. the kernel's Mosaic matmuls.
    # TODO(synk): re-validate with jax_default_matmul_precision="highest" on both sides for a
    # bit-tight (1e-5) check.
    assert jnp.allclose(out, ref, atol=1e-2, rtol=1e-2), "Pallas output mismatch vs JAX reference"

    print("KERNEL_OK")
</pallas_src>

<mosaic_0001>
module attributes {stable_mosaic.version = 11 : i64} {
  func.func @gcn_gat_kernel(%arg0: memref<2xf32, #tpu.memory_space<smem>>, %arg1: memref<64x64xf32, #tpu.memory_space<vmem>>, %arg2: memref<64x32xf32, #tpu.memory_space<vmem>>, %arg3: memref<64x32xf32, #tpu.memory_space<vmem>>, %arg4: memref<32x128xf32, #tpu.memory_space<vmem>>, %arg5: memref<128x4xf32, #tpu.memory_space<vmem>>, %arg6: memref<4x128xf32, #tpu.memory_space<vmem>>, %arg7: memref<128x32xf32, #tpu.memory_space<vmem>>, %arg8: memref<32x1xf32, #tpu.memory_space<vmem>>, %arg9: memref<1x32xf32, #tpu.memory_space<vmem>>, %arg10: memref<32x32xf32, #tpu.memory_space<vmem>>, %arg11: memref<32x32xf32, #tpu.memory_space<vmem>>, %arg12: memref<32x32xf32, #tpu.memory_space<vmem>>, %arg13: memref<1x32xf32, #tpu.memory_space<vmem>>, %arg14: memref<64x32xf32, #tpu.memory_space<vmem>>) attributes {dimension_semantics = [], scalar_prefetch = 0 : i64, scratch_operands = 0 : i64, tpu.core_type = #tpu.core_type<tc>} {
    %c0 = arith.constant 0 : index
    %0 = memref.load %arg0[%c0] : memref<2xf32, #tpu.memory_space<smem>>
    %c1 = arith.constant 1 : index
    %1 = memref.load %arg0[%c1] : memref<2xf32, #tpu.memory_space<smem>>
    %c0_0 = arith.constant 0 : index
    %c0_1 = arith.constant 0 : index
    %2 = vector.load %arg1[%c0_0, %c0_1] : memref<64x64xf32, #tpu.memory_space<vmem>>, vector<64x64xf32>
    %c0_2 = arith.constant 0 : index
    %c0_3 = arith.constant 0 : index
    %3 = vector.load %arg2[%c0_2, %c0_3] : memref<64x32xf32, #tpu.memory_space<vmem>>, vector<64x32xf32>
    %cst = arith.constant 0.000000e+00 : f32
    %4 = vector.broadcast %cst : f32 to vector<64x64xf32>
    %5 = arith.cmpf ogt, %2, %4 : vector<64x64xf32>
    %cst_4 = arith.constant -9.000000e+15 : f32
    %6 = vector.broadcast %cst_4 : f32 to vector<64x64xf32>
    %7 = tpu.iota {dimensions = array<i32: 1>} : vector<64x128xi32>
    %c0_5 = arith.constant 0 : index
    %c0_6 = arith.constant 0 : index
    %8 = vector.load %arg4[%c0_5, %c0_6] : memref<32x128xf32, #tpu.memory_space<vmem>>, vector<32x128xf32>
    %cst_7 = arith.constant dense<0.000000e+00> : vector<64x128xf32>
    %9 = tpu.matmul %3, %8, %cst_7 {dimension_numbers = #tpu.dot_dimension_numbers<[1], [0], [0], [1], [0, 0, 1, 1], [], []>} : vector<64x32xf32>, vector<32x128xf32>, vector<64x128xf32> -> vector<64x128xf32>
    %c0_8 = arith.constant 0 : index
    %c0_9 = arith.constant 0 : index
    %10 = vector.load %arg5[%c0_8, %c0_9] : memref<128x4xf32, #tpu.memory_space<vmem>>, vector<128x4xf32>
    %cst_10 = arith.constant dense<0.000000e+00> : vector<64x4xf32>
    %11 = tpu.matmul %9, %10, %cst_10 {dimension_numbers = #tpu.dot_dimension_numbers<[1], [0], [0], [1], [0, 0, 1, 1], [], []>} : vector<64x128xf32>, vector<128x4xf32>, vector<64x4xf32> -> vector<64x4xf32>
    %c0_11 = arith.constant 0 : index
    %c0_12 = arith.constant 0 : index
    %12 = vector.load %arg6[%c0_11, %c0_12] : memref<4x128xf32, #tpu.memory_space<vmem>>, vector<4x128xf32>
    %cst_13 = arith.constant dense<0.000000e+00> : vector<4x64xf32>
    %13 = tpu.matmul %12, %9, %cst_13 {dimension_numbers = #tpu.dot_dimension_numbers<[1], [1], [0], [0], [0, 0, 1, 0], [], []>} : vector<4x128xf32>, vector<64x128xf32>, vector<4x64xf32> -> vector<4x64xf32>
    %cst_14 = arith.constant 0.000000e+00 : f32
    %14 = vector.broadcast %cst_14 : f32 to vector<64x128xf32>
    %15 = vector.extract_strided_slice %11 {offsets = [0, 0], sizes = [64, 1], strides = [1, 1]} : vector<64x4xf32> to vector<64x1xf32>
    %16 = vector.extract_strided_slice %13 {offsets = [0, 0], sizes = [1, 64], strides = [1, 1]} : vector<4x64xf32> to vector<1x64xf32>
    %17 = vector.broadcast %15 : vector<64x1xf32> to vector<64x64xf32>
    %18 = vector.broadcast %16 : vector<1x64xf32> to vector<64x64xf32>
    %19 = arith.addf %17, %18 : vector<64x64xf32>
    %cst_15 = arith.constant 0.000000e+00 : f32
    %20 = vector.broadcast %cst_15 : f32 to vector<64x64xf32>
    %21 = arith.cmpf ogt, %19, %20 : vector<64x64xf32>
    %cst_16 = arith.constant 2.000000e-01 : f32
    %22 = vector.broadcast %cst_16 : f32 to vector<64x64xf32>
    %23 = arith.mulf %22, %19 : vector<64x64xf32>
    %24 = arith.select %21, %19, %23 : vector<64x64xi1>, vector<64x64xf32>
    %25 = arith.select %5, %24, %6 : vector<64x64xi1>, vector<64x64xf32>
    %cst_17 = arith.constant dense<0xFF800000> : vector<64xf32>
    %26 = vector.multi_reduction <maximumf>, %25, %cst_17 [1] : vector<64x64xf32> to vector<64xf32>
    %27 = vector.shape_cast %26 : vector<64xf32> to vector<64x1xf32>
    %28 = vector.broadcast %27 : vector<64x1xf32> to vector<64x64xf32>
    %29 = arith.subf %25, %28 : vector<64x64xf32>
    %30 = math.exp %29 : vector<64x64xf32>
    %cst_18 = arith.constant dense<0.000000e+00> : vector<64xf32>
    %31 = vector.multi_reduction <add>, %30, %cst_18 [1] : vector<64x64xf32> to vector<64xf32>
    %32 = vector.shape_cast %31 : vector<64xf32> to vector<64x1xf32>
    %33 = vector.broadcast %32 : vector<64x1xf32> to vector<64x64xf32>
    %34 = arith.divf %30, %33 : vector<64x64xf32>
    %cst_19 = arith.constant dense<0.000000e+00> : vector<64x128xf32>
    %35 = tpu.matmul %34, %9, %cst_19 {dimension_numbers = #tpu.dot_dimension_numbers<[1], [0], [0], [1], [0, 0, 1, 1], [], []>} : vector<64x64xf32>, vector<64x128xf32>, vector<64x128xf32> -> vector<64x128xf32>
    %cst_20 = arith.constant 0.000000e+00 : f32
    %36 = vector.broadcast %cst_20 : f32 to vector<64x128xf32>
    %37 = arith.cmpf ogt, %35, %36 : vector<64x128xf32>
    %38 = math.exp %35 : vector<64x128xf32>
    %cst_21 = arith.constant 1.000000e+00 : f32
    %39 = vector.broadcast %cst_21 : f32 to vector<64x128xf32>
    %40 = arith.subf %38, %39 : vector<64x128xf32>
    %41 = arith.select %37, %35, %40 : vector<64x128xi1>, vector<64x128xf32>
    %c0_i32 = arith.constant 0 : i32
    %42 = vector.broadcast %c0_i32 : i32 to vector<64x128xi32>
    %43 = arith.cmpi sge, %7, %42 : vector<64x128xi32>
    %c32_i32 = arith.constant 32 : i32
    %44 = vector.broadcast %c32_i32 : i32 to vector<64x128xi32>
    %45 = arith.cmpi slt, %7, %44 : vector<64x128xi32>
    %46 = arith.andi %43, %45 : vector<64x128xi1>
    %cst_22 = arith.constant 0.000000e+00 : f32
    %47 = vector.broadcast %cst_22 : f32 to vector<64x128xf32>
    %48 = arith.select %46, %41, %47 : vector<64x128xi1>, vector<64x128xf32>
    %49 = arith.addf %14, %48 : vector<64x128xf32>
    %50 = vector.extract_strided_slice %11 {offsets = [0, 1], sizes = [64, 1], strides = [1, 1]} : vector<64x4xf32> to vector<64x1xf32>
    %51 = vector.extract_strided_slice %13 {offsets = [1, 0], sizes = [1, 64], strides = [1, 1]} : vector<4x64xf32> to vector<1x64xf32>
    %52 = vector.broadcast %50 : vector<64x1xf32> to vector<64x64xf32>
    %53 = vector.broadcast %51 : vector<1x64xf32> to vector<64x64xf32>
    %54 = arith.addf %52, %53 : vector<64x64xf32>
    %cst_23 = arith.constant 0.000000e+00 : f32
    %55 = vector.broadcast %cst_23 : f32 to vector<64x64xf32>
    %56 = arith.cmpf ogt, %54, %55 : vector<64x64xf32>
    %cst_24 = arith.constant 2.000000e-01 : f32
    %57 = vector.broadcast %cst_24 : f32 to vector<64x64xf32>
    %58 = arith.mulf %57, %54 : vector<64x64xf32>
    %59 = arith.select %56, %54, %58 : vector<64x64xi1>, vector<64x64xf32>
    %60 = arith.select %5, %59, %6 : vector<64x64xi1>, vector<64x64xf32>
    %cst_25 = arith.constant dense<0xFF800000> : vector<64xf32>
    %61 = vector.multi_reduction <maximumf>, %60, %cst_25 [1] : vector<64x64xf32> to vector<64xf32>
    %62 = vector.shape_cast %61 : vector<64xf32> to vector<64x1xf32>
    %63 = vector.broadcast %62 : vector<64x1xf32> to vector<64x64xf32>
    %64 = arith.subf %60, %63 : vector<64x64xf32>
    %65 = math.exp %64 : vector<64x64xf32>
    %cst_26 = arith.constant dense<0.000000e+00> : vector<64xf32>
    %66 = vector.multi_reduction <add>, %65, %cst_26 [1] : vector<64x64xf32> to vector<64xf32>
    %67 = vector.shape_cast %66 : vector<64xf32> to vector<64x1xf32>
    %68 = vector.broadcast %67 : vector<64x1xf32> to vector<64x64xf32>
    %69 = arith.divf %65, %68 : vector<64x64xf32>
    %cst_27 = arith.constant dense<0.000000e+00> : vector<64x128xf32>
    %70 = tpu.matmul %69, %9, %cst_27 {dimension_numbers = #tpu.dot_dimension_numbers<[1], [0], [0], [1], [0, 0, 1, 1], [], []>} : vector<64x64xf32>, vector<64x128xf32>, vector<64x128xf32> -> vector<64x128xf32>
    %cst_28 = arith.constant 0.000000e+00 : f32
    %71 = vector.broadcast %cst_28 : f32 to vector<64x128xf32>
    %72 = arith.cmpf ogt, %70, %71 : vector<64x128xf32>
    %73 = math.exp %70 : vector<64x128xf32>
    %cst_29 = arith.constant 1.000000e+00 : f32
    %74 = vector.broadcast %cst_29 : f32 to vector<64x128xf32>
    %75 = arith.subf %73, %74 : vector<64x128xf32>
    %76 = arith.select %72, %70, %75 : vector<64x128xi1>, vector<64x128xf32>
    %c32_i32_30 = arith.constant 32 : i32
    %77 = vector.broadcast %c32_i32_30 : i32 to vector<64x128xi32>
    %78 = arith.cmpi sge, %7, %77 : vector<64x128xi32>
    %c64_i32 = arith.constant 64 : i32
    %79 = vector.broadcast %c64_i32 : i32 to vector<64x128xi32>
    %80 = arith.cmpi slt, %7, %79 : vector<64x128xi32>
    %81 = arith.andi %78, %80 : vector<64x128xi1>
    %cst_31 = arith.constant 0.000000e+00 : f32
    %82 = vector.broadcast %cst_31 : f32 to vector<64x128xf32>
    %83 = arith.select %81, %76, %82 : vector<64x128xi1>, vector<64x128xf32>
    %84 = arith.addf %49, %83 : vector<64x128xf32>
    %85 = vector.extract_strided_slice %11 {offsets = [0, 2], sizes = [64, 1], strides = [1, 1]} : vector<64x4xf32> to vector<64x1xf32>
    %86 = vector.extract_strided_slice %13 {offsets = [2, 0], sizes = [1, 64], strides = [1, 1]} : vector<4x64xf32> to vector<1x64xf32>
    %87 = vector.broadcast %85 : vector<64x1xf32> to vector<64x64xf32>
    %88 = vector.broadcast %86 : vector<1x64xf32> to vector<64x64xf32>
    %89 = arith.addf %87, %88 : vector<64x64xf32>
    %cst_32 = arith.constant 0.000000e+00 : f32
    %90 = vector.broadcast %cst_32 : f32 to vector<64x64xf32>
    %91 = arith.cmpf ogt, %89, %90 : vector<64x64xf32>
    %cst_33 = arith.constant 2.000000e-01 : f32
    %92 = vector.broadcast %cst_33 : f32 to vector<64x64xf32>
    %93 = arith.mulf %92, %89 : vector<64x64xf32>
    %94 = arith.select %91, %89, %93 : vector<64x64xi1>, vector<64x64xf32>
    %95 = arith.select %5, %94, %6 : vector<64x64xi1>, vector<64x64xf32>
    %cst_34 = arith.constant dense<0xFF800000> : vector<64xf32>
    %96 = vector.multi_reduction <maximumf>, %95, %cst_34 [1] : vector<64x64xf32> to vector<64xf32>
    %97 = vector.shape_cast %96 : vector<64xf32> to vector<64x1xf32>
    %98 = vector.broadcast %97 : vector<64x1xf32> to vector<64x64xf32>
    %99 = arith.subf %95, %98 : vector<64x64xf32>
    %100 = math.exp %99 : vector<64x64xf32>
    %cst_35 = arith.constant dense<0.000000e+00> : vector<64xf32>
    %101 = vector.multi_reduction <add>, %100, %cst_35 [1] : vector<64x64xf32> to vector<64xf32>
    %102 = vector.shape_cast %101 : vector<64xf32> to vector<64x1xf32>
    %103 = vector.broadcast %102 : vector<64x1xf32> to vector<64x64xf32>
    %104 = arith.divf %100, %103 : vector<64x64xf32>
    %cst_36 = arith.constant dense<0.000000e+00> : vector<64x128xf32>
    %105 = tpu.matmul %104, %9, %cst_36 {dimension_numbers = #tpu.dot_dimension_numbers<[1], [0], [0], [1], [0, 0, 1, 1], [], []>} : vector<64x64xf32>, vector<64x128xf32>, vector<64x128xf32> -> vector<64x128xf32>
    %cst_37 = arith.constant 0.000000e+00 : f32
    %106 = vector.broadcast %cst_37 : f32 to vector<64x128xf32>
    %107 = arith.cmpf ogt, %105, %106 : vector<64x128xf32>
    %108 = math.exp %105 : vector<64x128xf32>
    %cst_38 = arith.constant 1.000000e+00 : f32
    %109 = vector.broadcast %cst_38 : f32 to vector<64x128xf32>
    %110 = arith.subf %108, %109 : vector<64x128xf32>
    %111 = arith.select %107, %105, %110 : vector<64x128xi1>, vector<64x128xf32>
    %c64_i32_39 = arith.constant 64 : i32
    %112 = vector.broadcast %c64_i32_39 : i32 to vector<64x128xi32>
    %113 = arith.cmpi sge, %7, %112 : vector<64x128xi32>
    %c96_i32 = arith.constant 96 : i32
    %114 = vector.broadcast %c96_i32 : i32 to vector<64x128xi32>
    %115 = arith.cmpi slt, %7, %114 : vector<64x128xi32>
    %116 = arith.andi %113, %115 : vector<64x128xi1>
    %cst_40 = arith.constant 0.000000e+00 : f32
    %117 = vector.broadcast %cst_40 : f32 to vector<64x128xf32>
    %118 = arith.select %116, %111, %117 : vector<64x128xi1>, vector<64x128xf32>
    %119 = arith.addf %84, %118 : vector<64x128xf32>
    %120 = vector.extract_strided_slice %11 {offsets = [0, 3], sizes = [64, 1], strides = [1, 1]} : vector<64x4xf32> to vector<64x1xf32>
    %121 = vector.extract_strided_slice %13 {offsets = [3, 0], sizes = [1, 64], strides = [1, 1]} : vector<4x64xf32> to vector<1x64xf32>
    %122 = vector.broadcast %120 : vector<64x1xf32> to vector<64x64xf32>
    %123 = vector.broadcast %121 : vector<1x64xf32> to vector<64x64xf32>
    %124 = arith.addf %122, %123 : vector<64x64xf32>
    %cst_41 = arith.constant 0.000000e+00 : f32
    %125 = vector.broadcast %cst_41 : f32 to vector<64x64xf32>
    %126 = arith.cmpf ogt, %124, %125 : vector<64x64xf32>
    %cst_42 = arith.constant 2.000000e-01 : f32
    %127 = vector.broadcast %cst_42 : f32 to vector<64x64xf32>
    %128 = arith.mulf %127, %124 : vector<64x64xf32>
    %129 = arith.select %126, %124, %128 : vector<64x64xi1>, vector<64x64xf32>
    %130 = arith.select %5, %129, %6 : vector<64x64xi1>, vector<64x64xf32>
    %cst_43 = arith.constant dense<0xFF800000> : vector<64xf32>
    %131 = vector.multi_reduction <maximumf>, %130, %cst_43 [1] : vector<64x64xf32> to vector<64xf32>
    %132 = vector.shape_cast %131 : vector<64xf32> to vector<64x1xf32>
    %133 = vector.broadcast %132 : vector<64x1xf32> to vector<64x64xf32>
    %134 = arith.subf %130, %133 : vector<64x64xf32>
    %135 = math.exp %134 : vector<64x64xf32>
    %cst_44 = arith.constant dense<0.000000e+00> : vector<64xf32>
    %136 = vector.multi_reduction <add>, %135, %cst_44 [1] : vector<64x64xf32> to vector<64xf32>
    %137 = vector.shape_cast %136 : vector<64xf32> to vector<64x1xf32>
    %138 = vector.broadcast %137 : vector<64x1xf32> to vector<64x64xf32>
    %139 = arith.divf %135, %138 : vector<64x64xf32>
    %cst_45 = arith.constant dense<0.000000e+00> : vector<64x128xf32>
    %140 = tpu.matmul %139, %9, %cst_45 {dimension_numbers = #tpu.dot_dimension_numbers<[1], [0], [0], [1], [0, 0, 1, 1], [], []>} : vector<64x64xf32>, vector<64x128xf32>, vector<64x128xf32> -> vector<64x128xf32>
    %cst_46 = arith.constant 0.000000e+00 : f32
    %141 = vector.broadcast %cst_46 : f32 to vector<64x128xf32>
    %142 = arith.cmpf ogt, %140, %141 : vector<64x128xf32>
    %143 = math.exp %140 : vector<64x128xf32>
    %cst_47 = arith.constant 1.000000e+00 : f32
    %144 = vector.broadcast %cst_47 : f32 to vector<64x128xf32>
    %145 = arith.subf %143, %144 : vector<64x128xf32>
    %146 = arith.select %142, %140, %145 : vector<64x128xi1>, vector<64x128xf32>
    %c96_i32_48 = arith.constant 96 : i32
    %147 = vector.broadcast %c96_i32_48 : i32 to vector<64x128xi32>
    %148 = arith.cmpi sge, %7, %147 : vector<64x128xi32>
    %c128_i32 = arith.constant 128 : i32
    %149 = vector.broadcast %c128_i32 : i32 to vector<64x128xi32>
    %150 = arith.cmpi slt, %7, %149 : vector<64x128xi32>
    %151 = arith.andi %148, %150 : vector<64x128xi1>
    %cst_49 = arith.constant 0.000000e+00 : f32
    %152 = vector.broadcast %cst_49 : f32 to vector<64x128xf32>
    %153 = arith.select %151, %146, %152 : vector<64x128xi1>, vector<64x128xf32>
    %154 = arith.addf %119, %153 : vector<64x128xf32>
    %c0_50 = arith.constant 0 : index
    %c0_51 = arith.constant 0 : index
    %155 = vector.load %arg7[%c0_50, %c0_51] : memref<128x32xf32, #tpu.memory_space<vmem>>, vector<128x32xf32>
    %cst_52 = arith.constant dense<0.000000e+00> : vector<64x32xf32>
    %156 = tpu.matmul %154, %155, %cst_52 {dimension_numbers = #tpu.dot_dimension_numbers<[1], [0], [0], [1], [0, 0, 1, 1], [], []>} : vector<64x128xf32>, vector<128x32xf32>, vector<64x32xf32> -> vector<64x32xf32>
    %c0_53 = arith.constant 0 : index
    %c0_54 = arith.constant 0 : index
    %157 = vector.load %arg8[%c0_53, %c0_54] : memref<32x1xf32, #tpu.memory_space<vmem>>, vector<32x1xf32>
    %cst_55 = arith.constant dense<0.000000e+00> : vector<64x1xf32>
    %158 = tpu.matmul %156, %157, %cst_55 {dimension_numbers = #tpu.dot_dimension_numbers<[1], [0], [0], [1], [0, 0, 1, 1], [], []>} : vector<64x32xf32>, vector<32x1xf32>, vector<64x1xf32> -> vector<64x1xf32>
    %c0_56 = arith.constant 0 : index
    %c0_57 = arith.constant 0 : index
    %159 = vector.load %arg9[%c0_56, %c0_57] : memref<1x32xf32, #tpu.memory_space<vmem>>, vector<1x32xf32>
    %cst_58 = arith.constant dense<0.000000e+00> : vector<1x64xf32>
    %160 = tpu.matmul %159, %156, %cst_58 {dimension_numbers = #tpu.dot_dimension_numbers<[1], [1], [0], [0], [0, 0, 1, 0], [], []>} : vector<1x32xf32>, vector<64x32xf32>, vector<1x64xf32> -> vector<1x64xf32>
    %161 = vector.broadcast %158 : vector<64x1xf32> to vector<64x64xf32>
    %162 = vector.broadcast %160 : vector<1x64xf32> to vector<64x64xf32>
    %163 = arith.addf %161, %162 : vector<64x64xf32>
    %cst_59 = arith.constant 0.000000e+00 : f32
    %164 = vector.broadcast %cst_59 : f32 to vector<64x64xf32>
    %165 = arith.cmpf ogt, %163, %164 : vector<64x64xf32>
    %cst_60 = arith.constant 2.000000e-01 : f32
    %166 = vector.broadcast %cst_60 : f32 to vector<64x64xf32>
    %167 = arith.mulf %166, %163 : vector<64x64xf32>
    %168 = arith.select %165, %163, %167 : vector<64x64xi1>, vector<64x64xf32>
    %169 = arith.select %5, %168, %6 : vector<64x64xi1>, vector<64x64xf32>
    %cst_61 = arith.constant dense<0xFF800000> : vector<64xf32>
    %170 = vector.multi_reduction <maximumf>, %169, %cst_61 [1] : vector<64x64xf32> to vector<64xf32>
    %171 = vector.shape_cast %170 : vector<64xf32> to vector<64x1xf32>
    %172 = vector.broadcast %171 : vector<64x1xf32> to vector<64x64xf32>
    %173 = arith.subf %169, %172 : vector<64x64xf32>
    %174 = math.exp %173 : vector<64x64xf32>
    %cst_62 = arith.constant dense<0.000000e+00> : vector<64xf32>
    %175 = vector.multi_reduction <add>, %174, %cst_62 [1] : vector<64x64xf32> to vector<64xf32>
    %176 = vector.shape_cast %175 : vector<64xf32> to vector<64x1xf32>
    %177 = vector.broadcast %176 : vector<64x1xf32> to vector<64x64xf32>
    %178 = arith.divf %174, %177 : vector<64x64xf32>
    %cst_63 = arith.constant dense<0.000000e+00> : vector<64x32xf32>
    %179 = tpu.matmul %178, %156, %cst_63 {dimension_numbers = #tpu.dot_dimension_numbers<[1], [0], [0], [1], [0, 0, 1, 1], [], []>} : vector<64x64xf32>, vector<64x32xf32>, vector<64x32xf32> -> vector<64x32xf32>
    %cst_64 = arith.constant 0.000000e+00 : f32
    %180 = vector.broadcast %cst_64 : f32 to vector<64x32xf32>
    %181 = arith.cmpf ogt, %179, %180 : vector<64x32xf32>
    %182 = math.exp %179 : vector<64x32xf32>
    %cst_65 = arith.constant 1.000000e+00 : f32
    %183 = vector.broadcast %cst_65 : f32 to vector<64x32xf32>
    %184 = arith.subf %182, %183 : vector<64x32xf32>
    %185 = arith.select %181, %179, %184 : vector<64x32xi1>, vector<64x32xf32>
    %cst_66 = arith.constant dense<0.000000e+00> : vector<64x32xf32>
    %186 = tpu.matmul %2, %3, %cst_66 {dimension_numbers = #tpu.dot_dimension_numbers<[1], [0], [0], [1], [0, 0, 1, 1], [], []>} : vector<64x64xf32>, vector<64x32xf32>, vector<64x32xf32> -> vector<64x32xf32>
    %cst_67 = arith.constant 1.000000e+00 : f32
    %187 = arith.subf %cst_67, %1 : f32
    %188 = vector.broadcast %187 : f32 to vector<64x32xf32>
    %189 = arith.mulf %188, %186 : vector<64x32xf32>
    %c0_68 = arith.constant 0 : index
    %c0_69 = arith.constant 0 : index
    %190 = vector.load %arg3[%c0_68, %c0_69] : memref<64x32xf32, #tpu.memory_space<vmem>>, vector<64x32xf32>
    %191 = vector.broadcast %1 : f32 to vector<64x32xf32>
    %192 = arith.mulf %191, %190 : vector<64x32xf32>
    %193 = arith.addf %189, %192 : vector<64x32xf32>
    %c0_70 = arith.constant 0 : index
    %c0_71 = arith.constant 0 : index
    %194 = vector.load %arg10[%c0_70, %c0_71] : memref<32x32xf32, #tpu.memory_space<vmem>>, vector<32x32xf32>
    %cst_72 = arith.constant dense<0.000000e+00> : vector<64x32xf32>
    %195 = tpu.matmul %193, %194, %cst_72 {dimension_numbers = #tpu.dot_dimension_numbers<[1], [0], [0], [1], [0, 0, 1, 1], [], []>} : vector<64x32xf32>, vector<32x32xf32>, vector<64x32xf32> -> vector<64x32xf32>
    %196 = vector.broadcast %0 : f32 to vector<64x32xf32>
    %197 = arith.mulf %196, %195 : vector<64x32xf32>
    %cst_73 = arith.constant 1.000000e+00 : f32
    %198 = arith.subf %cst_73, %0 : f32
    %199 = vector.broadcast %198 : f32 to vector<64x32xf32>
    %200 = arith.mulf %199, %193 : vector<64x32xf32>
    %201 = arith.addf %197, %200 : vector<64x32xf32>
    %c0_74 = arith.constant 0 : index
    %c0_75 = arith.constant 0 : index
    %202 = vector.load %arg11[%c0_74, %c0_75] : memref<32x32xf32, #tpu.memory_space<vmem>>, vector<32x32xf32>
    %cst_76 = arith.constant dense<0.000000e+00> : vector<64x32xf32>
    %203 = tpu.matmul %185, %202, %cst_76 {dimension_numbers = #tpu.dot_dimension_numbers<[1], [0], [0], [1], [0, 0, 1, 1], [], []>} : vector<64x32xf32>, vector<32x32xf32>, vector<64x32xf32> -> vector<64x32xf32>
    %c0_77 = arith.constant 0 : index
    %c0_78 = arith.constant 0 : index
    %204 = vector.load %arg12[%c0_77, %c0_78] : memref<32x32xf32, #tpu.memory_space<vmem>>, vector<32x32xf32>
    %cst_79 = arith.constant dense<0.000000e+00> : vector<64x32xf32>
    %205 = tpu.matmul %201, %204, %cst_79 {dimension_numbers = #tpu.dot_dimension_numbers<[1], [0], [0], [1], [0, 0, 1, 1], [], []>} : vector<64x32xf32>, vector<32x32xf32>, vector<64x32xf32> -> vector<64x32xf32>
    %206 = arith.addf %203, %205 : vector<64x32xf32>
    %c0_80 = arith.constant 0 : index
    %c0_81 = arith.constant 0 : index
    %207 = vector.load %arg13[%c0_80, %c0_81] : memref<1x32xf32, #tpu.memory_space<vmem>>, vector<1x32xf32>
    %208 = vector.broadcast %207 : vector<1x32xf32> to vector<64x32xf32>
    %209 = arith.addf %206, %208 : vector<64x32xf32>
    %210 = arith.addf %209, %3 : vector<64x32xf32>
    %c0_82 = arith.constant 0 : index
    %c0_83 = arith.constant 0 : index
    %211 = vector.load %arg14[%c0_82, %c0_83] : memref<64x32xf32, #tpu.memory_space<vmem>>, vector<64x32xf32>
    tpu.vector_store %arg14[%c0_82, %c0_83], %210 {strides = array<i32>} : memref<64x32xf32, #tpu.memory_space<vmem>>, vector<64x32xf32>,
    return
  }
}

</mosaic_0001>

<llo_original>
// kernel: gcn_gat_forward.1
$region0: #{gcn_gat_forward.1}
  #allocation0 [shape = 'u32[]', space=smem, size = 0x4, offset = 0x4, fixed_abs, tag = 'smem constant byte address 0x4 - core index']
  #allocation1 [shape = 'u32[144,128]{1,0:T(1,128)}', space=vmem, size = 0x12000, scoped, tag = 'internal scratch']
  %s0 = inlined_call_operand.vmem [shape: f32[2], index: 0, kind: input, shape index: {}]
  %s1 = inlined_call_operand.vmem [shape: f32[64,64], index: 1, kind: input, shape index: {}]
  %s2 = inlined_call_operand.vmem [shape: f32[64,32], index: 2, kind: input, shape index: {}]
  %s3 = inlined_call_operand.vmem [shape: f32[64,32], index: 3, kind: input, shape index: {}]
  %s4 = inlined_call_operand.vmem [shape: f32[32,128], index: 4, kind: input, shape index: {}]
  %s5 = inlined_call_operand.vmem [shape: f32[128,4], index: 5, kind: input, shape index: {}]
  %s6 = inlined_call_operand.vmem [shape: f32[4,128], index: 6, kind: input, shape index: {}]
  %s7 = inlined_call_operand.vmem [shape: f32[128,32], index: 7, kind: input, shape index: {}]
  %s8 = inlined_call_operand.vmem [shape: f32[32,1], index: 8, kind: input, shape index: {}]
  %s9 = inlined_call_operand.vmem [shape: f32[1,32], index: 9, kind: input, shape index: {}]
  %s10 = inlined_call_operand.vmem [shape: f32[32,32], index: 10, kind: input, shape index: {}]
  %s11 = inlined_call_operand.vmem [shape: f32[32,32], index: 11, kind: input, shape index: {}]
  %s12 = inlined_call_operand.vmem [shape: f32[32,32], index: 12, kind: input, shape index: {}]
  %s13 = inlined_call_operand.vmem [shape: f32[1,32], index: 13, kind: input, shape index: {}]
  %s14 = inlined_call_operand.vmem [shape: f32[64,32], index: 14, kind: output, shape index: {}]
  %s15 = sld [smem:[#allocation0]]
  $region70: #{gcn_gat_forward.1} parent=0
    _
  %s17 = ssub.s32 1, %s15
  %s18 = scalar_select 0, %s17, %s15
  $region1: #{gcn_gat_forward.1} parent=0
    #allocation2 [shape = 'u8[512]{0}', space=smem, size = 0x200, scoped, tag = 'input window, operand 0, single buffered']
    #allocation3 [shape = 's32[1]{0}', space=sflag, size = 0x4, scoped, tag = 'scoped memory for gcn_gat_forward.1']
    %19 = vsyncpa [#allocation3], 0
    // Predicated region
    $region2: #{gcn_gat_forward.1} parent=1 // pred_check
      _
    $region3: #{gcn_gat_forward.1} parent=1 // pred_check_branch
      %21 = sbr.rel (0) target = $region5
    $region4: #{gcn_gat_forward.1} parent=1 // pred_region
      %s23 = ssub.s32 16, 16
      %24 = vsyncadd [#allocation3], %s23
      %s26 = sshll.u32 %s0, 4
      %s27 = int_to_ptr.vmem [resolvable:$true] %s26
      %29 = dma.vmem_to_smem %s27, 16, [#allocation2], [#allocation3]
    $region5: #{gcn_gat_forward.1} parent=1 // pred_fallthru
      _
    // Predicated region
    $region6: #{gcn_gat_forward.1} parent=1 // pred_check
      _
    $region7: #{gcn_gat_forward.1} parent=1 // pred_check_branch
      %31 = sbr.rel (0) target = $region9
    $region8: #{gcn_gat_forward.1} parent=1 // pred_region
      _
    $region9: #{gcn_gat_forward.1} parent=1 // pred_fallthru
      _
    // Predicated region
    $region10: #{gcn_gat_forward.1} parent=1 // pred_check
      _
    $region11: #{gcn_gat_forward.1} parent=1 // pred_check_branch
      %33 = sbr.rel (0) target = $region13
    $region12: #{gcn_gat_forward.1} parent=1 // pred_region
      _
    $region13: #{gcn_gat_forward.1} parent=1 // pred_fallthru
      _
    // Predicated region
    $region14: #{gcn_gat_forward.1} parent=1 // pred_check
      _
    $region15: #{gcn_gat_forward.1} parent=1 // pred_check_branch
      %35 = sbr.rel (0) target = $region17
    $region16: #{gcn_gat_forward.1} parent=1 // pred_region
      _
    $region17: #{gcn_gat_forward.1} parent=1 // pred_fallthru
      _
    // Predicated region
    $region18: #{gcn_gat_forward.1} parent=1 // pred_check
      _
    $region19: #{gcn_gat_forward.1} parent=1 // pred_check_branch
      %37 = sbr.rel (0) target = $region21
    $region20: #{gcn_gat_forward.1} parent=1 // pred_region
      _
    $region21: #{gcn_gat_forward.1} parent=1 // pred_fallthru
      _
    // Predicated region
    $region22: #{gcn_gat_forward.1} parent=1 // pred_check
      _
    $region23: #{gcn_gat_forward.1} parent=1 // pred_check_branch
      %39 = sbr.rel (0) target = $region25
    $region24: #{gcn_gat_forward.1} parent=1 // pred_region
      _
    $region25: #{gcn_gat_forward.1} parent=1 // pred_fallthru
      _
    // Predicated region
    $region26: #{gcn_gat_forward.1} parent=1 // pred_check
      _
    $region27: #{gcn_gat_forward.1} parent=1 // pred_check_branch
      %41 = sbr.rel (0) target = $region29
    $region28: #{gcn_gat_forward.1} parent=1 // pred_region
      _
    $region29: #{gcn_gat_forward.1} parent=1 // pred_fallthru
      _
    // Predicated region
    $region30: #{gcn_gat_forward.1} parent=1 // pred_check
      _
    $region31: #{gcn_gat_forward.1} parent=1 // pred_check_branch
      %43 = sbr.rel (0) target = $region33
    $region32: #{gcn_gat_forward.1} parent=1 // pred_region
      _
    $region33: #{gcn_gat_forward.1} parent=1 // pred_fallthru
      _
    // Predicated region
    $region34: #{gcn_gat_forward.1} parent=1 // pred_check
      _
    $region35: #{gcn_gat_forward.1} parent=1 // pred_check_branch
      %45 = sbr.rel (0) target = $region37
    $region36: #{gcn_gat_forward.1} parent=1 // pred_region
      _
    $region37: #{gcn_gat_forward.1} parent=1 // pred_fallthru
      _
    // Predicated region
    $region38: #{gcn_gat_forward.1} parent=1 // pred_check
      _
    $region39: #{gcn_gat_forward.1} parent=1 // pred_check_branch
      %47 = sbr.rel (0) target = $region41
    $region40: #{gcn_gat_forward.1} parent=1 // pred_region
      _
    $region41: #{gcn_gat_forward.1} parent=1 // pred_fallthru
      _
    // Predicated region
    $region42: #{gcn_gat_forward.1} parent=1 // pred_check
      _
    $region43: #{gcn_gat_forward.1} parent=1 // pred_check_branch
      %49 = sbr.rel (0) target = $region45
    $region44: #{gcn_gat_forward.1} parent=1 // pred_region
      _
    $region45: #{gcn_gat_forward.1} parent=1 // pred_fallthru
      _
    // Predicated region
    $region46: #{gcn_gat_forward.1} parent=1 // pred_check
      _
    $region47: #{gcn_gat_forward.1} parent=1 // pred_check_branch
      %51 = sbr.rel (0) target = $region49
    $region48: #{gcn_gat_forward.1} parent=1 // pred_region
      _
    $region49: #{gcn_gat_forward.1} parent=1 // pred_fallthru
      _
    // Predicated region
    $region50: #{gcn_gat_forward.1} parent=1 // pred_check
      _
    $region51: #{gcn_gat_forward.1} parent=1 // pred_check_branch
      %53 = sbr.rel (0) target = $region53
    $region52: #{gcn_gat_forward.1} parent=1 // pred_region
      _
    $region53: #{gcn_gat_forward.1} parent=1 // pred_fallthru
      _
    // Predicated region
    $region54: #{gcn_gat_forward.1} parent=1 // pred_check
      _
    $region55: #{gcn_gat_forward.1} parent=1 // pred_check_branch
      %55 = sbr.rel (0) target = $region57
    $region56: #{gcn_gat_forward.1} parent=1 // pred_region
      _
    $region57: #{gcn_gat_forward.1} parent=1 // pred_fallthru
      _
    // Predicated region
    $region58: #{gcn_gat_forward.1} parent=1 // pred_check
      _
    $region59: #{gcn_gat_forward.1} parent=1 // pred_check_branch
      %57 = sbr.rel (0) target = $region61
    $region60: #{gcn_gat_forward.1} parent=1 // pred_region
      %58 = dma.done [#allocation3], 16
    $region61: #{gcn_gat_forward.1} parent=1 // pred_fallthru
      _
    %59 = sfence
    %s60 = sld [smem:[#allocation2]]
    %s61 = sld [smem:[#allocation2 + $0x1]]
    %v62 = vld [vmem:[%s1] sm:$0xff]
    %v63 = vld [vmem:[%s1 + $0x8] sm:$0xff]
    %v64 = vld [vmem:[%s1 + $0x10] sm:$0xff]
    %v65 = vld [vmem:[%s1 + $0x18] sm:$0xff]
    %v66 = vld [vmem:[%s1 + $0x20] sm:$0xff]
    %v67 = vld [vmem:[%s1 + $0x28] sm:$0xff]
    %v68 = vld [vmem:[%s1 + $0x30] sm:$0xff]
    %v69 = vld [vmem:[%s1 + $0x38] sm:$0xff]
    %v70 = vld [vmem:[%s2] sm:$0xff]
    %v71 = vld [vmem:[%s2 + $0x8] sm:$0xff]
    %v72 = vld [vmem:[%s2 + $0x10] sm:$0xff]
    %v73 = vld [vmem:[%s2 + $0x18] sm:$0xff]
    %v74 = vld [vmem:[%s2 + $0x20] sm:$0xff]
    %v75 = vld [vmem:[%s2 + $0x28] sm:$0xff]
    %v76 = vld [vmem:[%s2 + $0x30] sm:$0xff]
    %v77 = vld [vmem:[%s2 + $0x38] sm:$0xff]
    %vm78 = vcmp.gt.f32.partialorder %v62, 0.0
    %vm79 = vcmp.gt.f32.partialorder %v63, 0.0
    %vm80 = vcmp.gt.f32.partialorder %v64, 0.0
    %vm81 = vcmp.gt.f32.partialorder %v65, 0.0
    %vm82 = vcmp.gt.f32.partialorder %v66, 0.0
    %vm83 = vcmp.gt.f32.partialorder %v67, 0.0
    %vm84 = vcmp.gt.f32.partialorder %v68, 0.0
    %vm85 = vcmp.gt.f32.partialorder %v69, 0.0
    %v86 = vlaneseq
    %v87 = vand.u32 %v86, 127
    %v88 = vld [vmem:[%s4] sm:$0xff]
    %v89 = vld [vmem:[%s4 + $0x8] sm:$0xff]
    %v90 = vld [vmem:[%s4 + $0x10] sm:$0xff]
    %v91 = vld [vmem:[%s4 + $0x18] sm:$0xff]
    %vm92 = vcmask 261120
    %v94 = vsel %vm92, %v70, 0
    %v97 = vsel %vm92, %v71, 0
    %v100 = vsel %vm92, %v72, 0
    %v103 = vsel %vm92, %v73, 0
    %v106 = vsel %vm92, %v74, 0
    %v109 = vsel %vm92, %v75, 0
    %v112 = vsel %vm92, %v76, 0
    %v115 = vsel %vm92, %v77, 0
    %117 = vmatprep.subr.mxu0 0.0
    %118 = vmatpush1.msra.mxu0 %v88
    %119 = vmatprep.subr.mxu0 0.0
    %120 = vmatpush1.msra.mxu0 %v89
    %121 = vmatprep.subr.mxu0 0.0
    %122 = vmatpush1.msra.mxu0 %v90
    %123 = vmatprep.subr.mxu0 0.0
    %124 = vmatpush1.msra.mxu0 %v91
    %125 = vmatprep.subr.mxu0 0.0
    %126 = vmatpush1.msra.mxu0 0.0
    %127 = vmatprep.subr.mxu0 0.0
    %128 = vmatpush1.msra.mxu0 0.0
    %129 = vmatprep.subr.mxu0 0.0
    %130 = vmatpush1.msra.mxu0 0.0
    %131 = vmatprep.subr.mxu0 0.0
    %132 = vmatpush1.msra.mxu0 0.0
    %133 = vmatprep.subr.mxu0 0.0
    %134 = vmatpush1.msra.mxu0 0.0
    %135 = vmatprep.subr.mxu0 0.0
    %136 = vmatpush1.msra.mxu0 0.0
    %137 = vmatprep.subr.mxu0 0.0
    %138 = vmatpush1.msra.mxu0 0.0
    %139 = vmatprep.subr.mxu0 0.0
    %140 = vmatpush1.msra.mxu0 0.0
    %141 = vmatprep.subr.mxu0 0.0
    %142 = vmatpush1.msra.mxu0 0.0
    %143 = vmatprep.subr.mxu0 0.0
    %144 = vmatpush1.msra.mxu0 0.0
    %145 = vmatprep.subr.mxu0 0.0
    %146 = vmatpush1.msra.mxu0 0.0
    %147 = vmatprep.subr.mxu0 0.0
    %148 = vmatpush1.msra.mxu0 0.0
    %149 = vmatprep.subr.mxu0 0.0
    %150 = vmatpush1.msra.mxu0 0.0
    %151 = vmatprep.subr.mxu0 0.0
    %152 = vmatpush1.msra.mxu0 0.0
    %153 = vmatprep.subr.mxu0 0.0
    %154 = vmatpush1.msra.mxu0 0.0
    %155 = vmatprep.subr.mxu0 0.0
    %156 = vmatpush1.msra.mxu0 0.0
    %157 = vmatprep.subr.mxu0 0.0
    %158 = vmatpush1.msra.mxu0 0.0
    %159 = vmatprep.subr.mxu0 0.0
    %160 = vmatpush1.msra.mxu0 0.0
    %161 = vmatprep.subr.mxu0 0.0
    %162 = vmatpush1.msra.mxu0 0.0
    %163 = vmatprep.subr.mxu0 0.0
    %164 = vmatpush1.msra.mxu0 0.0
    %165 = vmatprep.subr.mxu0 0.0
    %166 = vmatpush1.msra.mxu0 0.0
    %167 = vmatprep.subr.mxu0 0.0
    %168 = vmatpush1.msra.mxu0 0.0
    %169 = vmatprep.subr.mxu0 0.0
    %170 = vmatpush1.msra.mxu0 0.0
    %171 = vmatprep.subr.mxu0 0.0
    %172 = vmatpush1.msra.mxu0 0.0
    %173 = vmatprep.subr.mxu0 0.0
    %174 = vmatpush1.msra.mxu0 0.0
    %175 = vmatprep.subr.mxu0 0.0
    %176 = vmatpush1.msra.mxu0 0.0
    %177 = vmatprep.subr.mxu0 0.0
    %178 = vmatpush1.msra.mxu0 0.0
    %179 = vmatprep.subr.mxu0 0.0
    %180 = vmatpush1.msra.mxu0 0.0
    %181 = vmatprep.mubr.f32.mxu0 0.0
    %182 = vmatmul.mubr.f32.gmra.mrb[0].mxu0 %v94
    %v183 = vpop.f32.mrb[0].mxu0
    %v184 = vadd.f32 0.0, %v183
    %v185 = vpop.f32.mrb[0].mxu0
    %186 = vmatprep.mubr.f32.mxu0 0.0
    %187 = vmatmul.mubr.f32.gmra.mrb[0].mxu0 %v97
    %v188 = vpop.f32.mrb[0].mxu0
    %v189 = vadd.f32 0.0, %v188
    %v190 = vpop.f32.mrb[0].mxu0
    %191 = vmatprep.mubr.f32.mxu0 0.0
    %192 = vmatmul.mubr.f32.gmra.mrb[0].mxu0 %v100
    %v193 = vpop.f32.mrb[0].mxu0
    %v194 = vadd.f32 0.0, %v193
    %v195 = vpop.f32.mrb[0].mxu0
    %196 = vmatprep.mubr.f32.mxu0 0.0
    %197 = vmatmul.mubr.f32.gmra.mrb[0].mxu0 %v103
    %v198 = vpop.f32.mrb[0].mxu0
    %v199 = vadd.f32 0.0, %v198
    %v200 = vpop.f32.mrb[0].mxu0
    %201 = vmatprep.mubr.f32.mxu0 0.0
    %202 = vmatmul.mubr.f32.gmra.mrb[0].mxu0 %v106
    %v203 = vpop.f32.mrb[0].mxu0
    %v204 = vadd.f32 0.0, %v203
    %v205 = vpop.f32.mrb[0].mxu0
    %206 = vmatprep.mubr.f32.mxu0 0.0
    %207 = vmatmul.mubr.f32.gmra.mrb[0].mxu0 %v109
    %v208 = vpop.f32.mrb[0].mxu0
    %v209 = vadd.f32 0.0, %v208
    %v210 = vpop.f32.mrb[0].mxu0
    %211 = vmatprep.mubr.f32.mxu0 0.0
    %212 = vmatmul.mubr.f32.gmra.mrb[0].mxu0 %v112
    %v213 = vpop.f32.mrb[0].mxu0
    %v214 = vadd.f32 0.0, %v213
    %v215 = vpop.f32.mrb[0].mxu0
    %216 = vmatprep.mubr.f32.mxu0 0.0
    %217 = vmatmul.mubr.f32.gmra.mrb[0].mxu0 %v115
    %v218 = vpop.f32.mrb[0].mxu0
    %v219 = vadd.f32 0.0, %v218
    %v220 = vpop.f32.mrb[0].mxu0
    %221 = vdwg.mxu0
    %v222 = vld [vmem:[%s5] sm:$0xff]
    %v223 = vld [vmem:[%s5 + $0x8] sm:$0xff]
    %v224 = vld [vmem:[%s5 + $0x10] sm:$0xff]
    %v225 = vld [vmem:[%s5 + $0x18] sm:$0xff]
    %v226 = vld [vmem:[%s5 + $0x20] sm:$0xff]
    %v227 = vld [vmem:[%s5 + $0x28] sm:$0xff]
    %v228 = vld [vmem:[%s5 + $0x30] sm:$0xff]
    %v229 = vld [vmem:[%s5 + $0x38] sm:$0xff]
    %v230 = vld [vmem:[%s5 + $0x40] sm:$0xff]
    %v231 = vld [vmem:[%s5 + $0x48] sm:$0xff]
    %v232 = vld [vmem:[%s5 + $0x50] sm:$0xff]
    %v233 = vld [vmem:[%s5 + $0x58] sm:$0xff]
    %v234 = vld [vmem:[%s5 + $0x60] sm:$0xff]
    %v235 = vld [vmem:[%s5 + $0x68] sm:$0xff]
    %v236 = vld [vmem:[%s5 + $0x70] sm:$0xff]
    %v237 = vld [vmem:[%s5 + $0x78] sm:$0xff]
    %238 = vmatprep.subr.mxu0 0.0
    %239 = vmatpush1.msra.mxu0 %v222
    %240 = vmatprep.subr.mxu0 0.0
    %241 = vmatpush1.msra.mxu0 %v223
    %242 = vmatprep.subr.mxu0 0.0
    %243 = vmatpush1.msra.mxu0 %v224
    %244 = vmatprep.subr.mxu0 0.0
    %245 = vmatpush1.msra.mxu0 %v225
    %246 = vmatprep.subr.mxu0 0.0
    %247 = vmatpush1.msra.mxu0 %v226
    %248 = vmatprep.subr.mxu0 0.0
    %249 = vmatpush1.msra.mxu0 %v227
    %250 = vmatprep.subr.mxu0 0.0
    %251 = vmatpush1.msra.mxu0 %v228
    %252 = vmatprep.subr.mxu0 0.0
    %253 = vmatpush1.msra.mxu0 %v229
    %254 = vmatprep.subr.mxu0 0.0
    %255 = vmatpush1.msra.mxu0 %v230
    %256 = vmatprep.subr.mxu0 0.0
    %257 = vmatpush1.msra.mxu0 %v231
    %258 = vmatprep.subr.mxu0 0.0
    %259 = vmatpush1.msra.mxu0 %v232
    %260 = vmatprep.subr.mxu0 0.0
    %261 = vmatpush1.msra.mxu0 %v233
    %262 = vmatprep.subr.mxu0 0.0
    %263 = vmatpush1.msra.mxu0 %v234
    %264 = vmatprep.subr.mxu0 0.0
    %265 = vmatpush1.msra.mxu0 %v235
    %266 = vmatprep.subr.mxu0 0.0
    %267 = vmatpush1.msra.mxu0 %v236
    %268 = vmatprep.subr.mxu0 0.0
    %269 = vmatpush1.msra.mxu0 %v237
    %270 = vmatprep.subr.mxu0 0.0
    %271 = vmatpush1.msra.mxu0 0.0
    %272 = vmatprep.subr.mxu0 0.0
    %273 = vmatpush1.msra.mxu0 0.0
    %274 = vmatprep.subr.mxu0 0.0
    %275 = vmatpush1.msra.mxu0 0.0
    %276 = vmatprep.subr.mxu0 0.0
    %277 = vmatpush1.msra.mxu0 0.0
    %278 = vmatprep.subr.mxu0 0.0
    %279 = vmatpush1.msra.mxu0 0.0
    %280 = vmatprep.subr.mxu0 0.0
    %281 = vmatpush1.msra.mxu0 0.0
    %282 = vmatprep.subr.mxu0 0.0
    %283 = vmatpush1.msra.mxu0 0.0
    %284 = vmatprep.subr.mxu0 0.0
    %285 = vmatpush1.msra.mxu0 0.0
    %286 = vmatprep.subr.mxu0 0.0
    %287 = vmatpush1.msra.mxu0 0.0
    %288 = vmatprep.subr.mxu0 0.0
    %289 = vmatpush1.msra.mxu0 0.0
    %290 = vmatprep.subr.mxu0 0.0
    %291 = vmatpush1.msra.mxu0 0.0
    %292 = vmatprep.subr.mxu0 0.0
    %293 = vmatpush1.msra.mxu0 0.0
    %294 = vmatprep.subr.mxu0 0.0
    %295 = vmatpush1.msra.mxu0 0.0
    %296 = vmatprep.subr.mxu0 0.0
    %297 = vmatpush1.msra.mxu0 0.0
    %298 = vmatprep.subr.mxu0 0.0
    %299 = vmatpush1.msra.mxu0 0.0
    %300 = vmatprep.subr.mxu0 0.0
    %301 = vmatpush1.msra.mxu0 0.0
    %302 = vmatprep.mubr.f32.mxu0 0.0
    %303 = vmatmul.mubr.f32.gmra.mrb[0].mxu0 %v184
    %v304 = vpop.f32.mrb[0].mxu0
    %v305 = vadd.f32 0.0, %v304
    %v306 = vpop.f32.mrb[0].mxu0
    %307 = vmatprep.mubr.f32.mxu0 0.0
    %308 = vmatmul.mubr.f32.gmra.mrb[0].mxu0 %v189
    %v309 = vpop.f32.mrb[0].mxu0
    %v310 = vadd.f32 0.0, %v309
    %v311 = vpop.f32.mrb[0].mxu0
    %312 = vmatprep.mubr.f32.mxu0 0.0
    %313 = vmatmul.mubr.f32.gmra.mrb[0].mxu0 %v194
    %v314 = vpop.f32.mrb[0].mxu0
    %v315 = vadd.f32 0.0, %v314
    %v316 = vpop.f32.mrb[0].mxu0
    %317 = vmatprep.mubr.f32.mxu0 0.0
    %318 = vmatmul.mubr.f32.gmra.mrb[0].mxu0 %v199
    %v319 = vpop.f32.mrb[0].mxu0
    %v320 = vadd.f32 0.0, %v319
    %v321 = vpop.f32.mrb[0].mxu0
    %322 = vmatprep.mubr.f32.mxu0 0.0
    %323 = vmatmul.mubr.f32.gmra.mrb[0].mxu0 %v204
    %v324 = vpop.f32.mrb[0].mxu0
    %v325 = vadd.f32 0.0, %v324
    %v326 = vpop.f32.mrb[0].mxu0
    %327 = vmatprep.mubr.f32.mxu0 0.0
    %328 = vmatmul.mubr.f32.gmra.mrb[0].mxu0 %v209
    %v329 = vpop.f32.mrb[0].mxu0
    %v330 = vadd.f32 0.0, %v329
    %v331 = vpop.f32.mrb[0].mxu0
    %332 = vmatprep.mubr.f32.mxu0 0.0
    %333 = vmatmul.mubr.f32.gmra.mrb[0].mxu0 %v214
    %v334 = vpop.f32.mrb[0].mxu0
    %v335 = vadd.f32 0.0, %v334
    %v336 = vpop.f32.mrb[0].mxu0
    %337 = vmatprep.mubr.f32.mxu0 0.0
    %338 = vmatmul.mubr.f32.gmra.mrb[0].mxu0 %v219
    %v339 = vpop.f32.mrb[0].mxu0
    %v340 = vadd.f32 0.0, %v339
    %v341 = vpop.f32.mrb[0].mxu0
    %342 = vdwg.mxu0
    %v343 = vld [vmem:[%s6] sm:$0xf]
    %344 = vmatprep.subr.mxu0 0.0
    %345 = vmatpush1.xpose.msra.mxu0 %v184
    %346 = vmatprep.subr.mxu0 0.0
    %347 = vmatpush1.xpose.msra.mxu0 %v189
    %348 = vmatprep.subr.mxu0 0.0
    %349 = vmatpush1.xpose.msra.mxu0 %v194
    %350 = vmatprep.subr.mxu0 0.0
    %351 = vmatpush1.xpose.msra.mxu0 %v199
    %352 = vmatprep.subr.mxu0 0.0
    %353 = vmatpush1.xpose.msra.mxu0 %v204
    %354 = vmatprep.subr.mxu0 0.0
    %355 = vmatpush1.xpose.msra.mxu0 %v209
    %356 = vmatprep.subr.mxu0 0.0
    %357 = vmatpush1.xpose.msra.mxu0 %v214
    %358 = vmatprep.subr.mxu0 0.0
    %359 = vmatpush1.xpose.msra.mxu0 %v219
    %360 = vmatprep.subr.mxu0 0.0
    %361 = vmatpush1.xpose.msra.mxu0 0.0
    %362 = vmatprep.subr.mxu0 0.0
    %363 = vmatpush1.xpose.msra.mxu0 0.0
    %364 = vmatprep.subr.mxu0 0.0
    %365 = vmatpush1.xpose.msra.mxu0 0.0
    %366 = vmatprep.subr.mxu0 0.0
    %367 = vmatpush1.xpose.msra.mxu0 0.0
    %368 = vmatprep.subr.mxu0 0.0
    %369 = vmatpush1.xpose.msra.mxu0 0.0
    %370 = vmatprep.subr.mxu0 0.0
    %371 = vmatpush1.xpose.msra.mxu0 0.0
    %372 = vmatprep.subr.mxu0 0.0
    %373 = vmatpush1.xpose.msra.mxu0 0.0
    %374 = vmatprep.subr.mxu0 0.0
    %375 = vmatpush1.xpose.msra.mxu0 0.0
    %376 = vmatprep.subr.mxu0 0.0
    %377 = vmatpush1.xpose.msra.mxu0 0.0
    %378 = vmatprep.subr.mxu0 0.0
    %379 = vmatpush1.xpose.msra.mxu0 0.0
    %380 = vmatprep.subr.mxu0 0.0
    %381 = vmatpush1.xpose.msra.mxu0 0.0
    %382 = vmatprep.subr.mxu0 0.0
    %383 = vmatpush1.xpose.msra.mxu0 0.0
    %384 = vmatprep.subr.mxu0 0.0
    %385 = vmatpush1.xpose.msra.mxu0 0.0
    %386 = vmatprep.subr.mxu0 0.0
    %387 = vmatpush1.xpose.msra.mxu0 0.0
    %388 = vmatprep.subr.mxu0 0.0
    %389 = vmatpush1.xpose.msra.mxu0 0.0
    %390 = vmatprep.subr.mxu0 0.0
    %391 = vmatpush1.xpose.msra.mxu0 0.0
    %392 = vmatprep.subr.mxu0 0.0
    %393 = vmatpush1.xpose.msra.mxu0 0.0
    %394 = vmatprep.subr.mxu0 0.0
    %395 = vmatpush1.xpose.msra.mxu0 0.0
    %396 = vmatprep.subr.mxu0 0.0
    %397 = vmatpush1.xpose.msra.mxu0 0.0
    %398 = vmatprep.subr.mxu0 0.0
    %399 = vmatpush1.xpose.msra.mxu0 0.0
    %400 = vmatprep.subr.mxu0 0.0
    %401 = vmatpush1.xpose.msra.mxu0 0.0
    %402 = vmatprep.subr.mxu0 0.0
    %403 = vmatpush1.xpose.msra.mxu0 0.0
    %404 = vmatprep.subr.mxu0 0.0
    %405 = vmatpush1.xpose.msra.mxu0 0.0
    %406 = vmatprep.subr.mxu0 0.0
    %407 = vmatpush1.xpose.msra.mxu0 0.0
    %408 = vmatprep.mubr.f32.mxu0 0.0
    %409 = vmatmul.mubr.f32.gmra.mrb[0].mxu0 %v343
    %v410 = vpop.f32.mrb[0].mxu0
    %v411 = vadd.f32 0.0, %v410
    %v412 = vpop.f32.mrb[0].mxu0
    %413 = vdwg.mxu0
    %415 = vset.pattern.permute.xlu0 0
    %416 = vperm.xlu0 %415, %v305
    %v417 = vpop.permute.xlu0 %416
    %420 = vset.pattern.permute.xlu0 0
    %421 = vperm.xlu0 %420, %v310
    %v422 = vpop.permute.xlu0 %421
    %425 = vset.pattern.permute.xlu0 0
    %426 = vperm.xlu0 %425, %v315
    %v427 = vpop.permute.xlu0 %426
    %430 = vset.pattern.permute.xlu0 0
    %431 = vperm.xlu0 %430, %v320
    %v432 = vpop.permute.xlu0 %431
    %435 = vset.pattern.permute.xlu0 0
    %436 = vperm.xlu0 %435, %v325
    %v437 = vpop.permute.xlu0 %436
    %440 = vset.pattern.permute.xlu0 0
    %441 = vperm.xlu0 %440, %v330
    %v442 = vpop.permute.xlu0 %441
    %445 = vset.pattern.permute.xlu0 0
    %446 = vperm.xlu0 %445, %v335
    %v447 = vpop.permute.xlu0 %446
    %450 = vset.pattern.permute.xlu0 0
    %451 = vperm.xlu0 %450, %v340
    %v452 = vpop.permute.xlu0 %451
    %v454 = vlaneseq
    %v455 = vshrl.u32 %v454, 7
    %v456 = vsub.s32 0, %v455
    %v457 = vrot.slane %v411, %v456
    %v458 = vadd.f32 %v417, %v457
    %v459 = vadd.f32 %v422, %v457
    %v460 = vadd.f32 %v427, %v457
    %v461 = vadd.f32 %v432, %v457
    %v462 = vadd.f32 %v437, %v457
    %v463 = vadd.f32 %v442, %v457
    %v464 = vadd.f32 %v447, %v457
    %v465 = vadd.f32 %v452, %v457
    %vm466 = vcmp.gt.f32.partialorder %v458, 0.0
    %vm467 = vcmp.gt.f32.partialorder %v459, 0.0
    %vm468 = vcmp.gt.f32.partialorder %v460, 0.0
    %vm469 = vcmp.gt.f32.partialorder %v461, 0.0
    %vm470 = vcmp.gt.f32.partialorder %v462, 0.0
    %vm471 = vcmp.gt.f32.partialorder %v463, 0.0
    %vm472 = vcmp.gt.f32.partialorder %v464, 0.0
    %vm473 = vcmp.gt.f32.partialorder %v465, 0.0
    %v474 = vmul.f32 %v458, 0.2
    %v475 = vmul.f32 %v459, 0.2
    %v476 = vmul.f32 %v460, 0.2
    %v477 = vmul.f32 %v461, 0.2
    %v478 = vmul.f32 %v462, 0.2
    %v479 = vmul.f32 %v463, 0.2
    %v480 = vmul.f32 %v464, 0.2
    %v481 = vmul.f32 %v465, 0.2
    %v482 = vsel %vm466, %v458, %v474
    %v483 = vsel %vm467, %v459, %v475
    %v484 = vsel %vm468, %v460, %v476
    %v485 = vsel %vm469, %v461, %v477
    %v486 = vsel %vm470, %v462, %v478
    %v487 = vsel %vm471, %v463, %v479
    %v488 = vsel %vm472, %v464, %v480
    %v489 = vsel %vm473, %v465, %v481
    %v490 = vsel %vm78, %v482, -9e+15
    %v491 = vsel %vm79, %v483, -9e+15
    %v492 = vsel %vm80, %v484, -9e+15
    %v493 = vsel %vm81, %v485, -9e+15
    %v494 = vsel %vm82, %v486, -9e+15
    %v495 = vsel %vm83, %v487, -9e+15
    %v496 = vsel %vm84, %v488, -9e+15
    %v497 = vsel %vm85, %v489, -9e+15
    %vm498 = vcmask 523264
    %v499 = vsel %vm498, %v490, -inf
    %500 = vmax.xlane.f32.xlu0 %v499
    %v501 = vpop.xlane.xlu0 %500
    %v502 = vsel %vm498, %v491, -inf
    %503 = vmax.xlane.f32.xlu0 %v502
    %v504 = vpop.xlane.xlu0 %503
    %v505 = vsel %vm498, %v492, -inf
    %506 = vmax.xlane.f32.xlu0 %v505
    %v507 = vpop.xlane.xlu0 %506
    %v508 = vsel %vm498, %v493, -inf
    %509 = vmax.xlane.f32.xlu0 %v508
    %v510 = vpop.xlane.xlu0 %509
    %v511 = vsel %vm498, %v494, -inf
    %512 = vmax.xlane.f32.xlu0 %v511
    %v513 = vpop.xlane.xlu0 %512
    %v514 = vsel %vm498, %v495, -inf
    %515 = vmax.xlane.f32.xlu0 %v514
    %v516 = vpop.xlane.xlu0 %515
    %v517 = vsel %vm498, %v496, -inf
    %518 = vmax.xlane.f32.xlu0 %v517
    %v519 = vpop.xlane.xlu0 %518
    %v520 = vsel %vm498, %v497, -inf
    %521 = vmax.xlane.f32.xlu0 %v520
    %v522 = vpop.xlane.xlu0 %521
    %v523 = vsub.f32 %v490, %v501
    %v524 = vsub.f32 %v491, %v504
    %v525 = vsub.f32 %v492, %v507
    %v526 = vsub.f32 %v493, %v510
    %v527 = vsub.f32 %v494, %v513
    %v528 = vsub.f32 %v495, %v516
    %v529 = vsub.f32 %v496, %v519
    %v530 = vsub.f32 %v497, %v522
    %v531 = vmul.f32 %v523, 1.442695
    %v532 = vpow.pop %v531
    %v533 = vmul.f32 %v524, 1.442695
    %v534 = vpow.pop %v533
    %v535 = vmul.f32 %v525, 1.442695
    %v536 = vpow.pop %v535
    %v537 = vmul.f32 %v526, 1.442695
    %v538 = vpow.pop %v537
    %v539 = vmul.f32 %v527, 1.442695
    %v540 = vpow.pop %v539
    %v541 = vmul.f32 %v528, 1.442695
    %v542 = vpow.pop %v541
    %v543 = vmul.f32 %v529, 1.442695
    %v544 = vpow.pop %v543
    %v545 = vmul.f32 %v530, 1.442695
    %v546 = vpow.pop %v545
    %v547 = vsel %vm498, %v532, 0.0
    %548 = vadd.xlane.f32.xlu0 %v547
    %v549 = vpop.xlane.xlu0 %548
    %v550 = vsel %vm498, %v534, 0.0
    %551 = vadd.xlane.f32.xlu0 %v550
    %v552 = vpop.xlane.xlu0 %551
    %v553 = vsel %vm498, %v536, 0.0
    %554 = vadd.xlane.f32.xlu0 %v553
    %v555 = vpop.xlane.xlu0 %554
    %v556 = vsel %vm498, %v538, 0.0
    %557 = vadd.xlane.f32.xlu0 %v556
    %v558 = vpop.xlane.xlu0 %557
    %v559 = vsel %vm498, %v540, 0.0
    %560 = vadd.xlane.f32.xlu0 %v559
    %v561 = vpop.xlane.xlu0 %560
    %v562 = vsel %vm498, %v542, 0.0
    %563 = vadd.xlane.f32.xlu0 %v562
    %v564 = vpop.xlane.xlu0 %563
    %v565 = vsel %vm498, %v544, 0.0
    %566 = vadd.xlane.f32.xlu0 %v565
    %v567 = vpop.xlane.xlu0 %566
    %v568 = vsel %vm498, %v546, 0.0
    %569 = vadd.xlane.f32.xlu0 %v568
    %v570 = vpop.xlane.xlu0 %569
    %v571 = vrcp.pop %v549
    %v572 = vmul.f32 %v532, %v571
    %v573 = vrcp.pop %v552
    %v574 = vmul.f32 %v534, %v573
    %v575 = vrcp.pop %v555
    %v576 = vmul.f32 %v536, %v575
    %v577 = vrcp.pop %v558
    %v578 = vmul.f32 %v538, %v577
    %v579 = vrcp.pop %v561
    %v580 = vmul.f32 %v540, %v579
    %v581 = vrcp.pop %v564
    %v582 = vmul.f32 %v542, %v581
    %v583 = vrcp.pop %v567
    %v584 = vmul.f32 %v544, %v583
    %v585 = vrcp.pop %v570
    %v586 = vmul.f32 %v546, %v585
    %v588 = vsel %vm498, %v572, 0
    %v591 = vsel %vm498, %v574, 0
    %v594 = vsel %vm498, %v576, 0
    %v597 = vsel %vm498, %v578, 0
    %v600 = vsel %vm498, %v580, 0
    %v603 = vsel %vm498, %v582, 0
    %v606 = vsel %vm498, %v584, 0
    %v609 = vsel %vm498, %v586, 0
    %611 = vmatprep.subr.mxu0 0.0
    %612 = vmatpush1.msra.mxu0 %v184
    %613 = vmatprep.subr.mxu0 0.0
    %614 = vmatpush1.msra.mxu0 %v189
    %615 = vmatprep.subr.mxu0 0.0
    %616 = vmatpush1.msra.mxu0 %v194
    %617 = vmatprep.subr.mxu0 0.0
    %618 = vmatpush1.msra.mxu0 %v199
    %619 = vmatprep.subr.mxu0 0.0
    %620 = vmatpush1.msra.mxu0 %v204
    %621 = vmatprep.subr.mxu0 0.0
    %622 = vmatpush1.msra.mxu0 %v209
    %623 = vmatprep.subr.mxu0 0.0
    %624 = vmatpush1.msra.mxu0 %v214
    %625 = vmatprep.subr.mxu0 0.0
    %626 = vmatpush1.msra.mxu0 %v219
    %627 = vmatprep.subr.mxu0 0.0
    %628 = vmatpush1.msra.mxu0 0.0
    %629 = vmatprep.subr.mxu0 0.0
    %630 = vmatpush1.msra.mxu0 0.0
    %631 = vmatprep.subr.mxu0 0.0
    %632 = vmatpush1.msra.mxu0 0.0
    %633 = vmatprep.subr.mxu0 0.0
    %634 = vmatpush1.msra.mxu0 0.0
    %635 = vmatprep.subr.mxu0 0.0
    %636 = vmatpush1.msra.mxu0 0.0
    %637 = vmatprep.subr.mxu0 0.0
    %638 = vmatpush1.msra.mxu0 0.0
    %639 = vmatprep.subr.mxu0 0.0
    %640 = vmatpush1.msra.mxu0 0.0
    %641 = vmatprep.subr.mxu0 0.0
    %642 = vmatpush1.msra.mxu0 0.0
    %643 = vmatprep.subr.mxu0 0.0
    %644 = vmatpush1.msra.mxu0 0.0
    %645 = vmatprep.subr.mxu0 0.0
    %646 = vmatpush1.msra.mxu0 0.0
    %647 = vmatprep.subr.mxu0 0.0
    %648 = vmatpush1.msra.mxu0 0.0
    %649 = vmatprep.subr.mxu0 0.0
    %650 = vmatpush1.msra.mxu0 0.0
    %651 = vmatprep.subr.mxu0 0.0
    %652 = vmatpush1.msra.mxu0 0.0
    %653 = vmatprep.subr.mxu0 0.0
    %654 = vmatpush1.msra.mxu0 0.0
    %655 = vmatprep.subr.mxu0 0.0
    %656 = vmatpush1.msra.mxu0 0.0
    %657 = vmatprep.subr.mxu0 0.0
    %658 = vmatpush1.msra.mxu0 0.0
    %659 = vmatprep.subr.mxu0 0.0
    %660 = vmatpush1.msra.mxu0 0.0
    %661 = vmatprep.subr.mxu0 0.0
    %662 = vmatpush1.msra.mxu0 0.0
    %663 = vmatprep.subr.mxu0 0.0
    %664 = vmatpush1.msra.mxu0 0.0
    %665 = vmatprep.subr.mxu0 0.0
    %666 = vmatpush1.msra.mxu0 0.0
    %667 = vmatprep.subr.mxu0 0.0
    %668 = vmatpush1.msra.mxu0 0.0
    %669 = vmatprep.subr.mxu0 0.0
    %670 = vmatpush1.msra.mxu0 0.0
    %671 = vmatprep.subr.mxu0 0.0
    %672 = vmatpush1.msra.mxu0 0.0
    %673 = vmatprep.subr.mxu0 0.0
    %674 = vmatpush1.msra.mxu0 0.0
    %675 = vmatprep.mubr.f32.mxu0 0.0
    %676 = vmatmul.mubr.f32.gmra.mrb[0].mxu0 %v588
    %v677 = vpop.f32.mrb[0].mxu0
    %v678 = vadd.f32 0.0, %v677
    %v679 = vpop.f32.mrb[0].mxu0
    %680 = vmatprep.mubr.f32.mxu0 0.0
    %681 = vmatmul.mubr.f32.gmra.mrb[0].mxu0 %v591
    %v682 = vpop.f32.mrb[0].mxu0
    %v683 = vadd.f32 0.0, %v682
    %v684 = vpop.f32.mrb[0].mxu0
    %685 = vmatprep.mubr.f32.mxu0 0.0
    %686 = vmatmul.mubr.f32.gmra.mrb[0].mxu0 %v594
    %v687 = vpop.f32.mrb[0].mxu0
    %v688 = vadd.f32 0.0, %v687
    %v689 = vpop.f32.mrb[0].mxu0
    %690 = vmatprep.mubr.f32.mxu0 0.0
    %691 = vmatmul.mubr.f32.gmra.mrb[0].mxu0 %v597
    %v692 = vpop.f32.mrb[0].mxu0
    %v693 = vadd.f32 0.0, %v692
    %v694 = vpop.f32.mrb[0].mxu0
    %695 = vmatprep.mubr.f32.mxu0 0.0
    %696 = vmatmul.mubr.f32.gmra.mrb[0].mxu0 %v600
    %v697 = vpop.f32.mrb[0].mxu0
    %v698 = vadd.f32 0.0, %v697
    %v699 = vpop.f32.mrb[0].mxu0
    %700 = vmatprep.mubr.f32.mxu0 0.0
    %701 = vmatmul.mubr.f32.gmra.mrb[0].mxu0 %v603
    %v702 = vpop.f32.mrb[0].mxu0
    %v703 = vadd.f32 0.0, %v702
    %v704 = vpop.f32.mrb[0].mxu0
    %705 = vmatprep.mubr.f32.mxu0 0.0
    %706 = vmatmul.mubr.f32.gmra.mrb[0].mxu0 %v606
    %v707 = vpop.f32.mrb[0].mxu0
    %v708 = vadd.f32 0.0, %v707
    %v709 = vpop.f32.mrb[0].mxu0
    %710 = vmatprep.mubr.f32.mxu0 0.0
    %711 = vmatmul.mubr.f32.gmra.mrb[0].mxu0 %v609
    %v712 = vpop.f32.mrb[0].mxu0
    %v713 = vadd.f32 0.0, %v712
    %v714 = vpop.f32.mrb[0].mxu0
    %715 = vdwg.mxu0
    %vm716 = vcmp.gt.f32.partialorder %v678, 0.0
    %vm717 = vcmp.gt.f32.partialorder %v683, 0.0
    %vm718 = vcmp.gt.f32.partialorder %v688, 0.0
    %vm719 = vcmp.gt.f32.partialorder %v693, 0.0
    %vm720 = vcmp.gt.f32.partialorder %v698, 0.0
    %vm721 = vcmp.gt.f32.partialorder %v703, 0.0
    %vm722 = vcmp.gt.f32.partialorder %v708, 0.0
    %vm723 = vcmp.gt.f32.partialorder %v713, 0.0
    %v724 = vmul.f32 %v678, 1.442695
    %v725 = vpow.pop %v724
    %v726 = vmul.f32 %v683, 1.442695
    %v727 = vpow.pop %v726
    %v728 = vmul.f32 %v688, 1.442695
    %v729 = vpow.pop %v728
    %v730 = vmul.f32 %v693, 1.442695
    %v731 = vpow.pop %v730
    %v732 = vmul.f32 %v698, 1.442695
    %v733 = vpow.pop %v732
    %v734 = vmul.f32 %v703, 1.442695
    %v735 = vpow.pop %v734
    %v736 = vmul.f32 %v708, 1.442695
    %v737 = vpow.pop %v736
    %v738 = vmul.f32 %v713, 1.442695
    %v739 = vpow.pop %v738
    %v740 = vsub.f32 %v725, 1.0
    %v741 = vsub.f32 %v727, 1.0
    %v742 = vsub.f32 %v729, 1.0
    %v743 = vsub.f32 %v731, 1.0
    %v744 = vsub.f32 %v733, 1.0
    %v745 = vsub.f32 %v735, 1.0
    %v746 = vsub.f32 %v737, 1.0
    %v747 = vsub.f32 %v739, 1.0
    %v748 = vsel %vm716, %v678, %v740
    %v749 = vsel %vm717, %v683, %v741
    %v750 = vsel %vm718, %v688, %v742
    %v751 = vsel %vm719, %v693, %v743
    %v752 = vsel %vm720, %v698, %v744
    %v753 = vsel %vm721, %v703, %v745
    %v754 = vsel %vm722, %v708, %v746
    %v755 = vsel %vm723, %v713, %v747
    %vm756 = vcmp.ge.s32.totalorder %v87, 0
    %vm757 = vcmp.lt.s32.totalorder %v87, 32
    %vm758 = vmand %vm756, %vm757
    %v759 = vsel %vm758, %v748, 0.0
    %v760 = vsel %vm758, %v749, 0.0
    %v761 = vsel %vm758, %v750, 0.0
    %v762 = vsel %vm758, %v751, 0.0
    %v763 = vsel %vm758, %v752, 0.0
    %v764 = vsel %vm758, %v753, 0.0
    %v765 = vsel %vm758, %v754, 0.0
    %v766 = vsel %vm758, %v755, 0.0
    %v767 = vadd.f32 %v759, 0.0
    %v768 = vadd.f32 %v760, 0.0
    %v769 = vadd.f32 %v761, 0.0
    %v770 = vadd.f32 %v762, 0.0
    %v771 = vadd.f32 %v763, 0.0
    %v772 = vadd.f32 %v764, 0.0
    %v773 = vadd.f32 %v765, 0.0
    %v774 = vadd.f32 %v766, 0.0
    %775 = vset.pattern.permute.xlu0 1
    %776 = vperm.xlu0 %775, %v305
    %v777 = vpop.permute.xlu0 %776
    %779 = vset.pattern.permute.xlu0 1
    %780 = vperm.xlu0 %779, %v310
    %v781 = vpop.permute.xlu0 %780
    %783 = vset.pattern.permute.xlu0 1
    %784 = vperm.xlu0 %783, %v315
    %v785 = vpop.permute.xlu0 %784
    %787 = vset.pattern.permute.xlu0 1
    %788 = vperm.xlu0 %787, %v320
    %v789 = vpop.permute.xlu0 %788
    %791 = vset.pattern.permute.xlu0 1
    %792 = vperm.xlu0 %791, %v325
    %v793 = vpop.permute.xlu0 %792
    %795 = vset.pattern.permute.xlu0 1
    %796 = vperm.xlu0 %795, %v330
    %v797 = vpop.permute.xlu0 %796
    %799 = vset.pattern.permute.xlu0 1
    %800 = vperm.xlu0 %799, %v335
    %v801 = vpop.permute.xlu0 %800
    %803 = vset.pattern.permute.xlu0 1
    %804 = vperm.xlu0 %803, %v340
    %v805 = vpop.permute.xlu0 %804
    %v807 = vlaneseq
    %v808 = vshrl.u32 %v807, 7
    %v809 = vsub.s32 1, %v808
    %v810 = vrot.slane %v411, %v809
    %v811 = vadd.f32 %v777, %v810
    %v812 = vadd.f32 %v781, %v810
    %v813 = vadd.f32 %v785, %v810
    %v814 = vadd.f32 %v789, %v810
    %v815 = vadd.f32 %v793, %v810
    %v816 = vadd.f32 %v797, %v810
    %v817 = vadd.f32 %v801, %v810
    %v818 = vadd.f32 %v805, %v810
    %vm819 = vcmp.gt.f32.partialorder %v811, 0.0
    %vm820 = vcmp.gt.f32.partialorder %v812, 0.0
    %vm821 = vcmp.gt.f32.partialorder %v813, 0.0
    %vm822 = vcmp.gt.f32.partialorder %v814, 0.0
    %vm823 = vcmp.gt.f32.partialorder %v815, 0.0
    %vm824 = vcmp.gt.f32.partialorder %v816, 0.0
    %vm825 = vcmp.gt.f32.partialorder %v817, 0.0
    %vm826 = vcmp.gt.f32.partialorder %v818, 0.0
    %v827 = vmul.f32 %v811, 0.2
    %v828 = vmul.f32 %v812, 0.2
    %v829 = vmul.f32 %v813, 0.2
    %v830 = vmul.f32 %v814, 0.2
    %v831 = vmul.f32 %v815, 0.2
    %v832 = vmul.f32 %v816, 0.2
    %v833 = vmul.f32 %v817, 0.2
    %v834 = vmul.f32 %v818, 0.2
    %v835 = vsel %vm819, %v811, %v827
    %v836 = vsel %vm820, %v812, %v828
    %v837 = vsel %vm821, %v813, %v829
    %v838 = vsel %vm822, %v814, %v830
    %v839 = vsel %vm823, %v815, %v831
    %v840 = vsel %vm824, %v816, %v832
    %v841 = vsel %vm825, %v817, %v833
    %v842 = vsel %vm826, %v818, %v834
    %v843 = vsel %vm78, %v835, -9e+15
    %v844 = vsel %vm79, %v836, -9e+15
    %v845 = vsel %vm80, %v837, -9e+15
    %v846 = vsel %vm81, %v838, -9e+15
    %v847 = vsel %vm82, %v839, -9e+15
    %v848 = vsel %vm83, %v840, -9e+15
    %v849 = vsel %vm84, %v841, -9e+15
    %v850 = vsel %vm85, %v842, -9e+15
    %v851 = vsel %vm498, %v843, -inf
    %852 = vmax.xlane.f32.xlu0 %v851
    %v853 = vpop.xlane.xlu0 %852
    %v854 = vsel %vm498, %v844, -inf
    %855 = vmax.xlane.f32.xlu0 %v854
    %v856 = vpop.xlane.xlu0 %855
    %v857 = vsel %vm498, %v845, -inf
    %858 = vmax.xlane.f32.xlu0 %v857
    %v859 = vpop.xlane.xlu0 %858
    %v860 = vsel %vm498, %v846, -inf
    %861 = vmax.xlane.f32.xlu0 %v860
    %v862 = vpop.xlane.xlu0 %861
    %v863 = vsel %vm498, %v847, -inf
    %864 = vmax.xlane.f32.xlu0 %v863
    %v865 = vpop.xlane.xlu0 %864
    %v866 = vsel %vm498, %v848, -inf
    %867 = vmax.xlane.f32.xlu0 %v866
    %v868 = vpop.xlane.xlu0 %867
    %v869 = vsel %vm498, %v849, -inf
    %870 = vmax.xlane.f32.xlu0 %v869
    %v871 = vpop.xlane.xlu0 %870
    %v872 = vsel %vm498, %v850, -inf
    %873 = vmax.xlane.f32.xlu0 %v872
    %v874 = vpop.xlane.xlu0 %873
    %v875 = vsub.f32 %v843, %v853
    %v876 = vsub.f32 %v844, %v856
    %v877 = vsub.f32 %v845, %v859
    %v878 = vsub.f32 %v846, %v862
    %v879 = vsub.f32 %v847, %v865
    %v880 = vsub.f32 %v848, %v868
    %v881 = vsub.f32 %v849, %v871
    %v882 = vsub.f32 %v850, %v874
    %v883 = vmul.f32 %v875, 1.442695
    %v884 = vpow.pop %v883
    %v885 = vmul.f32 %v876, 1.442695
    %v886 = vpow.pop %v885
    %v887 = vmul.f32 %v877, 1.442695
    %v888 = vpow.pop %v887
    %v889 = vmul.f32 %v878, 1.442695
    %v890 = vpow.pop %v889
    %v891 = vmul.f32 %v879, 1.442695
    %v892 = vpow.pop %v891
    %v893 = vmul.f32 %v880, 1.442695
    %v894 = vpow.pop %v893
    %v895 = vmul.f32 %v881, 1.442695
    %v896 = vpow.pop %v895
    %v897 = vmul.f32 %v882, 1.442695
    %v898 = vpow.pop %v897
    %v899 = vsel %vm498, %v884, 0.0
    %900 = vadd.xlane.f32.xlu0 %v899
    %v901 = vpop.xlane.xlu0 %900
    %v902 = vsel %vm498, %v886, 0.0
    %903 = vadd.xlane.f32.xlu0 %v902
    %v904 = vpop.xlane.xlu0 %903
    %v905 = vsel %vm498, %v888, 0.0
    %906 = vadd.xlane.f32.xlu0 %v905
    %v907 = vpop.xlane.xlu0 %906
    %v908 = vsel %vm498, %v890, 0.0
    %909 = vadd.xlane.f32.xlu0 %v908
    %v910 = vpop.xlane.xlu0 %909
    %v911 = vsel %vm498, %v892, 0.0
    %912 = vadd.xlane.f32.xlu0 %v911
    %v913 = vpop.xlane.xlu0 %912
    %v914 = vsel %vm498, %v894, 0.0
    %915 = vadd.xlane.f32.xlu0 %v914
    %v916 = vpop.xlane.xlu0 %915
    %v917 = vsel %vm498, %v896, 0.0
    %918 = vadd.xlane.f32.xlu0 %v917
    %v919 = vpop.xlane.xlu0 %918
    %v920 = vsel %vm498, %v898, 0.0
    %921 = vadd.xlane.f32.xlu0 %v920
    %v922 = vpop.xlane.xlu0 %921
    %v923 = vrcp.pop %v901
    %v924 = vmul.f32 %v884, %v923
    %v925 = vrcp.pop %v904
    %v926 = vmul.f32 %v886, %v925
    %v927 = vrcp.pop %v907
    %v928 = vmul.f32 %v888, %v927
    %v929 = vrcp.pop %v910
    %v930 = vmul.f32 %v890, %v929
    %v931 = vrcp.pop %v913
    %v932 = vmul.f32 %v892, %v931
    %v933 = vrcp.pop %v916
    %v934 = vmul.f32 %v894, %v933
    %v935 = vrcp.pop %v919
    %v936 = vmul.f32 %v896, %v935
    %v937 = vrcp.pop %v922
    %v938 = vmul.f32 %v898, %v937
    %v940 = vsel %vm498, %v924, 0
    %v943 = vsel %vm498, %v926, 0
    %v946 = vsel %vm498, %v928, 0
    %v949 = vsel %vm498, %v930, 0
    %v952 = vsel %vm498, %v932, 0
    %v955 = vsel %vm498, %v934, 0
    %v958 = vsel %vm498, %v936, 0
    %v961 = vsel %vm498, %v938, 0
    %963 = vmatprep.subr.mxu0 0.0
    %964 = vmatpush1.msra.mxu0 %v184
    %965 = vmatprep.subr.mxu0 0.0
    %966 = vmatpush1.msra.mxu0 %v189
    %967 = vmatprep.subr.mxu0 0.0
    %968 = vmatpush1.msra.mxu0 %v194
    %969 = vmatprep.subr.mxu0 0.0
    %970 = vmatpush1.msra.mxu0 %v199
    %971 = vmatprep.subr.mxu0 0.0
    %972 = vmatpush1.msra.mxu0 %v204
    %973 = vmatprep.subr.mxu0 0.0
    %974 = vmatpush1.msra.mxu0 %v209
    %975 = vmatprep.subr.mxu0 0.0
    %976 = vmatpush1.msra.mxu0 %v214
    %977 = vmatprep.subr.mxu0 0.0
    %978 = vmatpush1.msra.mxu0 %v219
    %979 = vmatprep.subr.mxu0 0.0
    %980 = vmatpush1.msra.mxu0 0.0
    %981 = vmatprep.subr.mxu0 0.0
    %982 = vmatpush1.msra.mxu0 0.0
    %983 = vmatprep.subr.mxu0 0.0
    %984 = vmatpush1.msra.mxu0 0.0
    %985 = vmatprep.subr.mxu0 0.0
    %986 = vmatpush1.msra.mxu0 0.0
    %987 = vmatprep.subr.mxu0 0.0
    %988 = vmatpush1.msra.mxu0 0.0
    %989 = vmatprep.subr.mxu0 0.0
    %990 = vmatpush1.msra.mxu0 0.0
    %991 = vmatprep.subr.mxu0 0.0
    %992 = vmatpush1.msra.mxu0 0.0
    %993 = vmatprep.subr.mxu0 0.0
    %994 = vmatpush1.msra.mxu0 0.0
    %995 = vmatprep.subr.mxu0 0.0
    %996 = vmatpush1.msra.mxu0 0.0
    %997 = vmatprep.subr.mxu0 0.0
    %998 = vmatpush1.msra.mxu0 0.0
    %999 = vmatprep.subr.mxu0 0.0
    %1000 = vmatpush1.msra.mxu0 0.0
    %1001 = vmatprep.subr.mxu0 0.0
    %1002 = vmatpush1.msra.mxu0 0.0
    %1003 = vmatprep.subr.mxu0 0.0
    %1004 = vmatpush1.msra.mxu0 0.0
    %1005 = vmatprep.subr.mxu0 0.0
    %1006 = vmatpush1.msra.mxu0 0.0
    %1007 = vmatprep.subr.mxu0 0.0
    %1008 = vmatpush1.msra.mxu0 0.0
    %1009 = vmatprep.subr.mxu0 0.0
    %1010 = vmatpush1.msra.mxu0 0.0
    %1011 = vmatprep.subr.mxu0 0.0
    %1012 = vmatpush1.msra.mxu0 0.0
    %1013 = vmatprep.subr.mxu0 0.0
    %1014 = vmatpush1.msra.mxu0 0.0
    %1015 = vmatprep.subr.mxu0 0.0
    %1016 = vmatpush1.msra.mxu0 0.0
    %1017 = vmatprep.subr.mxu0 0.0
    %1018 = vmatpush1.msra.mxu0 0.0
    %1019 = vmatprep.subr.mxu0 0.0
    %1020 = vmatpush1.msra.mxu0 0.0
    %1021 = vmatprep.subr.mxu0 0.0
    %1022 = vmatpush1.msra.mxu0 0.0
    %1023 = vmatprep.subr.mxu0 0.0
    %1024 = vmatpush1.msra.mxu0 0.0
    %1025 = vmatprep.subr.mxu0 0.0
    %1026 = vmatpush1.msra.mxu0 0.0
    %1027 = vmatprep.mubr.f32.mxu0 0.0
    %1028 = vmatmul.mubr.f32.gmra.mrb[0].mxu0 %v940
    %v1029 = vpop.f32.mrb[0].mxu0
    %v1030 = vadd.f32 0.0, %v1029
    %v1031 = vpop.f32.mrb[0].mxu0
    %1032 = vmatprep.mubr.f32.mxu0 0.0
    %1033 = vmatmul.mubr.f32.gmra.mrb[0].mxu0 %v943
    %v1034 = vpop.f32.mrb[0].mxu0
    %v1035 = vadd.f32 0.0, %v1034
    %v1036 = vpop.f32.mrb[0].mxu0
    %1037 = vmatprep.mubr.f32.mxu0 0.0
    %1038 = vmatmul.mubr.f32.gmra.mrb[0].mxu0 %v946
    %v1039 = vpop.f32.mrb[0].mxu0
    %v1040 = vadd.f32 0.0, %v1039
    %v1041 = vpop.f32.mrb[0].mxu0
    %1042 = vmatprep.mubr.f32.mxu0 0.0
    %1043 = vmatmul.mubr.f32.gmra.mrb[0].mxu0 %v949
    %v1044 = vpop.f32.mrb[0].mxu0
    %v1045 = vadd.f32 0.0, %v1044
    %v1046 = vpop.f32.mrb[0].mxu0
    %1047 = vmatprep.mubr.f32.mxu0 0.0
    %1048 = vmatmul.mubr.f32.gmra.mrb[0].mxu0 %v952
    %v1049 = vpop.f32.mrb[0].mxu0
    %v1050 = vadd.f32 0.0, %v1049
    %v1051 = vpop.f32.mrb[0].mxu0
    %1052 = vmatprep.mubr.f32.mxu0 0.0
    %1053 = vmatmul.mubr.f32.gmra.mrb[0].mxu0 %v955
    %v1054 = vpop.f32.mrb[0].mxu0
    %v1055 = vadd.f32 0.0, %v1054
    %v1056 = vpop.f32.mrb[0].mxu0
    %1057 = vmatprep.mubr.f32.mxu0 0.0
    %1058 = vmatmul.mubr.f32.gmra.mrb[0].mxu0 %v958
    %v1059 = vpop.f32.mrb[0].mxu0
    %v1060 = vadd.f32 0.0, %v1059
    %v1061 = vpop.f32.mrb[0].mxu0
    %1062 = vmatprep.mubr.f32.mxu0 0.0
    %1063 = vmatmul.mubr.f32.gmra.mrb[0].mxu0 %v961
    %v1064 = vpop.f32.mrb[0].mxu0
    %v1065 = vadd.f32 0.0, %v1064
    %v1066 = vpop.f32.mrb[0].mxu0
    %1067 = vdwg.mxu0
    %vm1068 = vcmp.gt.f32.partialorder %v1030, 0.0
    %vm1069 = vcmp.gt.f32.partialorder %v1035, 0.0
    %vm1070 = vcmp.gt.f32.partialorder %v1040, 0.0
    %vm1071 = vcmp.gt.f32.partialorder %v1045, 0.0
    %vm1072 = vcmp.gt.f32.partialorder %v1050, 0.0
    %vm1073 = vcmp.gt.f32.partialorder %v1055, 0.0
    %vm1074 = vcmp.gt.f32.partialorder %v1060, 0.0
    %vm1075 = vcmp.gt.f32.partialorder %v1065, 0.0
    %v1076 = vmul.f32 %v1030, 1.442695
    %v1077 = vpow.pop %v1076
    %v1078 = vmul.f32 %v1035, 1.442695
    %v1079 = vpow.pop %v1078
    %v1080 = vmul.f32 %v1040, 1.442695
    %v1081 = vpow.pop %v1080
    %v1082 = vmul.f32 %v1045, 1.442695
    %v1083 = vpow.pop %v1082
    %v1084 = vmul.f32 %v1050, 1.442695
    %v1085 = vpow.pop %v1084
    %v1086 = vmul.f32 %v1055, 1.442695
    %v1087 = vpow.pop %v1086
    %v1088 = vmul.f32 %v1060, 1.442695
    %v1089 = vpow.pop %v1088
    %v1090 = vmul.f32 %v1065, 1.442695
    %v1091 = vpow.pop %v1090
    %v1092 = vsub.f32 %v1077, 1.0
    %v1093 = vsub.f32 %v1079, 1.0
    %v1094 = vsub.f32 %v1081, 1.0
    %v1095 = vsub.f32 %v1083, 1.0
    %v1096 = vsub.f32 %v1085, 1.0
    %v1097 = vsub.f32 %v1087, 1.0
    %v1098 = vsub.f32 %v1089, 1.0
    %v1099 = vsub.f32 %v1091, 1.0
    %v1100 = vsel %vm1068, %v1030, %v1092
    %v1101 = vsel %vm1069, %v1035, %v1093
    %v1102 = vsel %vm1070, %v1040, %v1094
    %v1103 = vsel %vm1071, %v1045, %v1095
    %v1104 = vsel %vm1072, %v1050, %v1096
    %v1105 = vsel %vm1073, %v1055, %v1097
    %v1106 = vsel %vm1074, %v1060, %v1098
    %v1107 = vsel %vm1075, %v1065, %v1099
    %vm1108 = vcmp.ge.s32.totalorder %v87, 32
    %vm1109 = vcmp.lt.s32.totalorder %v87, 64
    %vm1110 = vmand %vm1108, %vm1109
    %v1111 = vsel %vm1110, %v1100, 0.0
    %v1112 = vsel %vm1110, %v1101, 0.0
    %v1113 = vsel %vm1110, %v1102, 0.0
    %v1114 = vsel %vm1110, %v1103, 0.0
    %v1115 = vsel %vm1110, %v1104, 0.0
    %v1116 = vsel %vm1110, %v1105, 0.0
    %v1117 = vsel %vm1110, %v1106, 0.0
    %v1118 = vsel %vm1110, %v1107, 0.0
    %v1119 = vadd.f32 %v767, %v1111
    %v1120 = vadd.f32 %v768, %v1112
    %v1121 = vadd.f32 %v769, %v1113
    %v1122 = vadd.f32 %v770, %v1114
    %v1123 = vadd.f32 %v771, %v1115
    %v1124 = vadd.f32 %v772, %v1116
    %v1125 = vadd.f32 %v773, %v1117
    %v1126 = vadd.f32 %v774, %v1118
    %1127 = vset.pattern.permute.xlu0 2
    %1128 = vperm.xlu0 %1127, %v305
    %v1129 = vpop.permute.xlu0 %1128
    %1131 = vset.pattern.permute.xlu0 2
    %1132 = vperm.xlu0 %1131, %v310
    %v1133 = vpop.permute.xlu0 %1132
    %1135 = vset.pattern.permute.xlu0 2
    %1136 = vperm.xlu0 %1135, %v315
    %v1137 = vpop.permute.xlu0 %1136
    %1139 = vset.pattern.permute.xlu0 2
    %1140 = vperm.xlu0 %1139, %v320
    %v1141 = vpop.permute.xlu0 %1140
    %1143 = vset.pattern.permute.xlu0 2
    %1144 = vperm.xlu0 %1143, %v325
    %v1145 = vpop.permute.xlu0 %1144
    %1147 = vset.pattern.permute.xlu0 2
    %1148 = vperm.xlu0 %1147, %v330
    %v1149 = vpop.permute.xlu0 %1148
    %1151 = vset.pattern.permute.xlu0 2
    %1152 = vperm.xlu0 %1151, %v335
    %v1153 = vpop.permute.xlu0 %1152
    %1155 = vset.pattern.permute.xlu0 2
    %1156 = vperm.xlu0 %1155, %v340
    %v1157 = vpop.permute.xlu0 %1156
    %v1159 = vlaneseq
    %v1160 = vshrl.u32 %v1159, 7
    %v1161 = vsub.s32 2, %v1160
    %v1162 = vrot.slane %v411, %v1161
    %v1163 = vadd.f32 %v1129, %v1162
    %v1164 = vadd.f32 %v1133, %v1162
    %v1165 = vadd.f32 %v1137, %v1162
    %v1166 = vadd.f32 %v1141, %v1162
    %v1167 = vadd.f32 %v1145, %v1162
    %v1168 = vadd.f32 %v1149, %v1162
    %v1169 = vadd.f32 %v1153, %v1162
    %v1170 = vadd.f32 %v1157, %v1162
    %vm1171 = vcmp.gt.f32.partialorder %v1163, 0.0
    %vm1172 = vcmp.gt.f32.partialorder %v1164, 0.0
    %vm1173 = vcmp.gt.f32.partialorder %v1165, 0.0
    %vm1174 = vcmp.gt.f32.partialorder %v1166, 0.0
    %vm1175 = vcmp.gt.f32.partialorder %v1167, 0.0
    %vm1176 = vcmp.gt.f32.partialorder %v1168, 0.0
    %vm1177 = vcmp.gt.f32.partialorder %v1169, 0.0
    %vm1178 = vcmp.gt.f32.partialorder %v1170, 0.0
    %v1179 = vmul.f32 %v1163, 0.2
    %v1180 = vmul.f32 %v1164, 0.2
    %v1181 = vmul.f32 %v1165, 0.2
    %v1182 = vmul.f32 %v1166, 0.2
    %v1183 = vmul.f32 %v1167, 0.2
    %v1184 = vmul.f32 %v1168, 0.2
    %v1185 = vmul.f32 %v1169, 0.2
    %v1186 = vmul.f32 %v1170, 0.2
    %v1187 = vsel %vm1171, %v1163, %v1179
    %v1188 = vsel %vm1172, %v1164, %v1180
    %v1189 = vsel %vm1173, %v1165, %v1181
    %v1190 = vsel %vm1174, %v1166, %v1182
    %v1191 = vsel %vm1175, %v1167, %v1183
    %v1192 = vsel %vm1176, %v1168, %v1184
    %v1193 = vsel %vm1177, %v1169, %v1185
    %v1194 = vsel %vm1178, %v1170, %v1186
    %v1195 = vsel %vm78, %v1187, -9e+15
    %v1196 = vsel %vm79, %v1188, -9e+15
    %v1197 = vsel %vm80, %v1189, -9e+15
    %v1198 = vsel %vm81, %v1190, -9e+15
    %v1199 = vsel %vm82, %v1191, -9e+15
    %v1200 = vsel %vm83, %v1192, -9e+15
    %v1201 = vsel %vm84, %v1193, -9e+15
    %v1202 = vsel %vm85, %v1194, -9e+15
    %v1203 = vsel %vm498, %v1195, -inf
    %1204 = vmax.xlane.f32.xlu0 %v1203
    %v1205 = vpop.xlane.xlu0 %1204
    %v1206 = vsel %vm498, %v1196, -inf
    %1207 = vmax.xlane.f32.xlu0 %v1206
    %v1208 = vpop.xlane.xlu0 %1207
    %v1209 = vsel %vm498, %v1197, -inf
    %1210 = vmax.xlane.f32.xlu0 %v1209
    %v1211 = vpop.xlane.xlu0 %1210
    %v1212 = vsel %vm498, %v1198, -inf
    %1213 = vmax.xlane.f32.xlu0 %v1212
    %v1214 = vpop.xlane.xlu0 %1213
    %v1215 = vsel %vm498, %v1199, -inf
    %1216 = vmax.xlane.f32.xlu0 %v1215
    %v1217 = vpop.xlane.xlu0 %1216
    %v1218 = vsel %vm498, %v1200, -inf
    %1219 = vmax.xlane.f32.xlu0 %v1218
    %v1220 = vpop.xlane.xlu0 %1219
    %v1221 = vsel %vm498, %v1201, -inf
    %1222 = vmax.xlane.f32.xlu0 %v1221
    %v1223 = vpop.xlane.xlu0 %1222
    %v1224 = vsel %vm498, %v1202, -inf
    %1225 = vmax.xlane.f32.xlu0 %v1224
    %v1226 = vpop.xlane.xlu0 %1225
    %v1227 = vsub.f32 %v1195, %v1205
    %v1228 = vsub.f32 %v1196, %v1208
    %v1229 = vsub.f32 %v1197, %v1211
    %v1230 = vsub.f32 %v1198, %v1214
    %v1231 = vsub.f32 %v1199, %v1217
    %v1232 = vsub.f32 %v1200, %v1220
    %v1233 = vsub.f32 %v1201, %v1223
    %v1234 = vsub.f32 %v1202, %v1226
    %v1235 = vmul.f32 %v1227, 1.442695
    %v1236 = vpow.pop %v1235
    %v1237 = vmul.f32 %v1228, 1.442695
    %v1238 = vpow.pop %v1237
    %v1239 = vmul.f32 %v1229, 1.442695
    %v1240 = vpow.pop %v1239
    %v1241 = vmul.f32 %v1230, 1.442695
    %v1242 = vpow.pop %v1241
    %v1243 = vmul.f32 %v1231, 1.442695
    %v1244 = vpow.pop %v1243
    %v1245 = vmul.f32 %v1232, 1.442695
    %v1246 = vpow.pop %v1245
    %v1247 = vmul.f32 %v1233, 1.442695
    %v1248 = vpow.pop %v1247
    %v1249 = vmul.f32 %v1234, 1.442695
    %v1250 = vpow.pop %v1249
    %v1251 = vsel %vm498, %v1236, 0.0
    %1252 = vadd.xlane.f32.xlu0 %v1251
    %v1253 = vpop.xlane.xlu0 %1252
    %v1254 = vsel %vm498, %v1238, 0.0
    %1255 = vadd.xlane.f32.xlu0 %v1254
    %v1256 = vpop.xlane.xlu0 %1255
    %v1257 = vsel %vm498, %v1240, 0.0
    %1258 = vadd.xlane.f32.xlu0 %v1257
    %v1259 = vpop.xlane.xlu0 %1258
    %v1260 = vsel %vm498, %v1242, 0.0
    %1261 = vadd.xlane.f32.xlu0 %v1260
    %v1262 = vpop.xlane.xlu0 %1261
    %v1263 = vsel %vm498, %v1244, 0.0
    %1264 = vadd.xlane.f32.xlu0 %v1263
    %v1265 = vpop.xlane.xlu0 %1264
    %v1266 = vsel %vm498, %v1246, 0.0
    %1267 = vadd.xlane.f32.xlu0 %v1266
    %v1268 = vpop.xlane.xlu0 %1267
    %v1269 = vsel %vm498, %v1248, 0.0
    %1270 = vadd.xlane.f32.xlu0 %v1269
    %v1271 = vpop.xlane.xlu0 %1270
    %v1272 = vsel %vm498, %v1250, 0.0
    %1273 = vadd.xlane.f32.xlu0 %v1272
    %v1274 = vpop.xlane.xlu0 %1273
    %v1275 = vrcp.pop %v1253
    %v1276 = vmul.f32 %v1236, %v1275
    %v1277 = vrcp.pop %v1256
    %v1278 = vmul.f32 %v1238, %v1277
    %v1279 = vrcp.pop %v1259
    %v1280 = vmul.f32 %v1240, %v1279
    %v1281 = vrcp.pop %v1262
    %v1282 = vmul.f32 %v1242, %v1281
    %v1283 = vrcp.pop %v1265
    %v1284 = vmul.f32 %v1244, %v1283
    %v1285 = vrcp.pop %v1268
    %v1286 = vmul.f32 %v1246, %v1285
    %v1287 = vrcp.pop %v1271
    %v1288 = vmul.f32 %v1248, %v1287
    %v1289 = vrcp.pop %v1274
    %v1290 = vmul.f32 %v1250, %v1289
    %v1292 = vsel %vm498, %v1276, 0
    %v1295 = vsel %vm498, %v1278, 0
    %v1298 = vsel %vm498, %v1280, 0
    %v1301 = vsel %vm498, %v1282, 0
    %v1304 = vsel %vm498, %v1284, 0
    %v1307 = vsel %vm498, %v1286, 0
    %v1310 = vsel %vm498, %v1288, 0
    %v1313 = vsel %vm498, %v1290, 0
    %1315 = vmatprep.subr.mxu0 0.0
    %1316 = vmatpush1.msra.mxu0 %v184
    %1317 = vmatprep.subr.mxu0 0.0
    %1318 = vmatpush1.msra.mxu0 %v189
    %1319 = vmatprep.subr.mxu0 0.0
    %1320 = vmatpush1.msra.mxu0 %v194
    %1321 = vmatprep.subr.mxu0 0.0
    %1322 = vmatpush1.msra.mxu0 %v199
    %1323 = vmatprep.subr.mxu0 0.0
    %1324 = vmatpush1.msra.mxu0 %v204
    %1325 = vmatprep.subr.mxu0 0.0
    %1326 = vmatpush1.msra.mxu0 %v209
    %1327 = vmatprep.subr.mxu0 0.0
    %1328 = vmatpush1.msra.mxu0 %v214
    %1329 = vmatprep.subr.mxu0 0.0
    %1330 = vmatpush1.msra.mxu0 %v219
    %1331 = vmatprep.subr.mxu0 0.0
    %1332 = vmatpush1.msra.mxu0 0.0
    %1333 = vmatprep.subr.mxu0 0.0
    %1334 = vmatpush1.msra.mxu0 0.0
    %1335 = vmatprep.subr.mxu0 0.0
    %1336 = vmatpush1.msra.mxu0 0.0
    %1337 = vmatprep.subr.mxu0 0.0
    %1338 = vmatpush1.msra.mxu0 0.0
    %1339 = vmatprep.subr.mxu0 0.0
    %1340 = vmatpush1.msra.mxu0 0.0
    %1341 = vmatprep.subr.mxu0 0.0
    %1342 = vmatpush1.msra.mxu0 0.0
    %1343 = vmatprep.subr.mxu0 0.0
    %1344 = vmatpush1.msra.mxu0 0.0
    %1345 = vmatprep.subr.mxu0 0.0
    %1346 = vmatpush1.msra.mxu0 0.0
    %1347 = vmatprep.subr.mxu0 0.0
    %1348 = vmatpush1.msra.mxu0 0.0
    %1349 = vmatprep.subr.mxu0 0.0
    %1350 = vmatpush1.msra.mxu0 0.0
    %1351 = vmatprep.subr.mxu0 0.0
    %1352 = vmatpush1.msra.mxu0 0.0
    %1353 = vmatprep.subr.mxu0 0.0
    %1354 = vmatpush1.msra.mxu0 0.0
    %1355 = vmatprep.subr.mxu0 0.0
    %1356 = vmatpush1.msra.mxu0 0.0
    %1357 = vmatprep.subr.mxu0 0.0
    %1358 = vmatpush1.msra.mxu0 0.0
    %1359 = vmatprep.subr.mxu0 0.0
    %1360 = vmatpush1.msra.mxu0 0.0
    %1361 = vmatprep.subr.mxu0 0.0
    %1362 = vmatpush1.msra.mxu0 0.0
    %1363 = vmatprep.subr.mxu0 0.0
    %1364 = vmatpush1.msra.mxu0 0.0
    %1365 = vmatprep.subr.mxu0 0.0
    %1366 = vmatpush1.msra.mxu0 0.0
    %1367 = vmatprep.subr.mxu0 0.0
    %1368 = vmatpush1.msra.mxu0 0.0
    %1369 = vmatprep.subr.mxu0 0.0
    %1370 = vmatpush1.msra.mxu0 0.0
    %1371 = vmatprep.subr.mxu0 0.0
    %1372 = vmatpush1.msra.mxu0 0.0
    %1373 = vmatprep.subr.mxu0 0.0
    %1374 = vmatpush1.msra.mxu0 0.0
    %1375 = vmatprep.subr.mxu0 0.0
    %1376 = vmatpush1.msra.mxu0 0.0
    %1377 = vmatprep.subr.mxu0 0.0
    %1378 = vmatpush1.msra.mxu0 0.0
    %1379 = vmatprep.mubr.f32.mxu0 0.0
    %1380 = vmatmul.mubr.f32.gmra.mrb[0].mxu0 %v1292
    %v1381 = vpop.f32.mrb[0].mxu0
    %v1382 = vadd.f32 0.0, %v1381
    %v1383 = vpop.f32.mrb[0].mxu0
    %1384 = vmatprep.mubr.f32.mxu0 0.0
    %1385 = vmatmul.mubr.f32.gmra.mrb[0].mxu0 %v1295
    %v1386 = vpop.f32.mrb[0].mxu0
    %v1387 = vadd.f32 0.0, %v1386
    %v1388 = vpop.f32.mrb[0].mxu0
    %1389 = vmatprep.mubr.f32.mxu0 0.0
    %1390 = vmatmul.mubr.f32.gmra.mrb[0].mxu0 %v1298
    %v1391 = vpop.f32.mrb[0].mxu0
    %v1392 = vadd.f32 0.0, %v1391
    %v1393 = vpop.f32.mrb[0].mxu0
    %1394 = vmatprep.mubr.f32.mxu0 0.0
    %1395 = vmatmul.mubr.f32.gmra.mrb[0].mxu0 %v1301
    %v1396 = vpop.f32.mrb[0].mxu0
    %v1397 = vadd.f32 0.0, %v1396
    %v1398 = vpop.f32.mrb[0].mxu0
    %1399 = vmatprep.mubr.f32.mxu0 0.0
    %1400 = vmatmul.mubr.f32.gmra.mrb[0].mxu0 %v1304
    %v1401 = vpop.f32.mrb[0].mxu0
    %v1402 = vadd.f32 0.0, %v1401
    %v1403 = vpop.f32.mrb[0].mxu0
    %1404 = vmatprep.mubr.f32.mxu0 0.0
    %1405 = vmatmul.mubr.f32.gmra.mrb[0].mxu0 %v1307
    %v1406 = vpop.f32.mrb[0].mxu0
    %v1407 = vadd.f32 0.0, %v1406
    %v1408 = vpop.f32.mrb[0].mxu0
    %1409 = vmatprep.mubr.f32.mxu0 0.0
    %1410 = vmatmul.mubr.f32.gmra.mrb[0].mxu0 %v1310
    %v1411 = vpop.f32.mrb[0].mxu0
    %v1412 = vadd.f32 0.0, %v1411
    %v1413 = vpop.f32.mrb[0].mxu0
    %1414 = vmatprep.mubr.f32.mxu0 0.0
    %1415 = vmatmul.mubr.f32.gmra.mrb[0].mxu0 %v1313
    %v1416 = vpop.f32.mrb[0].mxu0
    %v1417 = vadd.f32 0.0, %v1416
    %v1418 = vpop.f32.mrb[0].mxu0
    %1419 = vdwg.mxu0
    %vm1420 = vcmp.gt.f32.partialorder %v1382, 0.0
    %vm1421 = vcmp.gt.f32.partialorder %v1387, 0.0
    %vm1422 = vcmp.gt.f32.partialorder %v1392, 0.0
    %vm1423 = vcmp.gt.f32.partialorder %v1397, 0.0
    %vm1424 = vcmp.gt.f32.partialorder %v1402, 0.0
    %vm1425 = vcmp.gt.f32.partialorder %v1407, 0.0
    %vm1426 = vcmp.gt.f32.partialorder %v1412, 0.0
    %vm1427 = vcmp.gt.f32.partialorder %v1417, 0.0
    %v1428 = vmul.f32 %v1382, 1.442695
    %v1429 = vpow.pop %v1428
    %v1430 = vmul.f32 %v1387, 1.442695
    %v1431 = vpow.pop %v1430
    %v1432 = vmul.f32 %v1392, 1.442695
    %v1433 = vpow.pop %v1432
    %v1434 = vmul.f32 %v1397, 1.442695
    %v1435 = vpow.pop %v1434
    %v1436 = vmul.f32 %v1402, 1.442695
    %v1437 = vpow.pop %v1436
    %v1438 = vmul.f32 %v1407, 1.442695
    %v1439 = vpow.pop %v1438
    %v1440 = vmul.f32 %v1412, 1.442695
    %v1441 = vpow.pop %v1440
    %v1442 = vmul.f32 %v1417, 1.442695
    %v1443 = vpow.pop %v1442
    %v1444 = vsub.f32 %v1429, 1.0
    %v1445 = vsub.f32 %v1431, 1.0
    %v1446 = vsub.f32 %v1433, 1.0
    %v1447 = vsub.f32 %v1435, 1.0
    %v1448 = vsub.f32 %v1437, 1.0
    %v1449 = vsub.f32 %v1439, 1.0
    %v1450 = vsub.f32 %v1441, 1.0
    %v1451 = vsub.f32 %v1443, 1.0
    %v1452 = vsel %vm1420, %v1382, %v1444
    %v1453 = vsel %vm1421, %v1387, %v1445
    %v1454 = vsel %vm1422, %v1392, %v1446
    %v1455 = vsel %vm1423, %v1397, %v1447
    %v1456 = vsel %vm1424, %v1402, %v1448
    %v1457 = vsel %vm1425, %v1407, %v1449
    %v1458 = vsel %vm1426, %v1412, %v1450
    %v1459 = vsel %vm1427, %v1417, %v1451
    %vm1460 = vcmp.ge.s32.totalorder %v87, 64
    %vm1461 = vcmp.lt.s32.totalorder %v87, 96
    %vm1462 = vmand %vm1460, %vm1461
    %v1463 = vsel %vm1462, %v1452, 0.0
    %v1464 = vsel %vm1462, %v1453, 0.0
    %v1465 = vsel %vm1462, %v1454, 0.0
    %v1466 = vsel %vm1462, %v1455, 0.0
    %v1467 = vsel %vm1462, %v1456, 0.0
    %v1468 = vsel %vm1462, %v1457, 0.0
    %v1469 = vsel %vm1462, %v1458, 0.0
    %v1470 = vsel %vm1462, %v1459, 0.0
    %v1471 = vadd.f32 %v1119, %v1463
    %v1472 = vadd.f32 %v1120, %v1464
    %v1473 = vadd.f32 %v1121, %v1465
    %v1474 = vadd.f32 %v1122, %v1466
    %v1475 = vadd.f32 %v1123, %v1467
    %v1476 = vadd.f32 %v1124, %v1468
    %v1477 = vadd.f32 %v1125, %v1469
    %v1478 = vadd.f32 %v1126, %v1470
    %1479 = vset.pattern.permute.xlu0 3
    %1480 = vperm.xlu0 %1479, %v305
    %v1481 = vpop.permute.xlu0 %1480
    %1483 = vset.pattern.permute.xlu0 3
    %1484 = vperm.xlu0 %1483, %v310
    %v1485 = vpop.permute.xlu0 %1484
    %1487 = vset.pattern.permute.xlu0 3
    %1488 = vperm.xlu0 %1487, %v315
    %v1489 = vpop.permute.xlu0 %1488
    %1491 = vset.pattern.permute.xlu0 3
    %1492 = vperm.xlu0 %1491, %v320
    %v1493 = vpop.permute.xlu0 %1492
    %1495 = vset.pattern.permute.xlu0 3
    %1496 = vperm.xlu0 %1495, %v325
    %v1497 = vpop.permute.xlu0 %1496
    %1499 = vset.pattern.permute.xlu0 3
    %1500 = vperm.xlu0 %1499, %v330
    %v1501 = vpop.permute.xlu0 %1500
    %1503 = vset.pattern.permute.xlu0 3
    %1504 = vperm.xlu0 %1503, %v335
    %v1505 = vpop.permute.xlu0 %1504
    %1507 = vset.pattern.permute.xlu0 3
    %1508 = vperm.xlu0 %1507, %v340
    %v1509 = vpop.permute.xlu0 %1508
    %v1511 = vlaneseq
    %v1512 = vshrl.u32 %v1511, 7
    %v1513 = vsub.s32 3, %v1512
    %v1514 = vrot.slane %v411, %v1513
    %v1515 = vadd.f32 %v1481, %v1514
    %v1516 = vadd.f32 %v1485, %v1514
    %v1517 = vadd.f32 %v1489, %v1514
    %v1518 = vadd.f32 %v1493, %v1514
    %v1519 = vadd.f32 %v1497, %v1514
    %v1520 = vadd.f32 %v1501, %v1514
    %v1521 = vadd.f32 %v1505, %v1514
    %v1522 = vadd.f32 %v1509, %v1514
    %vm1523 = vcmp.gt.f32.partialorder %v1515, 0.0
    %vm1524 = vcmp.gt.f32.partialorder %v1516, 0.0
    %vm1525 = vcmp.gt.f32.partialorder %v1517, 0.0
    %vm1526 = vcmp.gt.f32.partialorder %v1518, 0.0
    %vm1527 = vcmp.gt.f32.partialorder %v1519, 0.0
    %vm1528 = vcmp.gt.f32.partialorder %v1520, 0.0
    %vm1529 = vcmp.gt.f32.partialorder %v1521, 0.0
    %vm1530 = vcmp.gt.f32.partialorder %v1522, 0.0
    %v1531 = vmul.f32 %v1515, 0.2
    %v1532 = vmul.f32 %v1516, 0.2
    %v1533 = vmul.f32 %v1517, 0.2
    %v1534 = vmul.f32 %v1518, 0.2
    %v1535 = vmul.f32 %v1519, 0.2
    %v1536 = vmul.f32 %v1520, 0.2
    %v1537 = vmul.f32 %v1521, 0.2
    %v1538 = vmul.f32 %v1522, 0.2
    %v1539 = vsel %vm1523, %v1515, %v1531
    %v1540 = vsel %vm1524, %v1516, %v1532
    %v1541 = vsel %vm1525, %v1517, %v1533
    %v1542 = vsel %vm1526, %v1518, %v1534
    %v1543 = vsel %vm1527, %v1519, %v1535
    %v1544 = vsel %vm1528, %v1520, %v1536
    %v1545 = vsel %vm1529, %v1521, %v1537
    %v1546 = vsel %vm1530, %v1522, %v1538
    %v1547 = vsel %vm78, %v1539, -9e+15
    %v1548 = vsel %vm79, %v1540, -9e+15
    %v1549 = vsel %vm80, %v1541, -9e+15
    %v1550 = vsel %vm81, %v1542, -9e+15
    %v1551 = vsel %vm82, %v1543, -9e+15
    %v1552 = vsel %vm83, %v1544, -9e+15
    %v1553 = vsel %vm84, %v1545, -9e+15
    %v1554 = vsel %vm85, %v1546, -9e+15
    %v1555 = vsel %vm498, %v1547, -inf
    %1556 = vmax.xlane.f32.xlu0 %v1555
    %v1557 = vpop.xlane.xlu0 %1556
    %v1558 = vsel %vm498, %v1548, -inf
    %1559 = vmax.xlane.f32.xlu0 %v1558
    %v1560 = vpop.xlane.xlu0 %1559
    %v1561 = vsel %vm498, %v1549, -inf
    %1562 = vmax.xlane.f32.xlu0 %v1561
    %v1563 = vpop.xlane.xlu0 %1562
    %v1564 = vsel %vm498, %v1550, -inf
    %1565 = vmax.xlane.f32.xlu0 %v1564
    %v1566 = vpop.xlane.xlu0 %1565
    %v1567 = vsel %vm498, %v1551, -inf
    %1568 = vmax.xlane.f32.xlu0 %v1567
    %v1569 = vpop.xlane.xlu0 %1568
    %v1570 = vsel %vm498, %v1552, -inf
    %1571 = vmax.xlane.f32.xlu0 %v1570
    %v1572 = vpop.xlane.xlu0 %1571
    %v1573 = vsel %vm498, %v1553, -inf
    %1574 = vmax.xlane.f32.xlu0 %v1573
    %v1575 = vpop.xlane.xlu0 %1574
    %v1576 = vsel %vm498, %v1554, -inf
    %1577 = vmax.xlane.f32.xlu0 %v1576
    %v1578 = vpop.xlane.xlu0 %1577
    %v1579 = vsub.f32 %v1547, %v1557
    %v1580 = vsub.f32 %v1548, %v1560
    %v1581 = vsub.f32 %v1549, %v1563
    %v1582 = vsub.f32 %v1550, %v1566
    %v1583 = vsub.f32 %v1551, %v1569
    %v1584 = vsub.f32 %v1552, %v1572
    %v1585 = vsub.f32 %v1553, %v1575
    %v1586 = vsub.f32 %v1554, %v1578
    %v1587 = vmul.f32 %v1579, 1.442695
    %v1588 = vpow.pop %v1587
    %v1589 = vmul.f32 %v1580, 1.442695
    %v1590 = vpow.pop %v1589
    %v1591 = vmul.f32 %v1581, 1.442695
    %v1592 = vpow.pop %v1591
    %v1593 = vmul.f32 %v1582, 1.442695
    %v1594 = vpow.pop %v1593
    %v1595 = vmul.f32 %v1583, 1.442695
    %v1596 = vpow.pop %v1595
    %v1597 = vmul.f32 %v1584, 1.442695
    %v1598 = vpow.pop %v1597
    %v1599 = vmul.f32 %v1585, 1.442695
    %v1600 = vpow.pop %v1599
    %v1601 = vmul.f32 %v1586, 1.442695
    %v1602 = vpow.pop %v1601
    %v1603 = vsel %vm498, %v1588, 0.0
    %1604 = vadd.xlane.f32.xlu0 %v1603
    %v1605 = vpop.xlane.xlu0 %1604
    %v1606 = vsel %vm498, %v1590, 0.0
    %1607 = vadd.xlane.f32.xlu0 %v1606
    %v1608 = vpop.xlane.xlu0 %1607
    %v1609 = vsel %vm498, %v1592, 0.0
    %1610 = vadd.xlane.f32.xlu0 %v1609
    %v1611 = vpop.xlane.xlu0 %1610
    %v1612 = vsel %vm498, %v1594, 0.0
    %1613 = vadd.xlane.f32.xlu0 %v1612
    %v1614 = vpop.xlane.xlu0 %1613
    %v1615 = vsel %vm498, %v1596, 0.0
    %1616 = vadd.xlane.f32.xlu0 %v1615
    %v1617 = vpop.xlane.xlu0 %1616
    %v1618 = vsel %vm498, %v1598, 0.0
    %1619 = vadd.xlane.f32.xlu0 %v1618
    %v1620 = vpop.xlane.xlu0 %1619
    %v1621 = vsel %vm498, %v1600, 0.0
    %1622 = vadd.xlane.f32.xlu0 %v1621
    %v1623 = vpop.xlane.xlu0 %1622
    %v1624 = vsel %vm498, %v1602, 0.0
    %1625 = vadd.xlane.f32.xlu0 %v1624
    %v1626 = vpop.xlane.xlu0 %1625
    %v1627 = vrcp.pop %v1605
    %v1628 = vmul.f32 %v1588, %v1627
    %v1629 = vrcp.pop %v1608
    %v1630 = vmul.f32 %v1590, %v1629
    %v1631 = vrcp.pop %v1611
    %v1632 = vmul.f32 %v1592, %v1631
    %v1633 = vrcp.pop %v1614
    %v1634 = vmul.f32 %v1594, %v1633
    %v1635 = vrcp.pop %v1617
    %v1636 = vmul.f32 %v1596, %v1635
    %v1637 = vrcp.pop %v1620
    %v1638 = vmul.f32 %v1598, %v1637
    %v1639 = vrcp.pop %v1623
    %v1640 = vmul.f32 %v1600, %v1639
    %v1641 = vrcp.pop %v1626
    %v1642 = vmul.f32 %v1602, %v1641
    %v1644 = vsel %vm498, %v1628, 0
    %v1647 = vsel %vm498, %v1630, 0
    %v1650 = vsel %vm498, %v1632, 0
    %v1653 = vsel %vm498, %v1634, 0
    %v1656 = vsel %vm498, %v1636, 0
    %v1659 = vsel %vm498, %v1638, 0
    %v1662 = vsel %vm498, %v1640, 0
    %v1665 = vsel %vm498, %v1642, 0
    %1667 = vmatprep.subr.mxu0 0.0
    %1668 = vmatpush1.msra.mxu0 %v184
    %1669 = vmatprep.subr.mxu0 0.0
    %1670 = vmatpush1.msra.mxu0 %v189
    %1671 = vmatprep.subr.mxu0 0.0
    %1672 = vmatpush1.msra.mxu0 %v194
    %1673 = vmatprep.subr.mxu0 0.0
    %1674 = vmatpush1.msra.mxu0 %v199
    %1675 = vmatprep.subr.mxu0 0.0
    %1676 = vmatpush1.msra.mxu0 %v204
    %1677 = vmatprep.subr.mxu0 0.0
    %1678 = vmatpush1.msra.mxu0 %v209
    %1679 = vmatprep.subr.mxu0 0.0
    %1680 = vmatpush1.msra.mxu0 %v214
    %1681 = vmatprep.subr.mxu0 0.0
    %1682 = vmatpush1.msra.mxu0 %v219
    %1683 = vmatprep.subr.mxu0 0.0
    %1684 = vmatpush1.msra.mxu0 0.0
    %1685 = vmatprep.subr.mxu0 0.0
    %1686 = vmatpush1.msra.mxu0 0.0
    %1687 = vmatprep.subr.mxu0 0.0
    %1688 = vmatpush1.msra.mxu0 0.0
    %1689 = vmatprep.subr.mxu0 0.0
    %1690 = vmatpush1.msra.mxu0 0.0
    %1691 = vmatprep.subr.mxu0 0.0
    %1692 = vmatpush1.msra.mxu0 0.0
    %1693 = vmatprep.subr.mxu0 0.0
    %1694 = vmatpush1.msra.mxu0 0.0
    %1695 = vmatprep.subr.mxu0 0.0
    %1696 = vmatpush1.msra.mxu0 0.0
    %1697 = vmatprep.subr.mxu0 0.0
    %1698 = vmatpush1.msra.mxu0 0.0
    %1699 = vmatprep.subr.mxu0 0.0
    %1700 = vmatpush1.msra.mxu0 0.0
    %1701 = vmatprep.subr.mxu0 0.0
    %1702 = vmatpush1.msra.mxu0 0.0
    %1703 = vmatprep.subr.mxu0 0.0
    %1704 = vmatpush1.msra.mxu0 0.0
    %1705 = vmatprep.subr.mxu0 0.0
    %1706 = vmatpush1.msra.mxu0 0.0
    %1707 = vmatprep.subr.mxu0 0.0
    %1708 = vmatpush1.msra.mxu0 0.0
    %1709 = vmatprep.subr.mxu0 0.0
    %1710 = vmatpush1.msra.mxu0 0.0
    %1711 = vmatprep.subr.mxu0 0.0
    %1712 = vmatpush1.msra.mxu0 0.0
    %1713 = vmatprep.subr.mxu0 0.0
    %1714 = vmatpush1.msra.mxu0 0.0
    %1715 = vmatprep.subr.mxu0 0.0
    %1716 = vmatpush1.msra.mxu0 0.0
    %1717 = vmatprep.subr.mxu0 0.0
    %1718 = vmatpush1.msra.mxu0 0.0
    %1719 = vmatprep.subr.mxu0 0.0
    %1720 = vmatpush1.msra.mxu0 0.0
    %1721 = vmatprep.subr.mxu0 0.0
    %1722 = vmatpush1.msra.mxu0 0.0
    %1723 = vmatprep.subr.mxu0 0.0
    %1724 = vmatpush1.msra.mxu0 0.0
    %1725 = vmatprep.subr.mxu0 0.0
    %1726 = vmatpush1.msra.mxu0 0.0
    %1727 = vmatprep.subr.mxu0 0.0
    %1728 = vmatpush1.msra.mxu0 0.0
    %1729 = vmatprep.subr.mxu0 0.0
    %1730 = vmatpush1.msra.mxu0 0.0
    %1731 = vmatprep.mubr.f32.mxu0 0.0
    %1732 = vmatmul.mubr.f32.gmra.mrb[0].mxu0 %v1644
    %v1733 = vpop.f32.mrb[0].mxu0
    %v1734 = vadd.f32 0.0, %v1733
    %v1735 = vpop.f32.mrb[0].mxu0
    %1736 = vmatprep.mubr.f32.mxu0 0.0
    %1737 = vmatmul.mubr.f32.gmra.mrb[0].mxu0 %v1647
    %v1738 = vpop.f32.mrb[0].mxu0
    %v1739 = vadd.f32 0.0, %v1738
    %v1740 = vpop.f32.mrb[0].mxu0
    %1741 = vmatprep.mubr.f32.mxu0 0.0
    %1742 = vmatmul.mubr.f32.gmra.mrb[0].mxu0 %v1650
    %v1743 = vpop.f32.mrb[0].mxu0
    %v1744 = vadd.f32 0.0, %v1743
    %v1745 = vpop.f32.mrb[0].mxu0
    %1746 = vmatprep.mubr.f32.mxu0 0.0
    %1747 = vmatmul.mubr.f32.gmra.mrb[0].mxu0 %v1653
    %v1748 = vpop.f32.mrb[0].mxu0
    %v1749 = vadd.f32 0.0, %v1748
    %v1750 = vpop.f32.mrb[0].mxu0
    %1751 = vmatprep.mubr.f32.mxu0 0.0
    %1752 = vmatmul.mubr.f32.gmra.mrb[0].mxu0 %v1656
    %v1753 = vpop.f32.mrb[0].mxu0
    %v1754 = vadd.f32 0.0, %v1753
    %v1755 = vpop.f32.mrb[0].mxu0
    %1756 = vmatprep.mubr.f32.mxu0 0.0
    %1757 = vmatmul.mubr.f32.gmra.mrb[0].mxu0 %v1659
    %v1758 = vpop.f32.mrb[0].mxu0
    %v1759 = vadd.f32 0.0, %v1758
    %v1760 = vpop.f32.mrb[0].mxu0
    %1761 = vmatprep.mubr.f32.mxu0 0.0
    %1762 = vmatmul.mubr.f32.gmra.mrb[0].mxu0 %v1662
    %v1763 = vpop.f32.mrb[0].mxu0
    %v1764 = vadd.f32 0.0, %v1763
    %v1765 = vpop.f32.mrb[0].mxu0
    %1766 = vmatprep.mubr.f32.mxu0 0.0
    %1767 = vmatmul.mubr.f32.gmra.mrb[0].mxu0 %v1665
    %v1768 = vpop.f32.mrb[0].mxu0
    %v1769 = vadd.f32 0.0, %v1768
    %v1770 = vpop.f32.mrb[0].mxu0
    %1771 = vdwg.mxu0
    %vm1772 = vcmp.gt.f32.partialorder %v1734, 0.0
    %vm1773 = vcmp.gt.f32.partialorder %v1739, 0.0
    %vm1774 = vcmp.gt.f32.partialorder %v1744, 0.0
    %vm1775 = vcmp.gt.f32.partialorder %v1749, 0.0
    %vm1776 = vcmp.gt.f32.partialorder %v1754, 0.0
    %vm1777 = vcmp.gt.f32.partialorder %v1759, 0.0
    %vm1778 = vcmp.gt.f32.partialorder %v1764, 0.0
    %vm1779 = vcmp.gt.f32.partialorder %v1769, 0.0
    %v1780 = vmul.f32 %v1734, 1.442695
    %v1781 = vpow.pop %v1780
    %v1782 = vmul.f32 %v1739, 1.442695
    %v1783 = vpow.pop %v1782
    %v1784 = vmul.f32 %v1744, 1.442695
    %v1785 = vpow.pop %v1784
    %v1786 = vmul.f32 %v1749, 1.442695
    %v1787 = vpow.pop %v1786
    %v1788 = vmul.f32 %v1754, 1.442695
    %v1789 = vpow.pop %v1788
    %v1790 = vmul.f32 %v1759, 1.442695
    %v1791 = vpow.pop %v1790
    %v1792 = vmul.f32 %v1764, 1.442695
    %v1793 = vpow.pop %v1792
    %v1794 = vmul.f32 %v1769, 1.442695
    %v1795 = vpow.pop %v1794
    %v1796 = vsub.f32 %v1781, 1.0
    %v1797 = vsub.f32 %v1783, 1.0
    %v1798 = vsub.f32 %v1785, 1.0
    %v1799 = vsub.f32 %v1787, 1.0
    %v1800 = vsub.f32 %v1789, 1.0
    %v1801 = vsub.f32 %v1791, 1.0
    %v1802 = vsub.f32 %v1793, 1.0
    %v1803 = vsub.f32 %v1795, 1.0
    %v1804 = vsel %vm1772, %v1734, %v1796
    %v1805 = vsel %vm1773, %v1739, %v1797
    %v1806 = vsel %vm1774, %v1744, %v1798
    %v1807 = vsel %vm1775, %v1749, %v1799
    %v1808 = vsel %vm1776, %v1754, %v1800
    %v1809 = vsel %vm1777, %v1759, %v1801
    %v1810 = vsel %vm1778, %v1764, %v1802
    %v1811 = vsel %vm1779, %v1769, %v1803
    %vm1812 = vcmp.ge.s32.totalorder %v87, 96
    %vm1813 = vcmp.lt.s32.totalorder %v87, 128
    %vm1814 = vmand %vm1812, %vm1813
    %v1815 = vsel %vm1814, %v1804, 0.0
    %v1816 = vsel %vm1814, %v1805, 0.0
    %v1817 = vsel %vm1814, %v1806, 0.0
    %v1818 = vsel %vm1814, %v1807, 0.0
    %v1819 = vsel %vm1814, %v1808, 0.0
    %v1820 = vsel %vm1814, %v1809, 0.0
    %v1821 = vsel %vm1814, %v1810, 0.0
    %v1822 = vsel %vm1814, %v1811, 0.0
    %v1823 = vadd.f32 %v1471, %v1815
    %v1824 = vadd.f32 %v1472, %v1816
    %v1825 = vadd.f32 %v1473, %v1817
    %v1826 = vadd.f32 %v1474, %v1818
    %v1827 = vadd.f32 %v1475, %v1819
    %v1828 = vadd.f32 %v1476, %v1820
    %v1829 = vadd.f32 %v1477, %v1821
    %v1830 = vadd.f32 %v1478, %v1822
    %v1831 = vld [vmem:[%s7] sm:$0xff]
    %v1832 = vld [vmem:[%s7 + $0x8] sm:$0xff]
    %v1833 = vld [vmem:[%s7 + $0x10] sm:$0xff]
    %v1834 = vld [vmem:[%s7 + $0x18] sm:$0xff]
    %v1835 = vld [vmem:[%s7 + $0x20] sm:$0xff]
    %v1836 = vld [vmem:[%s7 + $0x28] sm:$0xff]
    %v1837 = vld [vmem:[%s7 + $0x30] sm:$0xff]
    %v1838 = vld [vmem:[%s7 + $0x38] sm:$0xff]
    %v1839 = vld [vmem:[%s7 + $0x40] sm:$0xff]
    %v1840 = vld [vmem:[%s7 + $0x48] sm:$0xff]
    %v1841 = vld [vmem:[%s7 + $0x50] sm:$0xff]
    %v1842 = vld [vmem:[%s7 + $0x58] sm:$0xff]
    %v1843 = vld [vmem:[%s7 + $0x60] sm:$0xff]
    %v1844 = vld [vmem:[%s7 + $0x68] sm:$0xff]
    %v1845 = vld [vmem:[%s7 + $0x70] sm:$0xff]
    %v1846 = vld [vmem:[%s7 + $0x78] sm:$0xff]
    %1847 = vmatprep.subr.mxu0 0.0
    %1848 = vmatpush1.msra.mxu0 %v1831
    %1849 = vmatprep.subr.mxu0 0.0
    %1850 = vmatpush1.msra.mxu0 %v1832
    %1851 = vmatprep.subr.mxu0 0.0
    %1852 = vmatpush1.msra.mxu0 %v1833
    %1853 = vmatprep.subr.mxu0 0.0
    %1854 = vmatpush1.msra.mxu0 %v1834
    %1855 = vmatprep.subr.mxu0 0.0
    %1856 = vmatpush1.msra.mxu0 %v1835
    %1857 = vmatprep.subr.mxu0 0.0
    %1858 = vmatpush1.msra.mxu0 %v1836
    %1859 = vmatprep.subr.mxu0 0.0
    %1860 = vmatpush1.msra.mxu0 %v1837
    %1861 = vmatprep.subr.mxu0 0.0
    %1862 = vmatpush1.msra.mxu0 %v1838
    %1863 = vmatprep.subr.mxu0 0.0
    %1864 = vmatpush1.msra.mxu0 %v1839
    %1865 = vmatprep.subr.mxu0 0.0
    %1866 = vmatpush1.msra.mxu0 %v1840
    %1867 = vmatprep.subr.mxu0 0.0
    %1868 = vmatpush1.msra.mxu0 %v1841
    %1869 = vmatprep.subr.mxu0 0.0
    %1870 = vmatpush1.msra.mxu0 %v1842
    %1871 = vmatprep.subr.mxu0 0.0
    %1872 = vmatpush1.msra.mxu0 %v1843
    %1873 = vmatprep.subr.mxu0 0.0
    %1874 = vmatpush1.msra.mxu0 %v1844
    %1875 = vmatprep.subr.mxu0 0.0
    %1876 = vmatpush1.msra.mxu0 %v1845
    %1877 = vmatprep.subr.mxu0 0.0
    %1878 = vmatpush1.msra.mxu0 %v1846
    %1879 = vmatprep.subr.mxu0 0.0
    %1880 = vmatpush1.msra.mxu0 0.0
    %1881 = vmatprep.subr.mxu0 0.0
    %1882 = vmatpush1.msra.mxu0 0.0
    %1883 = vmatprep.subr.mxu0 0.0
    %1884 = vmatpush1.msra.mxu0 0.0
    %1885 = vmatprep.subr.mxu0 0.0
    %1886 = vmatpush1.msra.mxu0 0.0
    %1887 = vmatprep.subr.mxu0 0.0
    %1888 = vmatpush1.msra.mxu0 0.0
    %1889 = vmatprep.subr.mxu0 0.0
    %1890 = vmatpush1.msra.mxu0 0.0
    %1891 = vmatprep.subr.mxu0 0.0
    %1892 = vmatpush1.msra.mxu0 0.0
    %1893 = vmatprep.subr.mxu0 0.0
    %1894 = vmatpush1.msra.mxu0 0.0
    %1895 = vmatprep.subr.mxu0 0.0
    %1896 = vmatpush1.msra.mxu0 0.0
    %1897 = vmatprep.subr.mxu0 0.0
    %1898 = vmatpush1.msra.mxu0 0.0
    %1899 = vmatprep.subr.mxu0 0.0
    %1900 = vmatpush1.msra.mxu0 0.0
    %1901 = vmatprep.subr.mxu0 0.0
    %1902 = vmatpush1.msra.mxu0 0.0
    %1903 = vmatprep.subr.mxu0 0.0
    %1904 = vmatpush1.msra.mxu0 0.0
    %1905 = vmatprep.subr.mxu0 0.0
    %1906 = vmatpush1.msra.mxu0 0.0
    %1907 = vmatprep.subr.mxu0 0.0
    %1908 = vmatpush1.msra.mxu0 0.0
    %1909 = vmatprep.subr.mxu0 0.0
    %1910 = vmatpush1.msra.mxu0 0.0
    %1911 = vmatprep.mubr.f32.mxu0 0.0
    %1912 = vmatmul.mubr.f32.gmra.mrb[0].mxu0 %v1823
    %v1913 = vpop.f32.mrb[0].mxu0
    %v1914 = vadd.f32 0.0, %v1913
    %v1915 = vpop.f32.mrb[0].mxu0
    %1916 = vmatprep.mubr.f32.mxu0 0.0
    %1917 = vmatmul.mubr.f32.gmra.mrb[0].mxu0 %v1824
    %v1918 = vpop.f32.mrb[0].mxu0
    %v1919 = vadd.f32 0.0, %v1918
    %v1920 = vpop.f32.mrb[0].mxu0
    %1921 = vmatprep.mubr.f32.mxu0 0.0
    %1922 = vmatmul.mubr.f32.gmra.mrb[0].mxu0 %v1825
    %v1923 = vpop.f32.mrb[0].mxu0
    %v1924 = vadd.f32 0.0, %v1923
    %v1925 = vpop.f32.mrb[0].mxu0
    %1926 = vmatprep.mubr.f32.mxu0 0.0
    %1927 = vmatmul.mubr.f32.gmra.mrb[0].mxu0 %v1826
    %v1928 = vpop.f32.mrb[0].mxu0
    %v1929 = vadd.f32 0.0, %v1928
    %v1930 = vpop.f32.mrb[0].mxu0
    %1931 = vmatprep.mubr.f32.mxu0 0.0
    %1932 = vmatmul.mubr.f32.gmra.mrb[0].mxu0 %v1827
    %v1933 = vpop.f32.mrb[0].mxu0
    %v1934 = vadd.f32 0.0, %v1933
    %v1935 = vpop.f32.mrb[0].mxu0
    %1936 = vmatprep.mubr.f32.mxu0 0.0
    %1937 = vmatmul.mubr.f32.gmra.mrb[0].mxu0 %v1828
    %v1938 = vpop.f32.mrb[0].mxu0
    %v1939 = vadd.f32 0.0, %v1938
    %v1940 = vpop.f32.mrb[0].mxu0
    %1941 = vmatprep.mubr.f32.mxu0 0.0
    %1942 = vmatmul.mubr.f32.gmra.mrb[0].mxu0 %v1829
    %v1943 = vpop.f32.mrb[0].mxu0
    %v1944 = vadd.f32 0.0, %v1943
    %v1945 = vpop.f32.mrb[0].mxu0
    %1946 = vmatprep.mubr.f32.mxu0 0.0
    %1947 = vmatmul.mubr.f32.gmra.mrb[0].mxu0 %v1830
    %v1948 = vpop.f32.mrb[0].mxu0
    %v1949 = vadd.f32 0.0, %v1948
    %v1950 = vpop.f32.mrb[0].mxu0
    %1951 = vdwg.mxu0
    %v1952 = vld [vmem:[%s8] sm:$0xff]
    %v1953 = vld [vmem:[%s8 + $0x8] sm:$0xff]
    %v1954 = vld [vmem:[%s8 + $0x10] sm:$0xff]
    %v1955 = vld [vmem:[%s8 + $0x18] sm:$0xff]
    %v1957 = vsel %vm92, %v1914, 0
    %v1960 = vsel %vm92, %v1919, 0
    %v1963 = vsel %vm92, %v1924, 0
    %v1966 = vsel %vm92, %v1929, 0
    %v1969 = vsel %vm92, %v1934, 0
    %v1972 = vsel %vm92, %v1939, 0
    %v1975 = vsel %vm92, %v1944, 0
    %v1978 = vsel %vm92, %v1949, 0
    %1980 = vmatprep.subr.mxu0 0.0
    %1981 = vmatpush1.msra.mxu0 %v1952
    %1982 = vmatprep.subr.mxu0 0.0
    %1983 = vmatpush1.msra.mxu0 %v1953
    %1984 = vmatprep.subr.mxu0 0.0
    %1985 = vmatpush1.msra.mxu0 %v1954
    %1986 = vmatprep.subr.mxu0 0.0
    %1987 = vmatpush1.msra.mxu0 %v1955
    %1988 = vmatprep.subr.mxu0 0.0
    %1989 = vmatpush1.msra.mxu0 0.0
    %1990 = vmatprep.subr.mxu0 0.0
    %1991 = vmatpush1.msra.mxu0 0.0
    %1992 = vmatprep.subr.mxu0 0.0
    %1993 = vmatpush1.msra.mxu0 0.0
    %1994 = vmatprep.subr.mxu0 0.0
    %1995 = vmatpush1.msra.mxu0 0.0
    %1996 = vmatprep.subr.mxu0 0.0
    %1997 = vmatpush1.msra.mxu0 0.0
    %1998 = vmatprep.subr.mxu0 0.0
    %1999 = vmatpush1.msra.mxu0 0.0
    %2000 = vmatprep.subr.mxu0 0.0
    %2001 = vmatpush1.msra.mxu0 0.0
    %2002 = vmatprep.subr.mxu0 0.0
    %2003 = vmatpush1.msra.mxu0 0.0
    %2004 = vmatprep.subr.mxu0 0.0
    %2005 = vmatpush1.msra.mxu0 0.0
    %2006 = vmatprep.subr.mxu0 0.0
    %2007 = vmatpush1.msra.mxu0 0.0
    %2008 = vmatprep.subr.mxu0 0.0
    %2009 = vmatpush1.msra.mxu0 0.0
    %2010 = vmatprep.subr.mxu0 0.0
    %2011 = vmatpush1.msra.mxu0 0.0
    %2012 = vmatprep.subr.mxu0 0.0
    %2013 = vmatpush1.msra.mxu0 0.0
    %2014 = vmatprep.subr.mxu0 0.0
    %2015 = vmatpush1.msra.mxu0 0.0
    %2016 = vmatprep.subr.mxu0 0.0
    %2017 = vmatpush1.msra.mxu0 0.0
    %2018 = vmatprep.subr.mxu0 0.0
    %2019 = vmatpush1.msra.mxu0 0.0
    %2020 = vmatprep.subr.mxu0 0.0
    %2021 = vmatpush1.msra.mxu0 0.0
    %2022 = vmatprep.subr.mxu0 0.0
    %2023 = vmatpush1.msra.mxu0 0.0
    %2024 = vmatprep.subr.mxu0 0.0
    %2025 = vmatpush1.msra.mxu0 0.0
    %2026 = vmatprep.subr.mxu0 0.0
    %2027 = vmatpush1.msra.mxu0 0.0
    %2028 = vmatprep.subr.mxu0 0.0
    %2029 = vmatpush1.msra.mxu0 0.0
    %2030 = vmatprep.subr.mxu0 0.0
    %2031 = vmatpush1.msra.mxu0 0.0
    %2032 = vmatprep.subr.mxu0 0.0
    %2033 = vmatpush1.msra.mxu0 0.0
    %2034 = vmatprep.subr.mxu0 0.0
    %2035 = vmatpush1.msra.mxu0 0.0
    %2036 = vmatprep.subr.mxu0 0.0
    %2037 = vmatpush1.msra.mxu0 0.0
    %2038 = vmatprep.subr.mxu0 0.0
    %2039 = vmatpush1.msra.mxu0 0.0
    %2040 = vmatprep.subr.mxu0 0.0
    %2041 = vmatpush1.msra.mxu0 0.0
    %2042 = vmatprep.subr.mxu0 0.0
    %2043 = vmatpush1.msra.mxu0 0.0
    %2044 = vmatprep.mubr.f32.mxu0 0.0
    %2045 = vmatmul.mubr.f32.gmra.mrb[0].mxu0 %v1957
    %v2046 = vpop.f32.mrb[0].mxu0
    %v2047 = vadd.f32 0.0, %v2046
    %v2048 = vpop.f32.mrb[0].mxu0
    %2049 = vmatprep.mubr.f32.mxu0 0.0
    %2050 = vmatmul.mubr.f32.gmra.mrb[0].mxu0 %v1960
    %v2051 = vpop.f32.mrb[0].mxu0
    %v2052 = vadd.f32 0.0, %v2051
    %v2053 = vpop.f32.mrb[0].mxu0
    %2054 = vmatprep.mubr.f32.mxu0 0.0
    %2055 = vmatmul.mubr.f32.gmra.mrb[0].mxu0 %v1963
    %v2056 = vpop.f32.mrb[0].mxu0
    %v2057 = vadd.f32 0.0, %v2056
    %v2058 = vpop.f32.mrb[0].mxu0
    %2059 = vmatprep.mubr.f32.mxu0 0.0
    %2060 = vmatmul.mubr.f32.gmra.mrb[0].mxu0 %v1966
    %v2061 = vpop.f32.mrb[0].mxu0
    %v2062 = vadd.f32 0.0, %v2061
    %v2063 = vpop.f32.mrb[0].mxu0
    %2064 = vmatprep.mubr.f32.mxu0 0.0
    %2065 = vmatmul.mubr.f32.gmra.mrb[0].mxu0 %v1969
    %v2066 = vpop.f32.mrb[0].mxu0
    %v2067 = vadd.f32 0.0, %v2066
    %v2068 = vpop.f32.mrb[0].mxu0
    %2069 = vmatprep.mubr.f32.mxu0 0.0
    %2070 = vmatmul.mubr.f32.gmra.mrb[0].mxu0 %v1972
    %v2071 = vpop.f32.mrb[0].mxu0
    %v2072 = vadd.f32 0.0, %v2071
    %v2073 = vpop.f32.mrb[0].mxu0
    %2074 = vmatprep.mubr.f32.mxu0 0.0
    %2075 = vmatmul.mubr.f32.gmra.mrb[0].mxu0 %v1975
    %v2076 = vpop.f32.mrb[0].mxu0
    %v2077 = vadd.f32 0.0, %v2076
    %v2078 = vpop.f32.mrb[0].mxu0
    %2079 = vmatprep.mubr.f32.mxu0 0.0
    %2080 = vmatmul.mubr.f32.gmra.mrb[0].mxu0 %v1978
    %v2081 = vpop.f32.mrb[0].mxu0
    %v2082 = vadd.f32 0.0, %v2081
    %v2083 = vpop.f32.mrb[0].mxu0
    %2084 = vdwg.mxu0
    %v2085 = vld [vmem:[%s9] sm:$0x1]
    %v2087 = vsel %vm92, %v2085, 0
    %2089 = vmatprep.subr.mxu0 0.0
    %2090 = vmatpush1.xpose.msra.mxu0 %v1957
    %2091 = vmatprep.subr.mxu0 0.0
    %2092 = vmatpush1.xpose.msra.mxu0 %v1960
    %2093 = vmatprep.subr.mxu0 0.0
    %2094 = vmatpush1.xpose.msra.mxu0 %v1963
    %2095 = vmatprep.subr.mxu0 0.0
    %2096 = vmatpush1.xpose.msra.mxu0 %v1966
    %2097 = vmatprep.subr.mxu0 0.0
    %2098 = vmatpush1.xpose.msra.mxu0 %v1969
    %2099 = vmatprep.subr.mxu0 0.0
    %2100 = vmatpush1.xpose.msra.mxu0 %v1972
    %2101 = vmatprep.subr.mxu0 0.0
    %2102 = vmatpush1.xpose.msra.mxu0 %v1975
    %2103 = vmatprep.subr.mxu0 0.0
    %2104 = vmatpush1.xpose.msra.mxu0 %v1978
    %2105 = vmatprep.subr.mxu0 0.0
    %2106 = vmatpush1.xpose.msra.mxu0 0.0
    %2107 = vmatprep.subr.mxu0 0.0
    %2108 = vmatpush1.xpose.msra.mxu0 0.0
    %2109 = vmatprep.subr.mxu0 0.0
    %2110 = vmatpush1.xpose.msra.mxu0 0.0
    %2111 = vmatprep.subr.mxu0 0.0
    %2112 = vmatpush1.xpose.msra.mxu0 0.0
    %2113 = vmatprep.subr.mxu0 0.0
    %2114 = vmatpush1.xpose.msra.mxu0 0.0
    %2115 = vmatprep.subr.mxu0 0.0
    %2116 = vmatpush1.xpose.msra.mxu0 0.0
    %2117 = vmatprep.subr.mxu0 0.0
    %2118 = vmatpush1.xpose.msra.mxu0 0.0
    %2119 = vmatprep.subr.mxu0 0.0
    %2120 = vmatpush1.xpose.msra.mxu0 0.0
    %2121 = vmatprep.subr.mxu0 0.0
    %2122 = vmatpush1.xpose.msra.mxu0 0.0
    %2123 = vmatprep.subr.mxu0 0.0
    %2124 = vmatpush1.xpose.msra.mxu0 0.0
    %2125 = vmatprep.subr.mxu0 0.0
    %2126 = vmatpush1.xpose.msra.mxu0 0.0
    %2127 = vmatprep.subr.mxu0 0.0
    %2128 = vmatpush1.xpose.msra.mxu0 0.0
    %2129 = vmatprep.subr.mxu0 0.0
    %2130 = vmatpush1.xpose.msra.mxu0 0.0
    %2131 = vmatprep.subr.mxu0 0.0
    %2132 = vmatpush1.xpose.msra.mxu0 0.0
    %2133 = vmatprep.subr.mxu0 0.0
    %2134 = vmatpush1.xpose.msra.mxu0 0.0
    %2135 = vmatprep.subr.mxu0 0.0
    %2136 = vmatpush1.xpose.msra.mxu0 0.0
    %2137 = vmatprep.subr.mxu0 0.0
    %2138 = vmatpush1.xpose.msra.mxu0 0.0
    %2139 = vmatprep.subr.mxu0 0.0
    %2140 = vmatpush1.xpose.msra.mxu0 0.0
    %2141 = vmatprep.subr.mxu0 0.0
    %2142 = vmatpush1.xpose.msra.mxu0 0.0
    %2143 = vmatprep.subr.mxu0 0.0
    %2144 = vmatpush1.xpose.msra.mxu0 0.0
    %2145 = vmatprep.subr.mxu0 0.0
    %2146 = vmatpush1.xpose.msra.mxu0 0.0
    %2147 = vmatprep.subr.mxu0 0.0
    %2148 = vmatpush1.xpose.msra.mxu0 0.0
    %2149 = vmatprep.subr.mxu0 0.0
    %2150 = vmatpush1.xpose.msra.mxu0 0.0
    %2151 = vmatprep.subr.mxu0 0.0
    %2152 = vmatpush1.xpose.msra.mxu0 0.0
    %2153 = vmatprep.mubr.f32.mxu0 0.0
    %2154 = vmatmul.mubr.f32.gmra.mrb[0].mxu0 %v2087
    %v2155 = vpop.f32.mrb[0].mxu0
    %v2156 = vadd.f32 0.0, %v2155
    %v2157 = vpop.f32.mrb[0].mxu0
    %2158 = vdwg.mxu0
    %2160 = vset.pattern.permute.xlu0 0
    %2161 = vperm.xlu0 %2160, %v2047
    %v2162 = vpop.permute.xlu0 %2161
    %2165 = vset.pattern.permute.xlu0 0
    %2166 = vperm.xlu0 %2165, %v2052
    %v2167 = vpop.permute.xlu0 %2166
    %2170 = vset.pattern.permute.xlu0 0
    %2171 = vperm.xlu0 %2170, %v2057
    %v2172 = vpop.permute.xlu0 %2171
    %2175 = vset.pattern.permute.xlu0 0
    %2176 = vperm.xlu0 %2175, %v2062
    %v2177 = vpop.permute.xlu0 %2176
    %2180 = vset.pattern.permute.xlu0 0
    %2181 = vperm.xlu0 %2180, %v2067
    %v2182 = vpop.permute.xlu0 %2181
    %2185 = vset.pattern.permute.xlu0 0
    %2186 = vperm.xlu0 %2185, %v2072
    %v2187 = vpop.permute.xlu0 %2186
    %2190 = vset.pattern.permute.xlu0 0
    %2191 = vperm.xlu0 %2190, %v2077
    %v2192 = vpop.permute.xlu0 %2191
    %2195 = vset.pattern.permute.xlu0 0
    %2196 = vperm.xlu0 %2195, %v2082
    %v2197 = vpop.permute.xlu0 %2196
    %v2199 = vlaneseq
    %v2200 = vshrl.u32 %v2199, 7
    %v2201 = vsub.s32 0, %v2200
    %v2202 = vrot.slane %v2156, %v2201
    %v2203 = vadd.f32 %v2162, %v2202
    %v2204 = vadd.f32 %v2167, %v2202
    %v2205 = vadd.f32 %v2172, %v2202
    %v2206 = vadd.f32 %v2177, %v2202
    %v2207 = vadd.f32 %v2182, %v2202
    %v2208 = vadd.f32 %v2187, %v2202
    %v2209 = vadd.f32 %v2192, %v2202
    %v2210 = vadd.f32 %v2197, %v2202
    %vm2211 = vcmp.gt.f32.partialorder %v2203, 0.0
    %vm2212 = vcmp.gt.f32.partialorder %v2204, 0.0
    %vm2213 = vcmp.gt.f32.partialorder %v2205, 0.0
    %vm2214 = vcmp.gt.f32.partialorder %v2206, 0.0
    %vm2215 = vcmp.gt.f32.partialorder %v2207, 0.0
    %vm2216 = vcmp.gt.f32.partialorder %v2208, 0.0
    %vm2217 = vcmp.gt.f32.partialorder %v2209, 0.0
    %vm2218 = vcmp.gt.f32.partialorder %v2210, 0.0
    %v2219 = vmul.f32 %v2203, 0.2
    %v2220 = vmul.f32 %v2204, 0.2
    %v2221 = vmul.f32 %v2205, 0.2
    %v2222 = vmul.f32 %v2206, 0.2
    %v2223 = vmul.f32 %v2207, 0.2
    %v2224 = vmul.f32 %v2208, 0.2
    %v2225 = vmul.f32 %v2209, 0.2
    %v2226 = vmul.f32 %v2210, 0.2
    %v2227 = vsel %vm2211, %v2203, %v2219
    %v2228 = vsel %vm2212, %v2204, %v2220
    %v2229 = vsel %vm2213, %v2205, %v2221
    %v2230 = vsel %vm2214, %v2206, %v2222
    %v2231 = vsel %vm2215, %v2207, %v2223
    %v2232 = vsel %vm2216, %v2208, %v2224
    %v2233 = vsel %vm2217, %v2209, %v2225
    %v2234 = vsel %vm2218, %v2210, %v2226
    %v2235 = vsel %vm78, %v2227, -9e+15
    %v2236 = vsel %vm79, %v2228, -9e+15
    %v2237 = vsel %vm80, %v2229, -9e+15
    %v2238 = vsel %vm81, %v2230, -9e+15
    %v2239 = vsel %vm82, %v2231, -9e+15
    %v2240 = vsel %vm83, %v2232, -9e+15
    %v2241 = vsel %vm84, %v2233, -9e+15
    %v2242 = vsel %vm85, %v2234, -9e+15
    %v2243 = vsel %vm498, %v2235, -inf
    %2244 = vmax.xlane.f32.xlu0 %v2243
    %v2245 = vpop.xlane.xlu0 %2244
    %v2246 = vsel %vm498, %v2236, -inf
    %2247 = vmax.xlane.f32.xlu0 %v2246
    %v2248 = vpop.xlane.xlu0 %2247
    %v2249 = vsel %vm498, %v2237, -inf
    %2250 = vmax.xlane.f32.xlu0 %v2249
    %v2251 = vpop.xlane.xlu0 %2250
    %v2252 = vsel %vm498, %v2238, -inf
    %2253 = vmax.xlane.f32.xlu0 %v2252
    %v2254 = vpop.xlane.xlu0 %2253
    %v2255 = vsel %vm498, %v2239, -inf
    %2256 = vmax.xlane.f32.xlu0 %v2255
    %v2257 = vpop.xlane.xlu0 %2256
    %v2258 = vsel %vm498, %v2240, -inf
    %2259 = vmax.xlane.f32.xlu0 %v2258
    %v2260 = vpop.xlane.xlu0 %2259
    %v2261 = vsel %vm498, %v2241, -inf
    %2262 = vmax.xlane.f32.xlu0 %v2261
    %v2263 = vpop.xlane.xlu0 %2262
    %v2264 = vsel %vm498, %v2242, -inf
    %2265 = vmax.xlane.f32.xlu0 %v2264
    %v2266 = vpop.xlane.xlu0 %2265
    %v2267 = vsub.f32 %v2235, %v2245
    %v2268 = vsub.f32 %v2236, %v2248
    %v2269 = vsub.f32 %v2237, %v2251
    %v2270 = vsub.f32 %v2238, %v2254
    %v2271 = vsub.f32 %v2239, %v2257
    %v2272 = vsub.f32 %v2240, %v2260
    %v2273 = vsub.f32 %v2241, %v2263
    %v2274 = vsub.f32 %v2242, %v2266
    %v2275 = vmul.f32 %v2267, 1.442695
    %v2276 = vpow.pop %v2275
    %v2277 = vmul.f32 %v2268, 1.442695
    %v2278 = vpow.pop %v2277
    %v2279 = vmul.f32 %v2269, 1.442695
    %v2280 = vpow.pop %v2279
    %v2281 = vmul.f32 %v2270, 1.442695
    %v2282 = vpow.pop %v2281
    %v2283 = vmul.f32 %v2271, 1.442695
    %v2284 = vpow.pop %v2283
    %v2285 = vmul.f32 %v2272, 1.442695
    %v2286 = vpow.pop %v2285
    %v2287 = vmul.f32 %v2273, 1.442695
    %v2288 = vpow.pop %v2287
    %v2289 = vmul.f32 %v2274, 1.442695
    %v2290 = vpow.pop %v2289
    %v2291 = vsel %vm498, %v2276, 0.0
    %2292 = vadd.xlane.f32.xlu0 %v2291
    %v2293 = vpop.xlane.xlu0 %2292
    %v2294 = vsel %vm498, %v2278, 0.0
    %2295 = vadd.xlane.f32.xlu0 %v2294
    %v2296 = vpop.xlane.xlu0 %2295
    %v2297 = vsel %vm498, %v2280, 0.0
    %2298 = vadd.xlane.f32.xlu0 %v2297
    %v2299 = vpop.xlane.xlu0 %2298
    %v2300 = vsel %vm498, %v2282, 0.0
    %2301 = vadd.xlane.f32.xlu0 %v2300
    %v2302 = vpop.xlane.xlu0 %2301
    %v2303 = vsel %vm498, %v2284, 0.0
    %2304 = vadd.xlane.f32.xlu0 %v2303
    %v2305 = vpop.xlane.xlu0 %2304
    %v2306 = vsel %vm498, %v2286, 0.0
    %2307 = vadd.xlane.f32.xlu0 %v2306
    %v2308 = vpop.xlane.xlu0 %2307
    %v2309 = vsel %vm498, %v2288, 0.0
    %2310 = vadd.xlane.f32.xlu0 %v2309
    %v2311 = vpop.xlane.xlu0 %2310
    %v2312 = vsel %vm498, %v2290, 0.0
    %2313 = vadd.xlane.f32.xlu0 %v2312
    %v2314 = vpop.xlane.xlu0 %2313
    %v2315 = vrcp.pop %v2293
    %v2316 = vmul.f32 %v2276, %v2315
    %v2317 = vrcp.pop %v2296
    %v2318 = vmul.f32 %v2278, %v2317
    %v2319 = vrcp.pop %v2299
    %v2320 = vmul.f32 %v2280, %v2319
    %v2321 = vrcp.pop %v2302
    %v2322 = vmul.f32 %v2282, %v2321
    %v2323 = vrcp.pop %v2305
    %v2324 = vmul.f32 %v2284, %v2323
    %v2325 = vrcp.pop %v2308
    %v2326 = vmul.f32 %v2286, %v2325
    %v2327 = vrcp.pop %v2311
    %v2328 = vmul.f32 %v2288, %v2327
    %v2329 = vrcp.pop %v2314
    %v2330 = vmul.f32 %v2290, %v2329
    %v2332 = vsel %vm498, %v2316, 0
    %v2335 = vsel %vm498, %v2318, 0
    %v2338 = vsel %vm498, %v2320, 0
    %v2341 = vsel %vm498, %v2322, 0
    %v2344 = vsel %vm498, %v2324, 0
    %v2347 = vsel %vm498, %v2326, 0
    %v2350 = vsel %vm498, %v2328, 0
    %v2353 = vsel %vm498, %v2330, 0
    %2355 = vmatprep.subr.mxu0 0.0
    %2356 = vmatpush1.msra.mxu0 %v1914
    %2357 = vmatprep.subr.mxu0 0.0
    %2358 = vmatpush1.msra.mxu0 %v1919
    %2359 = vmatprep.subr.mxu0 0.0
    %2360 = vmatpush1.msra.mxu0 %v1924
    %2361 = vmatprep.subr.mxu0 0.0
    %2362 = vmatpush1.msra.mxu0 %v1929
    %2363 = vmatprep.subr.mxu0 0.0
    %2364 = vmatpush1.msra.mxu0 %v1934
    %2365 = vmatprep.subr.mxu0 0.0
    %2366 = vmatpush1.msra.mxu0 %v1939
    %2367 = vmatprep.subr.mxu0 0.0
    %2368 = vmatpush1.msra.mxu0 %v1944
    %2369 = vmatprep.subr.mxu0 0.0
    %2370 = vmatpush1.msra.mxu0 %v1949
    %2371 = vmatprep.subr.mxu0 0.0
    %2372 = vmatpush1.msra.mxu0 0.0
    %2373 = vmatprep.subr.mxu0 0.0
    %2374 = vmatpush1.msra.mxu0 0.0
    %2375 = vmatprep.subr.mxu0 0.0
    %2376 = vmatpush1.msra.mxu0 0.0
    %2377 = vmatprep.subr.mxu0 0.0
    %2378 = vmatpush1.msra.mxu0 0.0
    %2379 = vmatprep.subr.mxu0 0.0
    %2380 = vmatpush1.msra.mxu0 0.0
    %2381 = vmatprep.subr.mxu0 0.0
    %2382 = vmatpush1.msra.mxu0 0.0
    %2383 = vmatprep.subr.mxu0 0.0
    %2384 = vmatpush1.msra.mxu0 0.0
    %2385 = vmatprep.subr.mxu0 0.0
    %2386 = vmatpush1.msra.mxu0 0.0
    %2387 = vmatprep.subr.mxu0 0.0
    %2388 = vmatpush1.msra.mxu0 0.0
    %2389 = vmatprep.subr.mxu0 0.0
    %2390 = vmatpush1.msra.mxu0 0.0
    %2391 = vmatprep.subr.mxu0 0.0
    %2392 = vmatpush1.msra.mxu0 0.0
    %2393 = vmatprep.subr.mxu0 0.0
    %2394 = vmatpush1.msra.mxu0 0.0
    %2395 = vmatprep.subr.mxu0 0.0
    %2396 = vmatpush1.msra.mxu0 0.0
    %2397 = vmatprep.subr.mxu0 0.0
    %2398 = vmatpush1.msra.mxu0 0.0
    %2399 = vmatprep.subr.mxu0 0.0
    %2400 = vmatpush1.msra.mxu0 0.0
    %2401 = vmatprep.subr.mxu0 0.0
    %2402 = vmatpush1.msra.mxu0 0.0
    %2403 = vmatprep.subr.mxu0 0.0
    %2404 = vmatpush1.msra.mxu0 0.0
    %2405 = vmatprep.subr.mxu0 0.0
    %2406 = vmatpush1.msra.mxu0 0.0
    %2407 = vmatprep.subr.mxu0 0.0
    %2408 = vmatpush1.msra.mxu0 0.0
    %2409 = vmatprep.subr.mxu0 0.0
    %2410 = vmatpush1.msra.mxu0 0.0
    %2411 = vmatprep.subr.mxu0 0.0
    %2412 = vmatpush1.msra.mxu0 0.0
    %2413 = vmatprep.subr.mxu0 0.0
    %2414 = vmatpush1.msra.mxu0 0.0
    %2415 = vmatprep.subr.mxu0 0.0
    %2416 = vmatpush1.msra.mxu0 0.0
    %2417 = vmatprep.subr.mxu0 0.0
    %2418 = vmatpush1.msra.mxu0 0.0
    %2419 = vmatprep.mubr.f32.mxu0 0.0
    %2420 = vmatmul.mubr.f32.gmra.mrb[0].mxu0 %v2332
    %v2421 = vpop.f32.mrb[0].mxu0
    %v2422 = vadd.f32 0.0, %v2421
    %v2423 = vpop.f32.mrb[0].mxu0
    %2424 = vmatprep.mubr.f32.mxu0 0.0
    %2425 = vmatmul.mubr.f32.gmra.mrb[0].mxu0 %v2335
    %v2426 = vpop.f32.mrb[0].mxu0
    %v2427 = vadd.f32 0.0, %v2426
    %v2428 = vpop.f32.mrb[0].mxu0
    %2429 = vmatprep.mubr.f32.mxu0 0.0
    %2430 = vmatmul.mubr.f32.gmra.mrb[0].mxu0 %v2338
    %v2431 = vpop.f32.mrb[0].mxu0
    %v2432 = vadd.f32 0.0, %v2431
    %v2433 = vpop.f32.mrb[0].mxu0
    %2434 = vmatprep.mubr.f32.mxu0 0.0
    %2435 = vmatmul.mubr.f32.gmra.mrb[0].mxu0 %v2341
    %v2436 = vpop.f32.mrb[0].mxu0
    %v2437 = vadd.f32 0.0, %v2436
    %v2438 = vpop.f32.mrb[0].mxu0
    %2439 = vmatprep.mubr.f32.mxu0 0.0
    %2440 = vmatmul.mubr.f32.gmra.mrb[0].mxu0 %v2344
    %v2441 = vpop.f32.mrb[0].mxu0
    %v2442 = vadd.f32 0.0, %v2441
    %v2443 = vpop.f32.mrb[0].mxu0
    %2444 = vmatprep.mubr.f32.mxu0 0.0
    %2445 = vmatmul.mubr.f32.gmra.mrb[0].mxu0 %v2347
    %v2446 = vpop.f32.mrb[0].mxu0
    %v2447 = vadd.f32 0.0, %v2446
    %v2448 = vpop.f32.mrb[0].mxu0
    %2449 = vmatprep.mubr.f32.mxu0 0.0
    %2450 = vmatmul.mubr.f32.gmra.mrb[0].mxu0 %v2350
    %v2451 = vpop.f32.mrb[0].mxu0
    %v2452 = vadd.f32 0.0, %v2451
    %v2453 = vpop.f32.mrb[0].mxu0
    %2454 = vmatprep.mubr.f32.mxu0 0.0
    %2455 = vmatmul.mubr.f32.gmra.mrb[0].mxu0 %v2353
    %v2456 = vpop.f32.mrb[0].mxu0
    %v2457 = vadd.f32 0.0, %v2456
    %v2458 = vpop.f32.mrb[0].mxu0
    %2459 = vdwg.mxu0
    %vm2460 = vcmp.gt.f32.partialorder %v2422, 0.0
    %vm2461 = vcmp.gt.f32.partialorder %v2427, 0.0
    %vm2462 = vcmp.gt.f32.partialorder %v2432, 0.0
    %vm2463 = vcmp.gt.f32.partialorder %v2437, 0.0
    %vm2464 = vcmp.gt.f32.partialorder %v2442, 0.0
    %vm2465 = vcmp.gt.f32.partialorder %v2447, 0.0
    %vm2466 = vcmp.gt.f32.partialorder %v2452, 0.0
    %vm2467 = vcmp.gt.f32.partialorder %v2457, 0.0
    %v2468 = vmul.f32 %v2422, 1.442695
    %v2469 = vpow.pop %v2468
    %v2470 = vmul.f32 %v2427, 1.442695
    %v2471 = vpow.pop %v2470
    %v2472 = vmul.f32 %v2432, 1.442695
    %v2473 = vpow.pop %v2472
    %v2474 = vmul.f32 %v2437, 1.442695
    %v2475 = vpow.pop %v2474
    %v2476 = vmul.f32 %v2442, 1.442695
    %v2477 = vpow.pop %v2476
    %v2478 = vmul.f32 %v2447, 1.442695
    %v2479 = vpow.pop %v2478
    %v2480 = vmul.f32 %v2452, 1.442695
    %v2481 = vpow.pop %v2480
    %v2482 = vmul.f32 %v2457, 1.442695
    %v2483 = vpow.pop %v2482
    %v2484 = vsub.f32 %v2469, 1.0
    %v2485 = vsub.f32 %v2471, 1.0
    %v2486 = vsub.f32 %v2473, 1.0
    %v2487 = vsub.f32 %v2475, 1.0
    %v2488 = vsub.f32 %v2477, 1.0
    %v2489 = vsub.f32 %v2479, 1.0
    %v2490 = vsub.f32 %v2481, 1.0
    %v2491 = vsub.f32 %v2483, 1.0
    %v2492 = vsel %vm2460, %v2422, %v2484
    %v2493 = vsel %vm2461, %v2427, %v2485
    %v2494 = vsel %vm2462, %v2432, %v2486
    %v2495 = vsel %vm2463, %v2437, %v2487
    %v2496 = vsel %vm2464, %v2442, %v2488
    %v2497 = vsel %vm2465, %v2447, %v2489
    %v2498 = vsel %vm2466, %v2452, %v2490
    %v2499 = vsel %vm2467, %v2457, %v2491
    %v2501 = vsel %vm498, %v62, 0
    %v2504 = vsel %vm498, %v63, 0
    %v2507 = vsel %vm498, %v64, 0
    %v2510 = vsel %vm498, %v65, 0
    %v2513 = vsel %vm498, %v66, 0
    %v2516 = vsel %vm498, %v67, 0
    %v2519 = vsel %vm498, %v68, 0
    %v2522 = vsel %vm498, %v69, 0
    %2524 = vmatprep.subr.mxu0 0.0
    %2525 = vmatpush1.msra.mxu0 %v70
    %2526 = vmatprep.subr.mxu0 0.0
    %2527 = vmatpush1.msra.mxu0 %v71
    %2528 = vmatprep.subr.mxu0 0.0
    %2529 = vmatpush1.msra.mxu0 %v72
    %2530 = vmatprep.subr.mxu0 0.0
    %2531 = vmatpush1.msra.mxu0 %v73
    %2532 = vmatprep.subr.mxu0 0.0
    %2533 = vmatpush1.msra.mxu0 %v74
    %2534 = vmatprep.subr.mxu0 0.0
    %2535 = vmatpush1.msra.mxu0 %v75
    %2536 = vmatprep.subr.mxu0 0.0
    %2537 = vmatpush1.msra.mxu0 %v76
    %2538 = vmatprep.subr.mxu0 0.0
    %2539 = vmatpush1.msra.mxu0 %v77
    %2540 = vmatprep.subr.mxu0 0.0
    %2541 = vmatpush1.msra.mxu0 0.0
    %2542 = vmatprep.subr.mxu0 0.0
    %2543 = vmatpush1.msra.mxu0 0.0
    %2544 = vmatprep.subr.mxu0 0.0
    %2545 = vmatpush1.msra.mxu0 0.0
    %2546 = vmatprep.subr.mxu0 0.0
    %2547 = vmatpush1.msra.mxu0 0.0
    %2548 = vmatprep.subr.mxu0 0.0
    %2549 = vmatpush1.msra.mxu0 0.0
    %2550 = vmatprep.subr.mxu0 0.0
    %2551 = vmatpush1.msra.mxu0 0.0
    %2552 = vmatprep.subr.mxu0 0.0
    %2553 = vmatpush1.msra.mxu0 0.0
    %2554 = vmatprep.subr.mxu0 0.0
    %2555 = vmatpush1.msra.mxu0 0.0
    %2556 = vmatprep.subr.mxu0 0.0
    %2557 = vmatpush1.msra.mxu0 0.0
    %2558 = vmatprep.subr.mxu0 0.0
    %2559 = vmatpush1.msra.mxu0 0.0
    %2560 = vmatprep.subr.mxu0 0.0
    %2561 = vmatpush1.msra.mxu0 0.0
    %2562 = vmatprep.subr.mxu0 0.0
    %2563 = vmatpush1.msra.mxu0 0.0
    %2564 = vmatprep.subr.mxu0 0.0
    %2565 = vmatpush1.msra.mxu0 0.0
    %2566 = vmatprep.subr.mxu0 0.0
    %2567 = vmatpush1.msra.mxu0 0.0
    %2568 = vmatprep.subr.mxu0 0.0
    %2569 = vmatpush1.msra.mxu0 0.0
    %2570 = vmatprep.subr.mxu0 0.0
    %2571 = vmatpush1.msra.mxu0 0.0
    %2572 = vmatprep.subr.mxu0 0.0
    %2573 = vmatpush1.msra.mxu0 0.0
    %2574 = vmatprep.subr.mxu0 0.0
    %2575 = vmatpush1.msra.mxu0 0.0
    %2576 = vmatprep.subr.mxu0 0.0
    %2577 = vmatpush1.msra.mxu0 0.0
    %2578 = vmatprep.subr.mxu0 0.0
    %2579 = vmatpush1.msra.mxu0 0.0
    %2580 = vmatprep.subr.mxu0 0.0
    %2581 = vmatpush1.msra.mxu0 0.0
    %2582 = vmatprep.subr.mxu0 0.0
    %2583 = vmatpush1.msra.mxu0 0.0
    %2584 = vmatprep.subr.mxu0 0.0
    %2585 = vmatpush1.msra.mxu0 0.0
    %2586 = vmatprep.subr.mxu0 0.0
    %2587 = vmatpush1.msra.mxu0 0.0
    %2588 = vmatprep.mubr.f32.mxu0 0.0
    %2589 = vmatmul.mubr.f32.gmra.mrb[0].mxu0 %v2501
    %v2590 = vpop.f32.mrb[0].mxu0
    %v2591 = vadd.f32 0.0, %v2590
    %v2592 = vpop.f32.mrb[0].mxu0
    %2593 = vmatprep.mubr.f32.mxu0 0.0
    %2594 = vmatmul.mubr.f32.gmra.mrb[0].mxu0 %v2504
    %v2595 = vpop.f32.mrb[0].mxu0
    %v2596 = vadd.f32 0.0, %v2595
    %v2597 = vpop.f32.mrb[0].mxu0
    %2598 = vmatprep.mubr.f32.mxu0 0.0
    %2599 = vmatmul.mubr.f32.gmra.mrb[0].mxu0 %v2507
    %v2600 = vpop.f32.mrb[0].mxu0
    %v2601 = vadd.f32 0.0, %v2600
    %v2602 = vpop.f32.mrb[0].mxu0
    %2603 = vmatprep.mubr.f32.mxu0 0.0
    %2604 = vmatmul.mubr.f32.gmra.mrb[0].mxu0 %v2510
    %v2605 = vpop.f32.mrb[0].mxu0
    %v2606 = vadd.f32 0.0, %v2605
    %v2607 = vpop.f32.mrb[0].mxu0
    %2608 = vmatprep.mubr.f32.mxu0 0.0
    %2609 = vmatmul.mubr.f32.gmra.mrb[0].mxu0 %v2513
    %v2610 = vpop.f32.mrb[0].mxu0
    %v2611 = vadd.f32 0.0, %v2610
    %v2612 = vpop.f32.mrb[0].mxu0
    %2613 = vmatprep.mubr.f32.mxu0 0.0
    %2614 = vmatmul.mubr.f32.gmra.mrb[0].mxu0 %v2516
    %v2615 = vpop.f32.mrb[0].mxu0
    %v2616 = vadd.f32 0.0, %v2615
    %v2617 = vpop.f32.mrb[0].mxu0
    %2618 = vmatprep.mubr.f32.mxu0 0.0
    %2619 = vmatmul.mubr.f32.gmra.mrb[0].mxu0 %v2519
    %v2620 = vpop.f32.mrb[0].mxu0
    %v2621 = vadd.f32 0.0, %v2620
    %v2622 = vpop.f32.mrb[0].mxu0
    %2623 = vmatprep.mubr.f32.mxu0 0.0
    %2624 = vmatmul.mubr.f32.gmra.mrb[0].mxu0 %v2522
    %v2625 = vpop.f32.mrb[0].mxu0
    %v2626 = vadd.f32 0.0, %v2625
    %v2627 = vpop.f32.mrb[0].mxu0
    %2628 = vdwg.mxu0
    %s2629 = ssub.f32 1.0, %s61
    %v2630 = vstv %s2629
    %v2631 = vmul.f32 %v2630, %v2591
    %v2632 = vmul.f32 %v2630, %v2596
    %v2633 = vmul.f32 %v2630, %v2601
    %v2634 = vmul.f32 %v2630, %v2606
    %v2635 = vmul.f32 %v2630, %v2611
    %v2636 = vmul.f32 %v2630, %v2616
    %v2637 = vmul.f32 %v2630, %v2621
    %v2638 = vmul.f32 %v2630, %v2626
    %v2639 = vld [vmem:[%s3] sm:$0xff]
    %v2640 = vld [vmem:[%s3 + $0x8] sm:$0xff]
    %v2641 = vld [vmem:[%s3 + $0x10] sm:$0xff]
    %v2642 = vld [vmem:[%s3 + $0x18] sm:$0xff]
    %v2643 = vld [vmem:[%s3 + $0x20] sm:$0xff]
    %v2644 = vld [vmem:[%s3 + $0x28] sm:$0xff]
    %v2645 = vld [vmem:[%s3 + $0x30] sm:$0xff]
    %v2646 = vld [vmem:[%s3 + $0x38] sm:$0xff]
    %v2647 = vstv %s61
    %v2648 = vmul.f32 %v2647, %v2639
    %v2649 = vmul.f32 %v2647, %v2640
    %v2650 = vmul.f32 %v2647, %v2641
    %v2651 = vmul.f32 %v2647, %v2642
    %v2652 = vmul.f32 %v2647, %v2643
    %v2653 = vmul.f32 %v2647, %v2644
    %v2654 = vmul.f32 %v2647, %v2645
    %v2655 = vmul.f32 %v2647, %v2646
    %v2656 = vadd.f32 %v2631, %v2648
    %v2657 = vadd.f32 %v2632, %v2649
    %v2658 = vadd.f32 %v2633, %v2650
    %v2659 = vadd.f32 %v2634, %v2651
    %v2660 = vadd.f32 %v2635, %v2652
    %v2661 = vadd.f32 %v2636, %v2653
    %v2662 = vadd.f32 %v2637, %v2654
    %v2663 = vadd.f32 %v2638, %v2655
    %v2664 = vld [vmem:[%s10] sm:$0xff]
    %v2665 = vld [vmem:[%s10 + $0x8] sm:$0xff]
    %v2666 = vld [vmem:[%s10 + $0x10] sm:$0xff]
    %v2667 = vld [vmem:[%s10 + $0x18] sm:$0xff]
    %v2669 = vsel %vm92, %v2656, 0
    %v2672 = vsel %vm92, %v2657, 0
    %v2675 = vsel %vm92, %v2658, 0
    %v2678 = vsel %vm92, %v2659, 0
    %v2681 = vsel %vm92, %v2660, 0
    %v2684 = vsel %vm92, %v2661, 0
    %v2687 = vsel %vm92, %v2662, 0
    %v2690 = vsel %vm92, %v2663, 0
    %2692 = vmatprep.subr.mxu0 0.0
    %2693 = vmatpush1.msra.mxu0 %v2664
    %2694 = vmatprep.subr.mxu0 0.0
    %2695 = vmatpush1.msra.mxu0 %v2665
    %2696 = vmatprep.subr.mxu0 0.0
    %2697 = vmatpush1.msra.mxu0 %v2666
    %2698 = vmatprep.subr.mxu0 0.0
    %2699 = vmatpush1.msra.mxu0 %v2667
    %2700 = vmatprep.subr.mxu0 0.0
    %2701 = vmatpush1.msra.mxu0 0.0
    %2702 = vmatprep.subr.mxu0 0.0
    %2703 = vmatpush1.msra.mxu0 0.0
    %2704 = vmatprep.subr.mxu0 0.0
    %2705 = vmatpush1.msra.mxu0 0.0
    %2706 = vmatprep.subr.mxu0 0.0
    %2707 = vmatpush1.msra.mxu0 0.0
    %2708 = vmatprep.subr.mxu0 0.0
    %2709 = vmatpush1.msra.mxu0 0.0
    %2710 = vmatprep.subr.mxu0 0.0
    %2711 = vmatpush1.msra.mxu0 0.0
    %2712 = vmatprep.subr.mxu0 0.0
    %2713 = vmatpush1.msra.mxu0 0.0
    %2714 = vmatprep.subr.mxu0 0.0
    %2715 = vmatpush1.msra.mxu0 0.0
    %2716 = vmatprep.subr.mxu0 0.0
    %2717 = vmatpush1.msra.mxu0 0.0
    %2718 = vmatprep.subr.mxu0 0.0
    %2719 = vmatpush1.msra.mxu0 0.0
    %2720 = vmatprep.subr.mxu0 0.0
    %2721 = vmatpush1.msra.mxu0 0.0
    %2722 = vmatprep.subr.mxu0 0.0
    %2723 = vmatpush1.msra.mxu0 0.0
    %2724 = vmatprep.subr.mxu0 0.0
    %2725 = vmatpush1.msra.mxu0 0.0
    %2726 = vmatprep.subr.mxu0 0.0
    %2727 = vmatpush1.msra.mxu0 0.0
    %2728 = vmatprep.subr.mxu0 0.0
    %2729 = vmatpush1.msra.mxu0 0.0
    %2730 = vmatprep.subr.mxu0 0.0
    %2731 = vmatpush1.msra.mxu0 0.0
    %2732 = vmatprep.subr.mxu0 0.0
    %2733 = vmatpush1.msra.mxu0 0.0
    %2734 = vmatprep.subr.mxu0 0.0
    %2735 = vmatpush1.msra.mxu0 0.0
    %2736 = vmatprep.subr.mxu0 0.0
    %2737 = vmatpush1.msra.mxu0 0.0
    %2738 = vmatprep.subr.mxu0 0.0
    %2739 = vmatpush1.msra.mxu0 0.0
    %2740 = vmatprep.subr.mxu0 0.0
    %2741 = vmatpush1.msra.mxu0 0.0
    %2742 = vmatprep.subr.mxu0 0.0
    %2743 = vmatpush1.msra.mxu0 0.0
    %2744 = vmatprep.subr.mxu0 0.0
    %2745 = vmatpush1.msra.mxu0 0.0
    %2746 = vmatprep.subr.mxu0 0.0
    %2747 = vmatpush1.msra.mxu0 0.0
    %2748 = vmatprep.subr.mxu0 0.0
    %2749 = vmatpush1.msra.mxu0 0.0
    %2750 = vmatprep.subr.mxu0 0.0
    %2751 = vmatpush1.msra.mxu0 0.0
    %2752 = vmatprep.subr.mxu0 0.0
    %2753 = vmatpush1.msra.mxu0 0.0
    %2754 = vmatprep.subr.mxu0 0.0
    %2755 = vmatpush1.msra.mxu0 0.0
    %2756 = vmatprep.mubr.f32.mxu0 0.0
    %2757 = vmatmul.mubr.f32.gmra.mrb[0].mxu0 %v2669
    %v2758 = vpop.f32.mrb[0].mxu0
    %v2759 = vadd.f32 0.0, %v2758
    %v2760 = vpop.f32.mrb[0].mxu0
    %2761 = vmatprep.mubr.f32.mxu0 0.0
    %2762 = vmatmul.mubr.f32.gmra.mrb[0].mxu0 %v2672
    %v2763 = vpop.f32.mrb[0].mxu0
    %v2764 = vadd.f32 0.0, %v2763
    %v2765 = vpop.f32.mrb[0].mxu0
    %2766 = vmatprep.mubr.f32.mxu0 0.0
    %2767 = vmatmul.mubr.f32.gmra.mrb[0].mxu0 %v2675
    %v2768 = vpop.f32.mrb[0].mxu0
    %v2769 = vadd.f32 0.0, %v2768
    %v2770 = vpop.f32.mrb[0].mxu0
    %2771 = vmatprep.mubr.f32.mxu0 0.0
    %2772 = vmatmul.mubr.f32.gmra.mrb[0].mxu0 %v2678
    %v2773 = vpop.f32.mrb[0].mxu0
    %v2774 = vadd.f32 0.0, %v2773
    %v2775 = vpop.f32.mrb[0].mxu0
    %2776 = vmatprep.mubr.f32.mxu0 0.0
    %2777 = vmatmul.mubr.f32.gmra.mrb[0].mxu0 %v2681
    %v2778 = vpop.f32.mrb[0].mxu0
    %v2779 = vadd.f32 0.0, %v2778
    %v2780 = vpop.f32.mrb[0].mxu0
    %2781 = vmatprep.mubr.f32.mxu0 0.0
    %2782 = vmatmul.mubr.f32.gmra.mrb[0].mxu0 %v2684
    %v2783 = vpop.f32.mrb[0].mxu0
    %v2784 = vadd.f32 0.0, %v2783
    %v2785 = vpop.f32.mrb[0].mxu0
    %2786 = vmatprep.mubr.f32.mxu0 0.0
    %2787 = vmatmul.mubr.f32.gmra.mrb[0].mxu0 %v2687
    %v2788 = vpop.f32.mrb[0].mxu0
    %v2789 = vadd.f32 0.0, %v2788
    %v2790 = vpop.f32.mrb[0].mxu0
    %2791 = vmatprep.mubr.f32.mxu0 0.0
    %2792 = vmatmul.mubr.f32.gmra.mrb[0].mxu0 %v2690
    %v2793 = vpop.f32.mrb[0].mxu0
    %v2794 = vadd.f32 0.0, %v2793
    %v2795 = vpop.f32.mrb[0].mxu0
    %2796 = vdwg.mxu0
    %v2797 = vstv %s60
    %v2798 = vmul.f32 %v2797, %v2759
    %v2799 = vmul.f32 %v2797, %v2764
    %v2800 = vmul.f32 %v2797, %v2769
    %v2801 = vmul.f32 %v2797, %v2774
    %v2802 = vmul.f32 %v2797, %v2779
    %v2803 = vmul.f32 %v2797, %v2784
    %v2804 = vmul.f32 %v2797, %v2789
    %v2805 = vmul.f32 %v2797, %v2794
    %s2806 = ssub.f32 1.0, %s60
    %v2807 = vstv %s2806
    %v2808 = vmul.f32 %v2807, %v2656
    %v2809 = vmul.f32 %v2807, %v2657
    %v2810 = vmul.f32 %v2807, %v2658
    %v2811 = vmul.f32 %v2807, %v2659
    %v2812 = vmul.f32 %v2807, %v2660
    %v2813 = vmul.f32 %v2807, %v2661
    %v2814 = vmul.f32 %v2807, %v2662
    %v2815 = vmul.f32 %v2807, %v2663
    %v2816 = vadd.f32 %v2798, %v2808
    %v2817 = vadd.f32 %v2799, %v2809
    %v2818 = vadd.f32 %v2800, %v2810
    %v2819 = vadd.f32 %v2801, %v2811
    %v2820 = vadd.f32 %v2802, %v2812
    %v2821 = vadd.f32 %v2803, %v2813
    %v2822 = vadd.f32 %v2804, %v2814
    %v2823 = vadd.f32 %v2805, %v2815
    %v2824 = vld [vmem:[%s11] sm:$0xff]
    %v2825 = vld [vmem:[%s11 + $0x8] sm:$0xff]
    %v2826 = vld [vmem:[%s11 + $0x10] sm:$0xff]
    %v2827 = vld [vmem:[%s11 + $0x18] sm:$0xff]
    %v2828 = vld [vmem:[%s12] sm:$0xff]
    %v2829 = vld [vmem:[%s12 + $0x8] sm:$0xff]
    %v2830 = vld [vmem:[%s12 + $0x10] sm:$0xff]
    %v2831 = vld [vmem:[%s12 + $0x18] sm:$0xff]
    %v2833 = vsel %vm92, %v2816, 0
    %v2836 = vsel %vm92, %v2817, 0
    %v2839 = vsel %vm92, %v2818, 0
    %v2842 = vsel %vm92, %v2819, 0
    %v2845 = vsel %vm92, %v2820, 0
    %v2848 = vsel %vm92, %v2821, 0
    %v2851 = vsel %vm92, %v2822, 0
    %v2854 = vsel %vm92, %v2823, 0
    %2856 = vmatprep.subr.mxu0 0.0
    %2857 = vmatpush1.msra.mxu0 %v2828
    %2858 = vmatprep.subr.mxu0 0.0
    %2859 = vmatpush1.msra.mxu0 %v2829
    %2860 = vmatprep.subr.mxu0 0.0
    %2861 = vmatpush1.msra.mxu0 %v2830
    %2862 = vmatprep.subr.mxu0 0.0
    %2863 = vmatpush1.msra.mxu0 %v2831
    %2864 = vmatprep.subr.mxu0 0.0
    %2865 = vmatpush1.msra.mxu0 0.0
    %2866 = vmatprep.subr.mxu0 0.0
    %2867 = vmatpush1.msra.mxu0 0.0
    %2868 = vmatprep.subr.mxu0 0.0
    %2869 = vmatpush1.msra.mxu0 0.0
    %2870 = vmatprep.subr.mxu0 0.0
    %2871 = vmatpush1.msra.mxu0 0.0
    %2872 = vmatprep.subr.mxu0 0.0
    %2873 = vmatpush1.msra.mxu0 0.0
    %2874 = vmatprep.subr.mxu0 0.0
    %2875 = vmatpush1.msra.mxu0 0.0
    %2876 = vmatprep.subr.mxu0 0.0
    %2877 = vmatpush1.msra.mxu0 0.0
    %2878 = vmatprep.subr.mxu0 0.0
    %2879 = vmatpush1.msra.mxu0 0.0
    %2880 = vmatprep.subr.mxu0 0.0
    %2881 = vmatpush1.msra.mxu0 0.0
    %2882 = vmatprep.subr.mxu0 0.0
    %2883 = vmatpush1.msra.mxu0 0.0
    %2884 = vmatprep.subr.mxu0 0.0
    %2885 = vmatpush1.msra.mxu0 0.0
    %2886 = vmatprep.subr.mxu0 0.0
    %2887 = vmatpush1.msra.mxu0 0.0
    %2888 = vmatprep.subr.mxu0 0.0
    %2889 = vmatpush1.msra.mxu0 0.0
    %2890 = vmatprep.subr.mxu0 0.0
    %2891 = vmatpush1.msra.mxu0 0.0
    %2892 = vmatprep.subr.mxu0 0.0
    %2893 = vmatpush1.msra.mxu0 0.0
    %2894 = vmatprep.subr.mxu0 0.0
    %2895 = vmatpush1.msra.mxu0 0.0
    %2896 = vmatprep.subr.mxu0 0.0
    %2897 = vmatpush1.msra.mxu0 0.0
    %2898 = vmatprep.subr.mxu0 0.0
    %2899 = vmatpush1.msra.mxu0 0.0
    %2900 = vmatprep.subr.mxu0 0.0
    %2901 = vmatpush1.msra.mxu0 0.0
    %2902 = vmatprep.subr.mxu0 0.0
    %2903 = vmatpush1.msra.mxu0 0.0
    %2904 = vmatprep.subr.mxu0 0.0
    %2905 = vmatpush1.msra.mxu0 0.0
    %2906 = vmatprep.subr.mxu0 0.0
    %2907 = vmatpush1.msra.mxu0 0.0
    %2908 = vmatprep.subr.mxu0 0.0
    %2909 = vmatpush1.msra.mxu0 0.0
    %2910 = vmatprep.subr.mxu0 0.0
    %2911 = vmatpush1.msra.mxu0 0.0
    %2912 = vmatprep.subr.mxu0 0.0
    %2913 = vmatpush1.msra.mxu0 0.0
    %2914 = vmatprep.subr.mxu0 0.0
    %2915 = vmatpush1.msra.mxu0 0.0
    %2916 = vmatprep.subr.mxu0 0.0
    %2917 = vmatpush1.msra.mxu0 0.0
    %2918 = vmatprep.subr.mxu0 0.0
    %2919 = vmatpush1.msra.mxu0 0.0
    %2920 = vmatprep.mubr.f32.mxu0 0.0
    %2921 = vmatmul.mubr.f32.gmra.mrb[0].mxu0 %v2833
    %v2922 = vpop.f32.mrb[0].mxu0
    %v2923 = vadd.f32 0.0, %v2922
    %v2924 = vpop.f32.mrb[0].mxu0
    %2925 = vmatprep.mubr.f32.mxu0 0.0
    %2926 = vmatmul.mubr.f32.gmra.mrb[0].mxu0 %v2836
    %v2927 = vpop.f32.mrb[0].mxu0
    %v2928 = vadd.f32 0.0, %v2927
    %v2929 = vpop.f32.mrb[0].mxu0
    %2930 = vmatprep.mubr.f32.mxu0 0.0
    %2931 = vmatmul.mubr.f32.gmra.mrb[0].mxu0 %v2839
    %v2932 = vpop.f32.mrb[0].mxu0
    %v2933 = vadd.f32 0.0, %v2932
    %v2934 = vpop.f32.mrb[0].mxu0
    %2935 = vmatprep.mubr.f32.mxu0 0.0
    %2936 = vmatmul.mubr.f32.gmra.mrb[0].mxu0 %v2842
    %v2937 = vpop.f32.mrb[0].mxu0
    %v2938 = vadd.f32 0.0, %v2937
    %v2939 = vpop.f32.mrb[0].mxu0
    %2940 = vmatprep.mubr.f32.mxu0 0.0
    %2941 = vmatmul.mubr.f32.gmra.mrb[0].mxu0 %v2845
    %v2942 = vpop.f32.mrb[0].mxu0
    %v2943 = vadd.f32 0.0, %v2942
    %v2944 = vpop.f32.mrb[0].mxu0
    %2945 = vmatprep.mubr.f32.mxu0 0.0
    %2946 = vmatmul.mubr.f32.gmra.mrb[0].mxu0 %v2848
    %v2947 = vpop.f32.mrb[0].mxu0
    %v2948 = vadd.f32 0.0, %v2947
    %v2949 = vpop.f32.mrb[0].mxu0
    %2950 = vmatprep.mubr.f32.mxu0 0.0
    %2951 = vmatmul.mubr.f32.gmra.mrb[0].mxu0 %v2851
    %v2952 = vpop.f32.mrb[0].mxu0
    %v2953 = vadd.f32 0.0, %v2952
    %v2954 = vpop.f32.mrb[0].mxu0
    %2955 = vmatprep.mubr.f32.mxu0 0.0
    %2956 = vmatmul.mubr.f32.gmra.mrb[0].mxu0 %v2854
    %v2957 = vpop.f32.mrb[0].mxu0
    %v2958 = vadd.f32 0.0, %v2957
    %v2959 = vpop.f32.mrb[0].mxu0
    %2960 = vdwg.mxu0
    %v2962 = vsel %vm92, %v2492, 0
    %v2965 = vsel %vm92, %v2493, 0
    %v2968 = vsel %vm92, %v2494, 0
    %v2971 = vsel %vm92, %v2495, 0
    %v2974 = vsel %vm92, %v2496, 0
    %v2977 = vsel %vm92, %v2497, 0
    %v2980 = vsel %vm92, %v2498, 0
    %v2983 = vsel %vm92, %v2499, 0
    %2985 = vmatprep.subr.mxu0 0.0
    %2986 = vmatpush1.msra.mxu0 %v2824
    %2987 = vmatprep.subr.mxu0 0.0
    %2988 = vmatpush1.msra.mxu0 %v2825
    %2989 = vmatprep.subr.mxu0 0.0
    %2990 = vmatpush1.msra.mxu0 %v2826
    %2991 = vmatprep.subr.mxu0 0.0
    %2992 = vmatpush1.msra.mxu0 %v2827
    %2993 = vmatprep.subr.mxu0 0.0
    %2994 = vmatpush1.msra.mxu0 0.0
    %2995 = vmatprep.subr.mxu0 0.0
    %2996 = vmatpush1.msra.mxu0 0.0
    %2997 = vmatprep.subr.mxu0 0.0
    %2998 = vmatpush1.msra.mxu0 0.0
    %2999 = vmatprep.subr.mxu0 0.0
    %3000 = vmatpush1.msra.mxu0 0.0
    %3001 = vmatprep.subr.mxu0 0.0
    %3002 = vmatpush1.msra.mxu0 0.0
    %3003 = vmatprep.subr.mxu0 0.0
    %3004 = vmatpush1.msra.mxu0 0.0
    %3005 = vmatprep.subr.mxu0 0.0
    %3006 = vmatpush1.msra.mxu0 0.0
    %3007 = vmatprep.subr.mxu0 0.0
    %3008 = vmatpush1.msra.mxu0 0.0
    %3009 = vmatprep.subr.mxu0 0.0
    %3010 = vmatpush1.msra.mxu0 0.0
    %3011 = vmatprep.subr.mxu0 0.0
    %3012 = vmatpush1.msra.mxu0 0.0
    %3013 = vmatprep.subr.mxu0 0.0
    %3014 = vmatpush1.msra.mxu0 0.0
    %3015 = vmatprep.subr.mxu0 0.0
    %3016 = vmatpush1.msra.mxu0 0.0
    %3017 = vmatprep.subr.mxu0 0.0
    %3018 = vmatpush1.msra.mxu0 0.0
    %3019 = vmatprep.subr.mxu0 0.0
    %3020 = vmatpush1.msra.mxu0 0.0
    %3021 = vmatprep.subr.mxu0 0.0
    %3022 = vmatpush1.msra.mxu0 0.0
    %3023 = vmatprep.subr.mxu0 0.0
    %3024 = vmatpush1.msra.mxu0 0.0
    %3025 = vmatprep.subr.mxu0 0.0
    %3026 = vmatpush1.msra.mxu0 0.0
    %3027 = vmatprep.subr.mxu0 0.0
    %3028 = vmatpush1.msra.mxu0 0.0
    %3029 = vmatprep.subr.mxu0 0.0
    %3030 = vmatpush1.msra.mxu0 0.0
    %3031 = vmatprep.subr.mxu0 0.0
    %3032 = vmatpush1.msra.mxu0 0.0
    %3033 = vmatprep.subr.mxu0 0.0
    %3034 = vmatpush1.msra.mxu0 0.0
    %3035 = vmatprep.subr.mxu0 0.0
    %3036 = vmatpush1.msra.mxu0 0.0
    %3037 = vmatprep.subr.mxu0 0.0
    %3038 = vmatpush1.msra.mxu0 0.0
    %3039 = vmatprep.subr.mxu0 0.0
    %3040 = vmatpush1.msra.mxu0 0.0
    %3041 = vmatprep.subr.mxu0 0.0
    %3042 = vmatpush1.msra.mxu0 0.0
    %3043 = vmatprep.subr.mxu0 0.0
    %3044 = vmatpush1.msra.mxu0 0.0
    %3045 = vmatprep.subr.mxu0 0.0
    %3046 = vmatpush1.msra.mxu0 0.0
    %3047 = vmatprep.subr.mxu0 0.0
    %3048 = vmatpush1.msra.mxu0 0.0
    %3049 = vmatprep.mubr.f32.mxu0 0.0
    %3050 = vmatmul.mubr.f32.gmra.mrb[0].mxu0 %v2962
    %v3051 = vpop.f32.mrb[0].mxu0
    %v3052 = vadd.f32 %v2923, %v3051
    %v3053 = vpop.f32.mrb[0].mxu0
    %3054 = vmatprep.mubr.f32.mxu0 0.0
    %3055 = vmatmul.mubr.f32.gmra.mrb[0].mxu0 %v2965
    %v3056 = vpop.f32.mrb[0].mxu0
    %v3057 = vadd.f32 %v2928, %v3056
    %v3058 = vpop.f32.mrb[0].mxu0
    %3059 = vmatprep.mubr.f32.mxu0 0.0
    %3060 = vmatmul.mubr.f32.gmra.mrb[0].mxu0 %v2968
    %v3061 = vpop.f32.mrb[0].mxu0
    %v3062 = vadd.f32 %v2933, %v3061
    %v3063 = vpop.f32.mrb[0].mxu0
    %3064 = vmatprep.mubr.f32.mxu0 0.0
    %3065 = vmatmul.mubr.f32.gmra.mrb[0].mxu0 %v2971
    %v3066 = vpop.f32.mrb[0].mxu0
    %v3067 = vadd.f32 %v2938, %v3066
    %v3068 = vpop.f32.mrb[0].mxu0
    %3069 = vmatprep.mubr.f32.mxu0 0.0
    %3070 = vmatmul.mubr.f32.gmra.mrb[0].mxu0 %v2974
    %v3071 = vpop.f32.mrb[0].mxu0
    %v3072 = vadd.f32 %v2943, %v3071
    %v3073 = vpop.f32.mrb[0].mxu0
    %3074 = vmatprep.mubr.f32.mxu0 0.0
    %3075 = vmatmul.mubr.f32.gmra.mrb[0].mxu0 %v2977
    %v3076 = vpop.f32.mrb[0].mxu0
    %v3077 = vadd.f32 %v2948, %v3076
    %v3078 = vpop.f32.mrb[0].mxu0
    %3079 = vmatprep.mubr.f32.mxu0 0.0
    %3080 = vmatmul.mubr.f32.gmra.mrb[0].mxu0 %v2980
    %v3081 = vpop.f32.mrb[0].mxu0
    %v3082 = vadd.f32 %v2953, %v3081
    %v3083 = vpop.f32.mrb[0].mxu0
    %3084 = vmatprep.mubr.f32.mxu0 0.0
    %3085 = vmatmul.mubr.f32.gmra.mrb[0].mxu0 %v2983
    %v3086 = vpop.f32.mrb[0].mxu0
    %v3087 = vadd.f32 %v2958, %v3086
    %v3088 = vpop.f32.mrb[0].mxu0
    %3089 = vdwg.mxu0
    %v3090 = vld [vmem:[%s13] sm:$0x1]
    %v3092 = vlaneseq
    %v3093 = vshrl.u32 %v3092, 7
    %v3094 = vsub.s32 0, %v3093
    %v3095 = vrot.slane %v3090, %v3094
    %v3097 = vadd.f32 %v3052, %v3095
    %v3098 = vadd.f32 %v3057, %v3095
    %v3099 = vadd.f32 %v3062, %v3095
    %v3100 = vadd.f32 %v3067, %v3095
    %v3101 = vadd.f32 %v3072, %v3095
    %v3102 = vadd.f32 %v3077, %v3095
    %v3103 = vadd.f32 %v3082, %v3095
    %v3104 = vadd.f32 %v3087, %v3095
    %v3105 = vadd.f32 %v3097, %v70
    %v3106 = vadd.f32 %v3098, %v71
    %v3107 = vadd.f32 %v3099, %v72
    %v3108 = vadd.f32 %v3100, %v73
    %v3109 = vadd.f32 %v3101, %v74
    %v3110 = vadd.f32 %v3102, %v75
    %v3111 = vadd.f32 %v3103, %v76
    %v3112 = vadd.f32 %v3104, %v77
    %3113 = vst.msk [vmem:[%s14] sm:$0xff] %vm92, %v3105
    %3114 = vst.msk [vmem:[%s14 + $0x8] sm:$0xff] %vm92, %v3106
    %3115 = vst.msk [vmem:[%s14 + $0x10] sm:$0xff] %vm92, %v3107
    %3116 = vst.msk [vmem:[%s14 + $0x18] sm:$0xff] %vm92, %v3108
    %3117 = vst.msk [vmem:[%s14 + $0x20] sm:$0xff] %vm92, %v3109
    %3118 = vst.msk [vmem:[%s14 + $0x28] sm:$0xff] %vm92, %v3110
    %3119 = vst.msk [vmem:[%s14 + $0x30] sm:$0xff] %vm92, %v3111
    %3120 = vst.msk [vmem:[%s14 + $0x38] sm:$0xff] %vm92, %v3112
    // Predicated region
    $region62: #{gcn_gat_forward.1} parent=1 // pred_check
      _
    $region63: #{gcn_gat_forward.1} parent=1 // pred_check_branch
      %3122 = sbr.rel (0) target = $region65
    $region64: #{gcn_gat_forward.1} parent=1 // pred_region
      _
    $region65: #{gcn_gat_forward.1} parent=1 // pred_fallthru
      _
    // Predicated region
    $region66: #{gcn_gat_forward.1} parent=1 // pred_check
      _
    $region67: #{gcn_gat_forward.1} parent=1 // pred_check_branch
      %3124 = sbr.rel (0) target = $region69
    $region68: #{gcn_gat_forward.1} parent=1 // pred_region
      _
    $region69: #{gcn_gat_forward.1} parent=1 // pred_fallthru
      _
    %3125 = vsyncpa [#allocation3], 1

</llo_original>
